<compile_context>
chip_gen: v6e
topology: v6e:2x2x1
jax: 0.10.0
libtpu: 0.0.40
codegen_flags: <defaults>
</compile_context>

<pallas_src>
import jax
import jax.numpy as jnp
import numpy as np
from jax.experimental import pallas as pl
from jax.experimental.pallas import tpu as pltpu

_LANE = 128  # pad the 3-wide logits to a lane-dense output block


# -----------------------------------------------------------------------------
# Bidirectional LSTM recurrence kernel (both directions interleaved).
# grid = (time-chunk,); (h, c) per direction live in VMEM scratch across chunks.
# gxf/gxb hold precomputed x@W_ih gate pre-activations (bf16, bias added here):
#   forward  reads chunk tb          and walks it forwards,
#   backward reads chunk n_tb-1-tb   and walks it backwards.
# -----------------------------------------------------------------------------
def _bilstm_kernel(len_ref, gxf_ref, gxb_ref, whh_ref, b_ref, out_ref,
                   hf_ref, cf_ref, hb_ref, cb_ref):
    tb = pl.program_id(0)
    n_tb = pl.num_programs(0)
    t_chunk = gxf_ref.shape[0]
    H = hf_ref.shape[-1]

    @pl.when(tb == 0)
    def _init():
        hf_ref[...] = jnp.zeros_like(hf_ref)
        cf_ref[...] = jnp.zeros_like(cf_ref)
        hb_ref[...] = jnp.zeros_like(hb_ref)
        cb_ref[...] = jnp.zeros_like(cb_ref)

    lengths = len_ref[...]            # (B, 1) int32
    whh_f = whh_ref[0]                # (H, 4H) bf16
    whh_b = whh_ref[1]
    bias_f = b_ref[0]                 # (1, 4H) f32
    bias_b = b_ref[1]

    hf = hf_ref[...]                  # (B, H) f32
    cf = cf_ref[...]
    hb = hb_ref[...]
    cb = cb_ref[...]

    def cell(gx, h, c, whh, bias, valid):
        gates = (gx.astype(jnp.float32) + bias
                 + jnp.dot(h.astype(whh.dtype), whh,
                           preferred_element_type=jnp.float32))
        i_g = jax.nn.sigmoid(gates[:, 0 * H:1 * H])
        f_g = jax.nn.sigmoid(gates[:, 1 * H:2 * H])
        g_g = jnp.tanh(gates[:, 2 * H:3 * H])
        o_g = jax.nn.sigmoid(gates[:, 3 * H:4 * H])
        c_new = f_g * c + i_g * g_g
        h_new = o_g * jnp.tanh(c_new)
        return jnp.where(valid, h_new, h), jnp.where(valid, c_new, c)

    # Statically unrolled inner time loop; two independent recurrences per step
    # so the second stream's vmatmul push hides the first stream's latency.
    for s in range(t_chunk):
        t_f = tb * t_chunk + s                                 # forward time
        t_b = (n_tb - 1 - tb) * t_chunk + (t_chunk - 1 - s)    # backward time
        valid_f = t_f < lengths                                # packed-seq mask
        valid_b = t_b < lengths
        hf, cf = cell(gxf_ref[s], hf, cf, whh_f, bias_f, valid_f)
        hb, cb = cell(gxb_ref[t_chunk - 1 - s], hb, cb, whh_b, bias_b, valid_b)

    hf_ref[...] = hf
    cf_ref[...] = cf
    hb_ref[...] = hb
    cb_ref[...] = cb

    # Unconditional write each chunk (output block index is constant -> stays
    # resident in VMEM; HBM writeback happens once at the end of the grid).
    out_ref[:, :H] = hf
    out_ref[:, H:] = hb


def bilstm_encode(embeddings_tm, lengths, params, t_chunk=16,
                  vmem_limit_bytes=None):
    """embeddings_tm (T,B,I) f32 time-major, lengths (B,) -> (B, 2H) f32."""
    T, B, I = embeddings_tm.shape
    H = params["w_hh"].shape[1]
    n_tb = pl.cdiv(T, t_chunk)
    t_pad = n_tb * t_chunk

    # --- Hoisted input projection: one big bf16 matmul over all timesteps,
    #     already time-major so no transpose of the wide gate tensor. ---
    x_bf = embeddings_tm.astype(jnp.bfloat16).reshape(T * B, I)
    gx = jnp.dot(x_bf, params["w_ih_cat"],
                 preferred_element_type=jnp.float32)
    gx = gx.astype(jnp.bfloat16).reshape(T, B, 8 * H)          # (T, B, 8H) bf16
    if t_pad != T:
        gx = jnp.pad(gx, ((0, t_pad - T), (0, 0), (0, 0)))

    lengths_2d = lengths.astype(jnp.int32).reshape(B, 1)

    grid_spec = pltpu.PrefetchScalarGridSpec(
        num_scalar_prefetch=0,
        grid=(n_tb,),
        in_specs=[
            pl.BlockSpec((B, 1), lambda tb: (0, 0)),
            # forward half: gates [0:4H], chunks in ascending time order
            pl.BlockSpec((t_chunk, B, 4 * H), lambda tb: (tb, 0, 0)),
            # backward half: gates [4H:8H], chunks in descending time order
            pl.BlockSpec((t_chunk, B, 4 * H), lambda tb: (n_tb - 1 - tb, 0, 1)),
            pl.BlockSpec((2, H, 4 * H), lambda tb: (0, 0, 0)),
            pl.BlockSpec((2, 1, 4 * H), lambda tb: (0, 0, 0)),
        ],
        out_specs=pl.BlockSpec((B, 2 * H), lambda tb: (0, 0)),
        scratch_shapes=[pltpu.VMEM((B, H), jnp.float32)] * 4,
    )

    cp_kwargs = {}
    if vmem_limit_bytes is not None:
        cp_kwargs["vmem_limit_bytes"] = vmem_limit_bytes

    return pl.pallas_call(
        _bilstm_kernel,
        out_shape=jax.ShapeDtypeStruct((B, 2 * H), jnp.float32),
        grid_spec=grid_spec,
        compiler_params=pltpu.CompilerParams(
            dimension_semantics=("arbitrary",), **cp_kwargs),
    )(lengths_2d, gx, gx, params["w_hh"], params["b"])


# -----------------------------------------------------------------------------
# Classifier MLP kernel: feature construction [u, v, |u-v|, u*v] fused in
# (w1 consumed as 4 row-blocks so no concat materializes), single invocation.
# -----------------------------------------------------------------------------
def _classifier_kernel(u_ref, v_ref, w1_ref, b1_ref, w2_ref, b2_ref,
                       w3_ref, b3_ref, o_ref):
    u = u_ref[...]
    v = v_ref[...]
    D = u.shape[-1]                     # 2H

    def dot(a, w):
        return jnp.dot(a.astype(jnp.bfloat16), w,
                       preferred_element_type=jnp.float32)

    h1 = (dot(u, w1_ref[0 * D:1 * D, :])
          + dot(v, w1_ref[1 * D:2 * D, :])
          + dot(jnp.abs(u - v), w1_ref[2 * D:3 * D, :])
          + dot(u * v, w1_ref[3 * D:4 * D, :])
          + b1_ref[...])
    h1 = jnp.tanh(h1)
    h2 = jnp.tanh(dot(h1, w2_ref[...]) + b2_ref[...])
    o_ref[...] = dot(h2, w3_ref[...]) + b3_ref[...]


def classifier_forward(u, v, params):
    B = u.shape[0]
    out = pl.pallas_call(
        _classifier_kernel,
        out_shape=jax.ShapeDtypeStruct((B, _LANE), jnp.float32),
    )(u, v, params["cls_w1"], params["cls_b1"],
      params["cls_w2"], params["cls_b2"],
      params["cls_w3_pad"], params["cls_b3_pad"])
    return out[:, :params["n_classes"]]


# -----------------------------------------------------------------------------
# Full Enc_MLP forward (bi_lstm encoder path).
# -----------------------------------------------------------------------------
def enc_mlp_forward(premise_ids, premise_len, hyp_ids, hyp_len, params,
                    t_chunk=16):
    # TODO(synk): embedding gather stays in XLA (jnp.take); a Pallas
    #             scalar-prefetch gather adds nothing at these sizes.
    emb = params["embedding"]
    B = premise_ids.shape[0]
    # Fuse premise + hypothesis along batch: one encode, one T-step recurrence.
    ids = jnp.concatenate([premise_ids, hyp_ids], axis=0)          # (2B, T)
    lens = jnp.concatenate([premise_len, hyp_len], axis=0)         # (2B,)
    x_tm = jnp.take(emb, ids.T, axis=0)                            # (T, 2B, I)
    enc = bilstm_encode(x_tm, lens, params, t_chunk)                # (2B, 2H)
    u, v = enc[:B], enc[B:]
    return classifier_forward(u, v, params)


# -----------------------------------------------------------------------------
# Parameters (PyTorch-style init; weights pre-transposed / pre-padded, bf16).
# -----------------------------------------------------------------------------
def make_params(key, vocab_size, input_size, hidden_size, n_classes=3):
    H, I = hidden_size, input_size
    k = 1.0 / np.sqrt(H)
    keys = jax.random.split(key, 16)

    def u(kk, shape, scale):
        return jax.random.uniform(kk, shape, jnp.float32, -scale, scale)

    emb = jax.random.normal(keys[0], (vocab_size, I), jnp.float32) * 0.5

    # PyTorch LSTM layout: weight_ih (4H, I), weight_hh (4H, H), gates [i,f,g,o]
    w_ih = jnp.stack([u(keys[1], (4 * H, I), k), u(keys[2], (4 * H, I), k)])
    w_hh = jnp.stack([u(keys[3], (4 * H, H), k), u(keys[4], (4 * H, H), k)])
    b = jnp.stack([u(keys[5], (4 * H,), k) + u(keys[6], (4 * H,), k),
                   u(keys[7], (4 * H,), k) + u(keys[8], (4 * H,), k)])

    w_ih_t = jnp.transpose(w_ih, (0, 2, 1)).astype(jnp.bfloat16)   # (2, I, 4H)
    w_ih_cat = jnp.concatenate([w_ih_t[0], w_ih_t[1]], axis=-1)    # (I, 8H)

    d_in = 4 * 2 * H

    def lin(kw, kb, fan_in, fan_out):
        s = 1.0 / np.sqrt(fan_in)
        return u(kw, (fan_in, fan_out), s), u(kb, (1, fan_out), s)

    w1, b1 = lin(keys[9], keys[10], d_in, 512)
    w2, b2 = lin(keys[11], keys[12], 512, 512)
    w3, b3 = lin(keys[13], keys[14], 512, n_classes)
    w3_pad = jnp.pad(w3, ((0, 0), (0, _LANE - n_classes)))
    b3_pad = jnp.pad(b3, ((0, 0), (0, _LANE - n_classes)))

    return {
        "embedding": emb,
        "w_ih_cat": w_ih_cat,                                          # bf16
        "w_hh": jnp.transpose(w_hh, (0, 2, 1)).astype(jnp.bfloat16),   # (2,H,4H)
        "b": b.reshape(2, 1, 4 * H),                                   # f32
        "cls_w1": w1.astype(jnp.bfloat16), "cls_b1": b1,
        "cls_w2": w2.astype(jnp.bfloat16), "cls_b2": b2,
        "cls_w3_pad": w3_pad.astype(jnp.bfloat16), "cls_b3_pad": b3_pad,
        "n_classes": n_classes,
    }


# -----------------------------------------------------------------------------
# Pure-JAX reference with bf16-weight numerics (f32 gate math), for validation.
# -----------------------------------------------------------------------------
def enc_mlp_reference(premise_ids, premise_len, hyp_ids, hyp_len, params):
    emb = params["embedding"]
    H = params["w_hh"].shape[1]

    def encode(ids, lengths):
        x = jnp.take(emb, ids, axis=0)
        B, T, _ = x.shape
        lengths = lengths.astype(jnp.int32)

        def run_dir(d, reverse):
            w_ih = params["w_ih_cat"][:, d * 4 * H:(d + 1) * 4 * H]
            w_hh = params["w_hh"][d]
            b = params["b"][d]

            def step(carry, t):
                h, c = carry
                x_t = x[:, t, :].astype(jnp.bfloat16)
                gates = (jnp.dot(x_t, w_ih, preferred_element_type=jnp.float32)
                         + jnp.dot(h.astype(jnp.bfloat16), w_hh,
                                   preferred_element_type=jnp.float32) + b)
                i = jax.nn.sigmoid(gates[:, 0 * H:1 * H])
                f = jax.nn.sigmoid(gates[:, 1 * H:2 * H])
                g = jnp.tanh(gates[:, 2 * H:3 * H])
                o = jax.nn.sigmoid(gates[:, 3 * H:4 * H])
                c_new = f * c + i * g
                h_new = o * jnp.tanh(c_new)
                m = (t < lengths)[:, None]
                return (jnp.where(m, h_new, h), jnp.where(m, c_new, c)), None

            ts = jnp.arange(T - 1, -1, -1) if reverse else jnp.arange(T)
            init = (jnp.zeros((B, H), jnp.float32),
                    jnp.zeros((B, H), jnp.float32))
            (h, _), _ = jax.lax.scan(step, init, ts)
            return h

        return jnp.concatenate([run_dir(0, False), run_dir(1, True)], axis=-1)

    u = encode(premise_ids, premise_len)
    v = encode(hyp_ids, hyp_len)
    feats = jnp.concatenate([u, v, jnp.abs(u - v), u * v], axis=1)
    h1 = jnp.tanh(jnp.dot(feats.astype(jnp.bfloat16), params["cls_w1"],
                          preferred_element_type=jnp.float32) + params["cls_b1"])
    h2 = jnp.tanh(jnp.dot(h1.astype(jnp.bfloat16), params["cls_w2"],
                          preferred_element_type=jnp.float32) + params["cls_b2"])
    logits = jnp.dot(h2.astype(jnp.bfloat16), params["cls_w3_pad"],
                     preferred_element_type=jnp.float32) + params["cls_b3_pad"]
    return logits[:, :params["n_classes"]]


if __name__ == "__main__":
    # Small shapes consistent with Enc_MLP's forward (real module: I=300,
    # H=2048, vocab >> 64; scaled down for a quick on-device test).
    B, T, I, H, V = 8, 12, 128, 128, 64

    key = jax.random.PRNGKey(0)
    kp, kh, kparam = jax.random.split(key, 3)
    premise = jax.random.randint(kp, (B, T), 0, V, dtype=jnp.int32)
    hypothesis = jax.random.randint(kh, (B, T), 0, V, dtype=jnp.int32)
    premise_len = jnp.array([12, 7, 1, 12, 5, 9, 3, 10], dtype=jnp.int32)
    hypothesis_len = jnp.array([4, 12, 8, 2, 11, 6, 12, 1], dtype=jnp.int32)
    params = make_params(kparam, V, I, H)

    # t_chunk=8 so n_tb=2 and the multi-chunk / reversed-backward path is
    # exercised at this T.
    out = enc_mlp_forward(premise, premise_len, hypothesis, hypothesis_len,
                          params, t_chunk=8)
    out = jax.block_until_ready(out)
    assert out.shape == (B, 3), out.shape

    ref = jax.block_until_ready(
        enc_mlp_reference(premise, premise_len, hypothesis, hypothesis_len,
                          params))
    max_err = float(jnp.max(jnp.abs(out - ref)))
    # Tolerance accounts for bf16 storage of the hoisted gate pre-activations.
    assert max_err < 4e-2, f"max abs error {max_err}"

    print("KERNEL_OK")
</pallas_src>

<mosaic_0001>
module attributes {stable_mosaic.version = 11 : i64} {
  func.func @_bilstm_kernel(%arg0: i32, %arg1: memref<16x1xi32, #tpu.memory_space<vmem>>, %arg2: memref<8x16x512xbf16, #tpu.memory_space<vmem>>, %arg3: memref<8x16x512xbf16, #tpu.memory_space<vmem>>, %arg4: memref<2x128x512xbf16, #tpu.memory_space<vmem>>, %arg5: memref<2x1x512xf32, #tpu.memory_space<vmem>>, %arg6: memref<16x256xf32, #tpu.memory_space<vmem>>, %arg7: memref<16x128xf32, #tpu.memory_space<vmem>>, %arg8: memref<16x128xf32, #tpu.memory_space<vmem>>, %arg9: memref<16x128xf32, #tpu.memory_space<vmem>>, %arg10: memref<16x128xf32, #tpu.memory_space<vmem>>) attributes {dimension_semantics = [#tpu.dimension_semantics<arbitrary>], iteration_bounds = array<i64: 2>, scalar_prefetch = 0 : i64, scratch_operands = 4 : i64, tpu.core_type = #tpu.core_type<tc>, window_params = [{pipeline_mode = #tpu.pipeline_mode<synchronous>, transform_indices = @transform_0, window_bounds = array<i64: 16, 1>}, {transform_indices = @transform_1, window_bounds = array<i64: 8, 16, 512>}, {transform_indices = @transform_2, window_bounds = array<i64: 8, 16, 512>}, {pipeline_mode = #tpu.pipeline_mode<synchronous>, transform_indices = @transform_3, window_bounds = array<i64: 2, 128, 512>}, {pipeline_mode = #tpu.pipeline_mode<synchronous>, transform_indices = @transform_4, window_bounds = array<i64: 2, 1, 512>}, {pipeline_mode = #tpu.pipeline_mode<synchronous>, transform_indices = @transform_5, window_bounds = array<i64: 16, 256>}]} {
    %c0_i32 = arith.constant 0 : i32
    %0 = arith.cmpi eq, %arg0, %c0_i32 : i32
    %1 = arith.extui %0 : i1 to i32
    %c0_i32_0 = arith.constant 0 : i32
    %2 = arith.cmpi ne, %1, %c0_i32_0 : i32
    scf.if %2 {
      %cst_169 = arith.constant 0.000000e+00 : f32
      %718 = vector.broadcast %cst_169 : f32 to vector<16x128xf32>
      %c0_170 = arith.constant 0 : index
      %c0_171 = arith.constant 0 : index
      %719 = vector.load %arg7[%c0_170, %c0_171] : memref<16x128xf32, #tpu.memory_space<vmem>>, vector<16x128xf32>
      tpu.vector_store %arg7[%c0_170, %c0_171], %718 {strides = array<i32>} : memref<16x128xf32, #tpu.memory_space<vmem>>, vector<16x128xf32>,
      %cst_172 = arith.constant 0.000000e+00 : f32
      %720 = vector.broadcast %cst_172 : f32 to vector<16x128xf32>
      %c0_173 = arith.constant 0 : index
      %c0_174 = arith.constant 0 : index
      %721 = vector.load %arg8[%c0_173, %c0_174] : memref<16x128xf32, #tpu.memory_space<vmem>>, vector<16x128xf32>
      tpu.vector_store %arg8[%c0_173, %c0_174], %720 {strides = array<i32>} : memref<16x128xf32, #tpu.memory_space<vmem>>, vector<16x128xf32>,
      %cst_175 = arith.constant 0.000000e+00 : f32
      %722 = vector.broadcast %cst_175 : f32 to vector<16x128xf32>
      %c0_176 = arith.constant 0 : index
      %c0_177 = arith.constant 0 : index
      %723 = vector.load %arg9[%c0_176, %c0_177] : memref<16x128xf32, #tpu.memory_space<vmem>>, vector<16x128xf32>
      tpu.vector_store %arg9[%c0_176, %c0_177], %722 {strides = array<i32>} : memref<16x128xf32, #tpu.memory_space<vmem>>, vector<16x128xf32>,
      %cst_178 = arith.constant 0.000000e+00 : f32
      %724 = vector.broadcast %cst_178 : f32 to vector<16x128xf32>
      %c0_179 = arith.constant 0 : index
      %c0_180 = arith.constant 0 : index
      %725 = vector.load %arg10[%c0_179, %c0_180] : memref<16x128xf32, #tpu.memory_space<vmem>>, vector<16x128xf32>
      tpu.vector_store %arg10[%c0_179, %c0_180], %724 {strides = array<i32>} : memref<16x128xf32, #tpu.memory_space<vmem>>, vector<16x128xf32>,
    } else {
    }
    %c0 = arith.constant 0 : index
    %c0_1 = arith.constant 0 : index
    %3 = vector.load %arg1[%c0, %c0_1] : memref<16x1xi32, #tpu.memory_space<vmem>>, vector<16x1xi32>
    %c0_2 = arith.constant 0 : index
    %c0_3 = arith.constant 0 : index
    %c0_4 = arith.constant 0 : index
    %4 = vector.load %arg4[%c0_2, %c0_3, %c0_4] : memref<2x128x512xbf16, #tpu.memory_space<vmem>>, vector<1x128x512xbf16>
    %5 = vector.shape_cast %4 : vector<1x128x512xbf16> to vector<128x512xbf16>
    %c1 = arith.constant 1 : index
    %c0_5 = arith.constant 0 : index
    %c0_6 = arith.constant 0 : index
    %6 = vector.load %arg4[%c1, %c0_5, %c0_6] : memref<2x128x512xbf16, #tpu.memory_space<vmem>>, vector<1x128x512xbf16>
    %7 = vector.shape_cast %6 : vector<1x128x512xbf16> to vector<128x512xbf16>
    %c0_7 = arith.constant 0 : index
    %c0_8 = arith.constant 0 : index
    %c0_9 = arith.constant 0 : index
    %8 = vector.load %arg5[%c0_7, %c0_8, %c0_9] : memref<2x1x512xf32, #tpu.memory_space<vmem>>, vector<1x1x512xf32>
    %9 = vector.shape_cast %8 : vector<1x1x512xf32> to vector<1x512xf32>
    %c1_10 = arith.constant 1 : index
    %c0_11 = arith.constant 0 : index
    %c0_12 = arith.constant 0 : index
    %10 = vector.load %arg5[%c1_10, %c0_11, %c0_12] : memref<2x1x512xf32, #tpu.memory_space<vmem>>, vector<1x1x512xf32>
    %11 = vector.shape_cast %10 : vector<1x1x512xf32> to vector<1x512xf32>
    %c0_13 = arith.constant 0 : index
    %c0_14 = arith.constant 0 : index
    %12 = vector.load %arg7[%c0_13, %c0_14] : memref<16x128xf32, #tpu.memory_space<vmem>>, vector<16x128xf32>
    %c0_15 = arith.constant 0 : index
    %c0_16 = arith.constant 0 : index
    %13 = vector.load %arg8[%c0_15, %c0_16] : memref<16x128xf32, #tpu.memory_space<vmem>>, vector<16x128xf32>
    %c0_17 = arith.constant 0 : index
    %c0_18 = arith.constant 0 : index
    %14 = vector.load %arg9[%c0_17, %c0_18] : memref<16x128xf32, #tpu.memory_space<vmem>>, vector<16x128xf32>
    %c0_19 = arith.constant 0 : index
    %c0_20 = arith.constant 0 : index
    %15 = vector.load %arg10[%c0_19, %c0_20] : memref<16x128xf32, #tpu.memory_space<vmem>>, vector<16x128xf32>
    %c8_i32 = arith.constant 8 : i32
    %16 = arith.muli %arg0, %c8_i32 : i32
    %c0_i32_21 = arith.constant 0 : i32
    %17 = arith.addi %16, %c0_i32_21 : i32
    %c1_i32 = arith.constant 1 : i32
    %18 = arith.subi %c1_i32, %arg0 : i32
    %c8_i32_22 = arith.constant 8 : i32
    %19 = arith.muli %18, %c8_i32_22 : i32
    %c7_i32 = arith.constant 7 : i32
    %20 = arith.addi %19, %c7_i32 : i32
    %21 = vector.broadcast %17 : i32 to vector<16x1xi32>
    %22 = arith.cmpi slt, %21, %3 : vector<16x1xi32>
    %23 = vector.broadcast %20 : i32 to vector<16x1xi32>
    %24 = arith.cmpi slt, %23, %3 : vector<16x1xi32>
    %c0_23 = arith.constant 0 : index
    %c0_24 = arith.constant 0 : index
    %c0_25 = arith.constant 0 : index
    %25 = vector.load %arg2[%c0_23, %c0_24, %c0_25] : memref<8x16x512xbf16, #tpu.memory_space<vmem>>, vector<1x16x512xbf16>
    %26 = vector.shape_cast %25 : vector<1x16x512xbf16> to vector<16x512xbf16>
    %27 = arith.extf %26 : vector<16x512xbf16> to vector<16x512xf32>
    %28 = vector.broadcast %9 : vector<1x512xf32> to vector<16x512xf32>
    %29 = arith.addf %27, %28 : vector<16x512xf32>
    %30 = arith.truncf %12 : vector<16x128xf32> to vector<16x128xbf16>
    %cst = arith.constant dense<0.000000e+00> : vector<16x512xf32>
    %31 = tpu.matmul %30, %5, %cst {dimension_numbers = #tpu.dot_dimension_numbers<[1], [0], [0], [1], [0, 0, 1, 1], [], []>} : vector<16x128xbf16>, vector<128x512xbf16>, vector<16x512xf32> -> vector<16x512xf32>
    %32 = arith.addf %29, %31 : vector<16x512xf32>
    %33 = vector.extract_strided_slice %32 {offsets = [0, 0], sizes = [16, 128], strides = [1, 1]} : vector<16x512xf32> to vector<16x128xf32>
    %34 = arith.negf %33 : vector<16x128xf32>
    %35 = math.exp %34 : vector<16x128xf32>
    %cst_26 = arith.constant 1.000000e+00 : f32
    %36 = vector.broadcast %cst_26 : f32 to vector<16x128xf32>
    %37 = arith.addf %36, %35 : vector<16x128xf32>
    %38 = arith.divf %36, %37 : vector<16x128xf32>
    %39 = vector.extract_strided_slice %32 {offsets = [0, 128], sizes = [16, 128], strides = [1, 1]} : vector<16x512xf32> to vector<16x128xf32>
    %40 = arith.negf %39 : vector<16x128xf32>
    %41 = math.exp %40 : vector<16x128xf32>
    %cst_27 = arith.constant 1.000000e+00 : f32
    %42 = vector.broadcast %cst_27 : f32 to vector<16x128xf32>
    %43 = arith.addf %42, %41 : vector<16x128xf32>
    %44 = arith.divf %42, %43 : vector<16x128xf32>
    %45 = vector.extract_strided_slice %32 {offsets = [0, 256], sizes = [16, 128], strides = [1, 1]} : vector<16x512xf32> to vector<16x128xf32>
    %46 = math.tanh %45 : vector<16x128xf32>
    %47 = vector.extract_strided_slice %32 {offsets = [0, 384], sizes = [16, 128], strides = [1, 1]} : vector<16x512xf32> to vector<16x128xf32>
    %48 = arith.negf %47 : vector<16x128xf32>
    %49 = math.exp %48 : vector<16x128xf32>
    %cst_28 = arith.constant 1.000000e+00 : f32
    %50 = vector.broadcast %cst_28 : f32 to vector<16x128xf32>
    %51 = arith.addf %50, %49 : vector<16x128xf32>
    %52 = arith.divf %50, %51 : vector<16x128xf32>
    %53 = arith.mulf %44, %13 : vector<16x128xf32>
    %54 = arith.mulf %38, %46 : vector<16x128xf32>
    %55 = arith.addf %53, %54 : vector<16x128xf32>
    %56 = math.tanh %55 : vector<16x128xf32>
    %57 = arith.mulf %52, %56 : vector<16x128xf32>
    %58 = vector.shape_cast %22 : vector<16x1xi1> to vector<16x1xi1>
    %59 = vector.broadcast %58 : vector<16x1xi1> to vector<16x128xi1>
    %60 = arith.select %59, %57, %12 : vector<16x128xi1>, vector<16x128xf32>
    %61 = vector.shape_cast %22 : vector<16x1xi1> to vector<16x1xi1>
    %62 = vector.broadcast %61 : vector<16x1xi1> to vector<16x128xi1>
    %63 = arith.select %62, %55, %13 : vector<16x128xi1>, vector<16x128xf32>
    %c7 = arith.constant 7 : index
    %c0_29 = arith.constant 0 : index
    %c0_30 = arith.constant 0 : index
    %64 = vector.load %arg3[%c7, %c0_29, %c0_30] : memref<8x16x512xbf16, #tpu.memory_space<vmem>>, vector<1x16x512xbf16>
    %65 = vector.shape_cast %64 : vector<1x16x512xbf16> to vector<16x512xbf16>
    %66 = arith.extf %65 : vector<16x512xbf16> to vector<16x512xf32>
    %67 = vector.broadcast %11 : vector<1x512xf32> to vector<16x512xf32>
    %68 = arith.addf %66, %67 : vector<16x512xf32>
    %69 = arith.truncf %14 : vector<16x128xf32> to vector<16x128xbf16>
    %cst_31 = arith.constant dense<0.000000e+00> : vector<16x512xf32>
    %70 = tpu.matmul %69, %7, %cst_31 {dimension_numbers = #tpu.dot_dimension_numbers<[1], [0], [0], [1], [0, 0, 1, 1], [], []>} : vector<16x128xbf16>, vector<128x512xbf16>, vector<16x512xf32> -> vector<16x512xf32>
    %71 = arith.addf %68, %70 : vector<16x512xf32>
    %72 = vector.extract_strided_slice %71 {offsets = [0, 0], sizes = [16, 128], strides = [1, 1]} : vector<16x512xf32> to vector<16x128xf32>
    %73 = arith.negf %72 : vector<16x128xf32>
    %74 = math.exp %73 : vector<16x128xf32>
    %cst_32 = arith.constant 1.000000e+00 : f32
    %75 = vector.broadcast %cst_32 : f32 to vector<16x128xf32>
    %76 = arith.addf %75, %74 : vector<16x128xf32>
    %77 = arith.divf %75, %76 : vector<16x128xf32>
    %78 = vector.extract_strided_slice %71 {offsets = [0, 128], sizes = [16, 128], strides = [1, 1]} : vector<16x512xf32> to vector<16x128xf32>
    %79 = arith.negf %78 : vector<16x128xf32>
    %80 = math.exp %79 : vector<16x128xf32>
    %cst_33 = arith.constant 1.000000e+00 : f32
    %81 = vector.broadcast %cst_33 : f32 to vector<16x128xf32>
    %82 = arith.addf %81, %80 : vector<16x128xf32>
    %83 = arith.divf %81, %82 : vector<16x128xf32>
    %84 = vector.extract_strided_slice %71 {offsets = [0, 256], sizes = [16, 128], strides = [1, 1]} : vector<16x512xf32> to vector<16x128xf32>
    %85 = math.tanh %84 : vector<16x128xf32>
    %86 = vector.extract_strided_slice %71 {offsets = [0, 384], sizes = [16, 128], strides = [1, 1]} : vector<16x512xf32> to vector<16x128xf32>
    %87 = arith.negf %86 : vector<16x128xf32>
    %88 = math.exp %87 : vector<16x128xf32>
    %cst_34 = arith.constant 1.000000e+00 : f32
    %89 = vector.broadcast %cst_34 : f32 to vector<16x128xf32>
    %90 = arith.addf %89, %88 : vector<16x128xf32>
    %91 = arith.divf %89, %90 : vector<16x128xf32>
    %92 = arith.mulf %83, %15 : vector<16x128xf32>
    %93 = arith.mulf %77, %85 : vector<16x128xf32>
    %94 = arith.addf %92, %93 : vector<16x128xf32>
    %95 = math.tanh %94 : vector<16x128xf32>
    %96 = arith.mulf %91, %95 : vector<16x128xf32>
    %97 = vector.shape_cast %24 : vector<16x1xi1> to vector<16x1xi1>
    %98 = vector.broadcast %97 : vector<16x1xi1> to vector<16x128xi1>
    %99 = arith.select %98, %96, %14 : vector<16x128xi1>, vector<16x128xf32>
    %100 = vector.shape_cast %24 : vector<16x1xi1> to vector<16x1xi1>
    %101 = vector.broadcast %100 : vector<16x1xi1> to vector<16x128xi1>
    %102 = arith.select %101, %94, %15 : vector<16x128xi1>, vector<16x128xf32>
    %c8_i32_35 = arith.constant 8 : i32
    %103 = arith.muli %arg0, %c8_i32_35 : i32
    %c1_i32_36 = arith.constant 1 : i32
    %104 = arith.addi %103, %c1_i32_36 : i32
    %c1_i32_37 = arith.constant 1 : i32
    %105 = arith.subi %c1_i32_37, %arg0 : i32
    %c8_i32_38 = arith.constant 8 : i32
    %106 = arith.muli %105, %c8_i32_38 : i32
    %c6_i32 = arith.constant 6 : i32
    %107 = arith.addi %106, %c6_i32 : i32
    %108 = vector.broadcast %104 : i32 to vector<16x1xi32>
    %109 = arith.cmpi slt, %108, %3 : vector<16x1xi32>
    %110 = vector.broadcast %107 : i32 to vector<16x1xi32>
    %111 = arith.cmpi slt, %110, %3 : vector<16x1xi32>
    %c1_39 = arith.constant 1 : index
    %c0_40 = arith.constant 0 : index
    %c0_41 = arith.constant 0 : index
    %112 = vector.load %arg2[%c1_39, %c0_40, %c0_41] : memref<8x16x512xbf16, #tpu.memory_space<vmem>>, vector<1x16x512xbf16>
    %113 = vector.shape_cast %112 : vector<1x16x512xbf16> to vector<16x512xbf16>
    %114 = arith.extf %113 : vector<16x512xbf16> to vector<16x512xf32>
    %115 = vector.broadcast %9 : vector<1x512xf32> to vector<16x512xf32>
    %116 = arith.addf %114, %115 : vector<16x512xf32>
    %117 = arith.truncf %60 : vector<16x128xf32> to vector<16x128xbf16>
    %cst_42 = arith.constant dense<0.000000e+00> : vector<16x512xf32>
    %118 = tpu.matmul %117, %5, %cst_42 {dimension_numbers = #tpu.dot_dimension_numbers<[1], [0], [0], [1], [0, 0, 1, 1], [], []>} : vector<16x128xbf16>, vector<128x512xbf16>, vector<16x512xf32> -> vector<16x512xf32>
    %119 = arith.addf %116, %118 : vector<16x512xf32>
    %120 = vector.extract_strided_slice %119 {offsets = [0, 0], sizes = [16, 128], strides = [1, 1]} : vector<16x512xf32> to vector<16x128xf32>
    %121 = arith.negf %120 : vector<16x128xf32>
    %122 = math.exp %121 : vector<16x128xf32>
    %cst_43 = arith.constant 1.000000e+00 : f32
    %123 = vector.broadcast %cst_43 : f32 to vector<16x128xf32>
    %124 = arith.addf %123, %122 : vector<16x128xf32>
    %125 = arith.divf %123, %124 : vector<16x128xf32>
    %126 = vector.extract_strided_slice %119 {offsets = [0, 128], sizes = [16, 128], strides = [1, 1]} : vector<16x512xf32> to vector<16x128xf32>
    %127 = arith.negf %126 : vector<16x128xf32>
    %128 = math.exp %127 : vector<16x128xf32>
    %cst_44 = arith.constant 1.000000e+00 : f32
    %129 = vector.broadcast %cst_44 : f32 to vector<16x128xf32>
    %130 = arith.addf %129, %128 : vector<16x128xf32>
    %131 = arith.divf %129, %130 : vector<16x128xf32>
    %132 = vector.extract_strided_slice %119 {offsets = [0, 256], sizes = [16, 128], strides = [1, 1]} : vector<16x512xf32> to vector<16x128xf32>
    %133 = math.tanh %132 : vector<16x128xf32>
    %134 = vector.extract_strided_slice %119 {offsets = [0, 384], sizes = [16, 128], strides = [1, 1]} : vector<16x512xf32> to vector<16x128xf32>
    %135 = arith.negf %134 : vector<16x128xf32>
    %136 = math.exp %135 : vector<16x128xf32>
    %cst_45 = arith.constant 1.000000e+00 : f32
    %137 = vector.broadcast %cst_45 : f32 to vector<16x128xf32>
    %138 = arith.addf %137, %136 : vector<16x128xf32>
    %139 = arith.divf %137, %138 : vector<16x128xf32>
    %140 = arith.mulf %131, %63 : vector<16x128xf32>
    %141 = arith.mulf %125, %133 : vector<16x128xf32>
    %142 = arith.addf %140, %141 : vector<16x128xf32>
    %143 = math.tanh %142 : vector<16x128xf32>
    %144 = arith.mulf %139, %143 : vector<16x128xf32>
    %145 = vector.shape_cast %109 : vector<16x1xi1> to vector<16x1xi1>
    %146 = vector.broadcast %145 : vector<16x1xi1> to vector<16x128xi1>
    %147 = arith.select %146, %144, %60 : vector<16x128xi1>, vector<16x128xf32>
    %148 = vector.shape_cast %109 : vector<16x1xi1> to vector<16x1xi1>
    %149 = vector.broadcast %148 : vector<16x1xi1> to vector<16x128xi1>
    %150 = arith.select %149, %142, %63 : vector<16x128xi1>, vector<16x128xf32>
    %c6 = arith.constant 6 : index
    %c0_46 = arith.constant 0 : index
    %c0_47 = arith.constant 0 : index
    %151 = vector.load %arg3[%c6, %c0_46, %c0_47] : memref<8x16x512xbf16, #tpu.memory_space<vmem>>, vector<1x16x512xbf16>
    %152 = vector.shape_cast %151 : vector<1x16x512xbf16> to vector<16x512xbf16>
    %153 = arith.extf %152 : vector<16x512xbf16> to vector<16x512xf32>
    %154 = vector.broadcast %11 : vector<1x512xf32> to vector<16x512xf32>
    %155 = arith.addf %153, %154 : vector<16x512xf32>
    %156 = arith.truncf %99 : vector<16x128xf32> to vector<16x128xbf16>
    %cst_48 = arith.constant dense<0.000000e+00> : vector<16x512xf32>
    %157 = tpu.matmul %156, %7, %cst_48 {dimension_numbers = #tpu.dot_dimension_numbers<[1], [0], [0], [1], [0, 0, 1, 1], [], []>} : vector<16x128xbf16>, vector<128x512xbf16>, vector<16x512xf32> -> vector<16x512xf32>
    %158 = arith.addf %155, %157 : vector<16x512xf32>
    %159 = vector.extract_strided_slice %158 {offsets = [0, 0], sizes = [16, 128], strides = [1, 1]} : vector<16x512xf32> to vector<16x128xf32>
    %160 = arith.negf %159 : vector<16x128xf32>
    %161 = math.exp %160 : vector<16x128xf32>
    %cst_49 = arith.constant 1.000000e+00 : f32
    %162 = vector.broadcast %cst_49 : f32 to vector<16x128xf32>
    %163 = arith.addf %162, %161 : vector<16x128xf32>
    %164 = arith.divf %162, %163 : vector<16x128xf32>
    %165 = vector.extract_strided_slice %158 {offsets = [0, 128], sizes = [16, 128], strides = [1, 1]} : vector<16x512xf32> to vector<16x128xf32>
    %166 = arith.negf %165 : vector<16x128xf32>
    %167 = math.exp %166 : vector<16x128xf32>
    %cst_50 = arith.constant 1.000000e+00 : f32
    %168 = vector.broadcast %cst_50 : f32 to vector<16x128xf32>
    %169 = arith.addf %168, %167 : vector<16x128xf32>
    %170 = arith.divf %168, %169 : vector<16x128xf32>
    %171 = vector.extract_strided_slice %158 {offsets = [0, 256], sizes = [16, 128], strides = [1, 1]} : vector<16x512xf32> to vector<16x128xf32>
    %172 = math.tanh %171 : vector<16x128xf32>
    %173 = vector.extract_strided_slice %158 {offsets = [0, 384], sizes = [16, 128], strides = [1, 1]} : vector<16x512xf32> to vector<16x128xf32>
    %174 = arith.negf %173 : vector<16x128xf32>
    %175 = math.exp %174 : vector<16x128xf32>
    %cst_51 = arith.constant 1.000000e+00 : f32
    %176 = vector.broadcast %cst_51 : f32 to vector<16x128xf32>
    %177 = arith.addf %176, %175 : vector<16x128xf32>
    %178 = arith.divf %176, %177 : vector<16x128xf32>
    %179 = arith.mulf %170, %102 : vector<16x128xf32>
    %180 = arith.mulf %164, %172 : vector<16x128xf32>
    %181 = arith.addf %179, %180 : vector<16x128xf32>
    %182 = math.tanh %181 : vector<16x128xf32>
    %183 = arith.mulf %178, %182 : vector<16x128xf32>
    %184 = vector.shape_cast %111 : vector<16x1xi1> to vector<16x1xi1>
    %185 = vector.broadcast %184 : vector<16x1xi1> to vector<16x128xi1>
    %186 = arith.select %185, %183, %99 : vector<16x128xi1>, vector<16x128xf32>
    %187 = vector.shape_cast %111 : vector<16x1xi1> to vector<16x1xi1>
    %188 = vector.broadcast %187 : vector<16x1xi1> to vector<16x128xi1>
    %189 = arith.select %188, %181, %102 : vector<16x128xi1>, vector<16x128xf32>
    %c8_i32_52 = arith.constant 8 : i32
    %190 = arith.muli %arg0, %c8_i32_52 : i32
    %c2_i32 = arith.constant 2 : i32
    %191 = arith.addi %190, %c2_i32 : i32
    %c1_i32_53 = arith.constant 1 : i32
    %192 = arith.subi %c1_i32_53, %arg0 : i32
    %c8_i32_54 = arith.constant 8 : i32
    %193 = arith.muli %192, %c8_i32_54 : i32
    %c5_i32 = arith.constant 5 : i32
    %194 = arith.addi %193, %c5_i32 : i32
    %195 = vector.broadcast %191 : i32 to vector<16x1xi32>
    %196 = arith.cmpi slt, %195, %3 : vector<16x1xi32>
    %197 = vector.broadcast %194 : i32 to vector<16x1xi32>
    %198 = arith.cmpi slt, %197, %3 : vector<16x1xi32>
    %c2 = arith.constant 2 : index
    %c0_55 = arith.constant 0 : index
    %c0_56 = arith.constant 0 : index
    %199 = vector.load %arg2[%c2, %c0_55, %c0_56] : memref<8x16x512xbf16, #tpu.memory_space<vmem>>, vector<1x16x512xbf16>
    %200 = vector.shape_cast %199 : vector<1x16x512xbf16> to vector<16x512xbf16>
    %201 = arith.extf %200 : vector<16x512xbf16> to vector<16x512xf32>
    %202 = vector.broadcast %9 : vector<1x512xf32> to vector<16x512xf32>
    %203 = arith.addf %201, %202 : vector<16x512xf32>
    %204 = arith.truncf %147 : vector<16x128xf32> to vector<16x128xbf16>
    %cst_57 = arith.constant dense<0.000000e+00> : vector<16x512xf32>
    %205 = tpu.matmul %204, %5, %cst_57 {dimension_numbers = #tpu.dot_dimension_numbers<[1], [0], [0], [1], [0, 0, 1, 1], [], []>} : vector<16x128xbf16>, vector<128x512xbf16>, vector<16x512xf32> -> vector<16x512xf32>
    %206 = arith.addf %203, %205 : vector<16x512xf32>
    %207 = vector.extract_strided_slice %206 {offsets = [0, 0], sizes = [16, 128], strides = [1, 1]} : vector<16x512xf32> to vector<16x128xf32>
    %208 = arith.negf %207 : vector<16x128xf32>
    %209 = math.exp %208 : vector<16x128xf32>
    %cst_58 = arith.constant 1.000000e+00 : f32
    %210 = vector.broadcast %cst_58 : f32 to vector<16x128xf32>
    %211 = arith.addf %210, %209 : vector<16x128xf32>
    %212 = arith.divf %210, %211 : vector<16x128xf32>
    %213 = vector.extract_strided_slice %206 {offsets = [0, 128], sizes = [16, 128], strides = [1, 1]} : vector<16x512xf32> to vector<16x128xf32>
    %214 = arith.negf %213 : vector<16x128xf32>
    %215 = math.exp %214 : vector<16x128xf32>
    %cst_59 = arith.constant 1.000000e+00 : f32
    %216 = vector.broadcast %cst_59 : f32 to vector<16x128xf32>
    %217 = arith.addf %216, %215 : vector<16x128xf32>
    %218 = arith.divf %216, %217 : vector<16x128xf32>
    %219 = vector.extract_strided_slice %206 {offsets = [0, 256], sizes = [16, 128], strides = [1, 1]} : vector<16x512xf32> to vector<16x128xf32>
    %220 = math.tanh %219 : vector<16x128xf32>
    %221 = vector.extract_strided_slice %206 {offsets = [0, 384], sizes = [16, 128], strides = [1, 1]} : vector<16x512xf32> to vector<16x128xf32>
    %222 = arith.negf %221 : vector<16x128xf32>
    %223 = math.exp %222 : vector<16x128xf32>
    %cst_60 = arith.constant 1.000000e+00 : f32
    %224 = vector.broadcast %cst_60 : f32 to vector<16x128xf32>
    %225 = arith.addf %224, %223 : vector<16x128xf32>
    %226 = arith.divf %224, %225 : vector<16x128xf32>
    %227 = arith.mulf %218, %150 : vector<16x128xf32>
    %228 = arith.mulf %212, %220 : vector<16x128xf32>
    %229 = arith.addf %227, %228 : vector<16x128xf32>
    %230 = math.tanh %229 : vector<16x128xf32>
    %231 = arith.mulf %226, %230 : vector<16x128xf32>
    %232 = vector.shape_cast %196 : vector<16x1xi1> to vector<16x1xi1>
    %233 = vector.broadcast %232 : vector<16x1xi1> to vector<16x128xi1>
    %234 = arith.select %233, %231, %147 : vector<16x128xi1>, vector<16x128xf32>
    %235 = vector.shape_cast %196 : vector<16x1xi1> to vector<16x1xi1>
    %236 = vector.broadcast %235 : vector<16x1xi1> to vector<16x128xi1>
    %237 = arith.select %236, %229, %150 : vector<16x128xi1>, vector<16x128xf32>
    %c5 = arith.constant 5 : index
    %c0_61 = arith.constant 0 : index
    %c0_62 = arith.constant 0 : index
    %238 = vector.load %arg3[%c5, %c0_61, %c0_62] : memref<8x16x512xbf16, #tpu.memory_space<vmem>>, vector<1x16x512xbf16>
    %239 = vector.shape_cast %238 : vector<1x16x512xbf16> to vector<16x512xbf16>
    %240 = arith.extf %239 : vector<16x512xbf16> to vector<16x512xf32>
    %241 = vector.broadcast %11 : vector<1x512xf32> to vector<16x512xf32>
    %242 = arith.addf %240, %241 : vector<16x512xf32>
    %243 = arith.truncf %186 : vector<16x128xf32> to vector<16x128xbf16>
    %cst_63 = arith.constant dense<0.000000e+00> : vector<16x512xf32>
    %244 = tpu.matmul %243, %7, %cst_63 {dimension_numbers = #tpu.dot_dimension_numbers<[1], [0], [0], [1], [0, 0, 1, 1], [], []>} : vector<16x128xbf16>, vector<128x512xbf16>, vector<16x512xf32> -> vector<16x512xf32>
    %245 = arith.addf %242, %244 : vector<16x512xf32>
    %246 = vector.extract_strided_slice %245 {offsets = [0, 0], sizes = [16, 128], strides = [1, 1]} : vector<16x512xf32> to vector<16x128xf32>
    %247 = arith.negf %246 : vector<16x128xf32>
    %248 = math.exp %247 : vector<16x128xf32>
    %cst_64 = arith.constant 1.000000e+00 : f32
    %249 = vector.broadcast %cst_64 : f32 to vector<16x128xf32>
    %250 = arith.addf %249, %248 : vector<16x128xf32>
    %251 = arith.divf %249, %250 : vector<16x128xf32>
    %252 = vector.extract_strided_slice %245 {offsets = [0, 128], sizes = [16, 128], strides = [1, 1]} : vector<16x512xf32> to vector<16x128xf32>
    %253 = arith.negf %252 : vector<16x128xf32>
    %254 = math.exp %253 : vector<16x128xf32>
    %cst_65 = arith.constant 1.000000e+00 : f32
    %255 = vector.broadcast %cst_65 : f32 to vector<16x128xf32>
    %256 = arith.addf %255, %254 : vector<16x128xf32>
    %257 = arith.divf %255, %256 : vector<16x128xf32>
    %258 = vector.extract_strided_slice %245 {offsets = [0, 256], sizes = [16, 128], strides = [1, 1]} : vector<16x512xf32> to vector<16x128xf32>
    %259 = math.tanh %258 : vector<16x128xf32>
    %260 = vector.extract_strided_slice %245 {offsets = [0, 384], sizes = [16, 128], strides = [1, 1]} : vector<16x512xf32> to vector<16x128xf32>
    %261 = arith.negf %260 : vector<16x128xf32>
    %262 = math.exp %261 : vector<16x128xf32>
    %cst_66 = arith.constant 1.000000e+00 : f32
    %263 = vector.broadcast %cst_66 : f32 to vector<16x128xf32>
    %264 = arith.addf %263, %262 : vector<16x128xf32>
    %265 = arith.divf %263, %264 : vector<16x128xf32>
    %266 = arith.mulf %257, %189 : vector<16x128xf32>
    %267 = arith.mulf %251, %259 : vector<16x128xf32>
    %268 = arith.addf %266, %267 : vector<16x128xf32>
    %269 = math.tanh %268 : vector<16x128xf32>
    %270 = arith.mulf %265, %269 : vector<16x128xf32>
    %271 = vector.shape_cast %198 : vector<16x1xi1> to vector<16x1xi1>
    %272 = vector.broadcast %271 : vector<16x1xi1> to vector<16x128xi1>
    %273 = arith.select %272, %270, %186 : vector<16x128xi1>, vector<16x128xf32>
    %274 = vector.shape_cast %198 : vector<16x1xi1> to vector<16x1xi1>
    %275 = vector.broadcast %274 : vector<16x1xi1> to vector<16x128xi1>
    %276 = arith.select %275, %268, %189 : vector<16x128xi1>, vector<16x128xf32>
    %c8_i32_67 = arith.constant 8 : i32
    %277 = arith.muli %arg0, %c8_i32_67 : i32
    %c3_i32 = arith.constant 3 : i32
    %278 = arith.addi %277, %c3_i32 : i32
    %c1_i32_68 = arith.constant 1 : i32
    %279 = arith.subi %c1_i32_68, %arg0 : i32
    %c8_i32_69 = arith.constant 8 : i32
    %280 = arith.muli %279, %c8_i32_69 : i32
    %c4_i32 = arith.constant 4 : i32
    %281 = arith.addi %280, %c4_i32 : i32
    %282 = vector.broadcast %278 : i32 to vector<16x1xi32>
    %283 = arith.cmpi slt, %282, %3 : vector<16x1xi32>
    %284 = vector.broadcast %281 : i32 to vector<16x1xi32>
    %285 = arith.cmpi slt, %284, %3 : vector<16x1xi32>
    %c3 = arith.constant 3 : index
    %c0_70 = arith.constant 0 : index
    %c0_71 = arith.constant 0 : index
    %286 = vector.load %arg2[%c3, %c0_70, %c0_71] : memref<8x16x512xbf16, #tpu.memory_space<vmem>>, vector<1x16x512xbf16>
    %287 = vector.shape_cast %286 : vector<1x16x512xbf16> to vector<16x512xbf16>
    %288 = arith.extf %287 : vector<16x512xbf16> to vector<16x512xf32>
    %289 = vector.broadcast %9 : vector<1x512xf32> to vector<16x512xf32>
    %290 = arith.addf %288, %289 : vector<16x512xf32>
    %291 = arith.truncf %234 : vector<16x128xf32> to vector<16x128xbf16>
    %cst_72 = arith.constant dense<0.000000e+00> : vector<16x512xf32>
    %292 = tpu.matmul %291, %5, %cst_72 {dimension_numbers = #tpu.dot_dimension_numbers<[1], [0], [0], [1], [0, 0, 1, 1], [], []>} : vector<16x128xbf16>, vector<128x512xbf16>, vector<16x512xf32> -> vector<16x512xf32>
    %293 = arith.addf %290, %292 : vector<16x512xf32>
    %294 = vector.extract_strided_slice %293 {offsets = [0, 0], sizes = [16, 128], strides = [1, 1]} : vector<16x512xf32> to vector<16x128xf32>
    %295 = arith.negf %294 : vector<16x128xf32>
    %296 = math.exp %295 : vector<16x128xf32>
    %cst_73 = arith.constant 1.000000e+00 : f32
    %297 = vector.broadcast %cst_73 : f32 to vector<16x128xf32>
    %298 = arith.addf %297, %296 : vector<16x128xf32>
    %299 = arith.divf %297, %298 : vector<16x128xf32>
    %300 = vector.extract_strided_slice %293 {offsets = [0, 128], sizes = [16, 128], strides = [1, 1]} : vector<16x512xf32> to vector<16x128xf32>
    %301 = arith.negf %300 : vector<16x128xf32>
    %302 = math.exp %301 : vector<16x128xf32>
    %cst_74 = arith.constant 1.000000e+00 : f32
    %303 = vector.broadcast %cst_74 : f32 to vector<16x128xf32>
    %304 = arith.addf %303, %302 : vector<16x128xf32>
    %305 = arith.divf %303, %304 : vector<16x128xf32>
    %306 = vector.extract_strided_slice %293 {offsets = [0, 256], sizes = [16, 128], strides = [1, 1]} : vector<16x512xf32> to vector<16x128xf32>
    %307 = math.tanh %306 : vector<16x128xf32>
    %308 = vector.extract_strided_slice %293 {offsets = [0, 384], sizes = [16, 128], strides = [1, 1]} : vector<16x512xf32> to vector<16x128xf32>
    %309 = arith.negf %308 : vector<16x128xf32>
    %310 = math.exp %309 : vector<16x128xf32>
    %cst_75 = arith.constant 1.000000e+00 : f32
    %311 = vector.broadcast %cst_75 : f32 to vector<16x128xf32>
    %312 = arith.addf %311, %310 : vector<16x128xf32>
    %313 = arith.divf %311, %312 : vector<16x128xf32>
    %314 = arith.mulf %305, %237 : vector<16x128xf32>
    %315 = arith.mulf %299, %307 : vector<16x128xf32>
    %316 = arith.addf %314, %315 : vector<16x128xf32>
    %317 = math.tanh %316 : vector<16x128xf32>
    %318 = arith.mulf %313, %317 : vector<16x128xf32>
    %319 = vector.shape_cast %283 : vector<16x1xi1> to vector<16x1xi1>
    %320 = vector.broadcast %319 : vector<16x1xi1> to vector<16x128xi1>
    %321 = arith.select %320, %318, %234 : vector<16x128xi1>, vector<16x128xf32>
    %322 = vector.shape_cast %283 : vector<16x1xi1> to vector<16x1xi1>
    %323 = vector.broadcast %322 : vector<16x1xi1> to vector<16x128xi1>
    %324 = arith.select %323, %316, %237 : vector<16x128xi1>, vector<16x128xf32>
    %c4 = arith.constant 4 : index
    %c0_76 = arith.constant 0 : index
    %c0_77 = arith.constant 0 : index
    %325 = vector.load %arg3[%c4, %c0_76, %c0_77] : memref<8x16x512xbf16, #tpu.memory_space<vmem>>, vector<1x16x512xbf16>
    %326 = vector.shape_cast %325 : vector<1x16x512xbf16> to vector<16x512xbf16>
    %327 = arith.extf %326 : vector<16x512xbf16> to vector<16x512xf32>
    %328 = vector.broadcast %11 : vector<1x512xf32> to vector<16x512xf32>
    %329 = arith.addf %327, %328 : vector<16x512xf32>
    %330 = arith.truncf %273 : vector<16x128xf32> to vector<16x128xbf16>
    %cst_78 = arith.constant dense<0.000000e+00> : vector<16x512xf32>
    %331 = tpu.matmul %330, %7, %cst_78 {dimension_numbers = #tpu.dot_dimension_numbers<[1], [0], [0], [1], [0, 0, 1, 1], [], []>} : vector<16x128xbf16>, vector<128x512xbf16>, vector<16x512xf32> -> vector<16x512xf32>
    %332 = arith.addf %329, %331 : vector<16x512xf32>
    %333 = vector.extract_strided_slice %332 {offsets = [0, 0], sizes = [16, 128], strides = [1, 1]} : vector<16x512xf32> to vector<16x128xf32>
    %334 = arith.negf %333 : vector<16x128xf32>
    %335 = math.exp %334 : vector<16x128xf32>
    %cst_79 = arith.constant 1.000000e+00 : f32
    %336 = vector.broadcast %cst_79 : f32 to vector<16x128xf32>
    %337 = arith.addf %336, %335 : vector<16x128xf32>
    %338 = arith.divf %336, %337 : vector<16x128xf32>
    %339 = vector.extract_strided_slice %332 {offsets = [0, 128], sizes = [16, 128], strides = [1, 1]} : vector<16x512xf32> to vector<16x128xf32>
    %340 = arith.negf %339 : vector<16x128xf32>
    %341 = math.exp %340 : vector<16x128xf32>
    %cst_80 = arith.constant 1.000000e+00 : f32
    %342 = vector.broadcast %cst_80 : f32 to vector<16x128xf32>
    %343 = arith.addf %342, %341 : vector<16x128xf32>
    %344 = arith.divf %342, %343 : vector<16x128xf32>
    %345 = vector.extract_strided_slice %332 {offsets = [0, 256], sizes = [16, 128], strides = [1, 1]} : vector<16x512xf32> to vector<16x128xf32>
    %346 = math.tanh %345 : vector<16x128xf32>
    %347 = vector.extract_strided_slice %332 {offsets = [0, 384], sizes = [16, 128], strides = [1, 1]} : vector<16x512xf32> to vector<16x128xf32>
    %348 = arith.negf %347 : vector<16x128xf32>
    %349 = math.exp %348 : vector<16x128xf32>
    %cst_81 = arith.constant 1.000000e+00 : f32
    %350 = vector.broadcast %cst_81 : f32 to vector<16x128xf32>
    %351 = arith.addf %350, %349 : vector<16x128xf32>
    %352 = arith.divf %350, %351 : vector<16x128xf32>
    %353 = arith.mulf %344, %276 : vector<16x128xf32>
    %354 = arith.mulf %338, %346 : vector<16x128xf32>
    %355 = arith.addf %353, %354 : vector<16x128xf32>
    %356 = math.tanh %355 : vector<16x128xf32>
    %357 = arith.mulf %352, %356 : vector<16x128xf32>
    %358 = vector.shape_cast %285 : vector<16x1xi1> to vector<16x1xi1>
    %359 = vector.broadcast %358 : vector<16x1xi1> to vector<16x128xi1>
    %360 = arith.select %359, %357, %273 : vector<16x128xi1>, vector<16x128xf32>
    %361 = vector.shape_cast %285 : vector<16x1xi1> to vector<16x1xi1>
    %362 = vector.broadcast %361 : vector<16x1xi1> to vector<16x128xi1>
    %363 = arith.select %362, %355, %276 : vector<16x128xi1>, vector<16x128xf32>
    %c8_i32_82 = arith.constant 8 : i32
    %364 = arith.muli %arg0, %c8_i32_82 : i32
    %c4_i32_83 = arith.constant 4 : i32
    %365 = arith.addi %364, %c4_i32_83 : i32
    %c1_i32_84 = arith.constant 1 : i32
    %366 = arith.subi %c1_i32_84, %arg0 : i32
    %c8_i32_85 = arith.constant 8 : i32
    %367 = arith.muli %366, %c8_i32_85 : i32
    %c3_i32_86 = arith.constant 3 : i32
    %368 = arith.addi %367, %c3_i32_86 : i32
    %369 = vector.broadcast %365 : i32 to vector<16x1xi32>
    %370 = arith.cmpi slt, %369, %3 : vector<16x1xi32>
    %371 = vector.broadcast %368 : i32 to vector<16x1xi32>
    %372 = arith.cmpi slt, %371, %3 : vector<16x1xi32>
    %c4_87 = arith.constant 4 : index
    %c0_88 = arith.constant 0 : index
    %c0_89 = arith.constant 0 : index
    %373 = vector.load %arg2[%c4_87, %c0_88, %c0_89] : memref<8x16x512xbf16, #tpu.memory_space<vmem>>, vector<1x16x512xbf16>
    %374 = vector.shape_cast %373 : vector<1x16x512xbf16> to vector<16x512xbf16>
    %375 = arith.extf %374 : vector<16x512xbf16> to vector<16x512xf32>
    %376 = vector.broadcast %9 : vector<1x512xf32> to vector<16x512xf32>
    %377 = arith.addf %375, %376 : vector<16x512xf32>
    %378 = arith.truncf %321 : vector<16x128xf32> to vector<16x128xbf16>
    %cst_90 = arith.constant dense<0.000000e+00> : vector<16x512xf32>
    %379 = tpu.matmul %378, %5, %cst_90 {dimension_numbers = #tpu.dot_dimension_numbers<[1], [0], [0], [1], [0, 0, 1, 1], [], []>} : vector<16x128xbf16>, vector<128x512xbf16>, vector<16x512xf32> -> vector<16x512xf32>
    %380 = arith.addf %377, %379 : vector<16x512xf32>
    %381 = vector.extract_strided_slice %380 {offsets = [0, 0], sizes = [16, 128], strides = [1, 1]} : vector<16x512xf32> to vector<16x128xf32>
    %382 = arith.negf %381 : vector<16x128xf32>
    %383 = math.exp %382 : vector<16x128xf32>
    %cst_91 = arith.constant 1.000000e+00 : f32
    %384 = vector.broadcast %cst_91 : f32 to vector<16x128xf32>
    %385 = arith.addf %384, %383 : vector<16x128xf32>
    %386 = arith.divf %384, %385 : vector<16x128xf32>
    %387 = vector.extract_strided_slice %380 {offsets = [0, 128], sizes = [16, 128], strides = [1, 1]} : vector<16x512xf32> to vector<16x128xf32>
    %388 = arith.negf %387 : vector<16x128xf32>
    %389 = math.exp %388 : vector<16x128xf32>
    %cst_92 = arith.constant 1.000000e+00 : f32
    %390 = vector.broadcast %cst_92 : f32 to vector<16x128xf32>
    %391 = arith.addf %390, %389 : vector<16x128xf32>
    %392 = arith.divf %390, %391 : vector<16x128xf32>
    %393 = vector.extract_strided_slice %380 {offsets = [0, 256], sizes = [16, 128], strides = [1, 1]} : vector<16x512xf32> to vector<16x128xf32>
    %394 = math.tanh %393 : vector<16x128xf32>
    %395 = vector.extract_strided_slice %380 {offsets = [0, 384], sizes = [16, 128], strides = [1, 1]} : vector<16x512xf32> to vector<16x128xf32>
    %396 = arith.negf %395 : vector<16x128xf32>
    %397 = math.exp %396 : vector<16x128xf32>
    %cst_93 = arith.constant 1.000000e+00 : f32
    %398 = vector.broadcast %cst_93 : f32 to vector<16x128xf32>
    %399 = arith.addf %398, %397 : vector<16x128xf32>
    %400 = arith.divf %398, %399 : vector<16x128xf32>
    %401 = arith.mulf %392, %324 : vector<16x128xf32>
    %402 = arith.mulf %386, %394 : vector<16x128xf32>
    %403 = arith.addf %401, %402 : vector<16x128xf32>
    %404 = math.tanh %403 : vector<16x128xf32>
    %405 = arith.mulf %400, %404 : vector<16x128xf32>
    %406 = vector.shape_cast %370 : vector<16x1xi1> to vector<16x1xi1>
    %407 = vector.broadcast %406 : vector<16x1xi1> to vector<16x128xi1>
    %408 = arith.select %407, %405, %321 : vector<16x128xi1>, vector<16x128xf32>
    %409 = vector.shape_cast %370 : vector<16x1xi1> to vector<16x1xi1>
    %410 = vector.broadcast %409 : vector<16x1xi1> to vector<16x128xi1>
    %411 = arith.select %410, %403, %324 : vector<16x128xi1>, vector<16x128xf32>
    %c3_94 = arith.constant 3 : index
    %c0_95 = arith.constant 0 : index
    %c0_96 = arith.constant 0 : index
    %412 = vector.load %arg3[%c3_94, %c0_95, %c0_96] : memref<8x16x512xbf16, #tpu.memory_space<vmem>>, vector<1x16x512xbf16>
    %413 = vector.shape_cast %412 : vector<1x16x512xbf16> to vector<16x512xbf16>
    %414 = arith.extf %413 : vector<16x512xbf16> to vector<16x512xf32>
    %415 = vector.broadcast %11 : vector<1x512xf32> to vector<16x512xf32>
    %416 = arith.addf %414, %415 : vector<16x512xf32>
    %417 = arith.truncf %360 : vector<16x128xf32> to vector<16x128xbf16>
    %cst_97 = arith.constant dense<0.000000e+00> : vector<16x512xf32>
    %418 = tpu.matmul %417, %7, %cst_97 {dimension_numbers = #tpu.dot_dimension_numbers<[1], [0], [0], [1], [0, 0, 1, 1], [], []>} : vector<16x128xbf16>, vector<128x512xbf16>, vector<16x512xf32> -> vector<16x512xf32>
    %419 = arith.addf %416, %418 : vector<16x512xf32>
    %420 = vector.extract_strided_slice %419 {offsets = [0, 0], sizes = [16, 128], strides = [1, 1]} : vector<16x512xf32> to vector<16x128xf32>
    %421 = arith.negf %420 : vector<16x128xf32>
    %422 = math.exp %421 : vector<16x128xf32>
    %cst_98 = arith.constant 1.000000e+00 : f32
    %423 = vector.broadcast %cst_98 : f32 to vector<16x128xf32>
    %424 = arith.addf %423, %422 : vector<16x128xf32>
    %425 = arith.divf %423, %424 : vector<16x128xf32>
    %426 = vector.extract_strided_slice %419 {offsets = [0, 128], sizes = [16, 128], strides = [1, 1]} : vector<16x512xf32> to vector<16x128xf32>
    %427 = arith.negf %426 : vector<16x128xf32>
    %428 = math.exp %427 : vector<16x128xf32>
    %cst_99 = arith.constant 1.000000e+00 : f32
    %429 = vector.broadcast %cst_99 : f32 to vector<16x128xf32>
    %430 = arith.addf %429, %428 : vector<16x128xf32>
    %431 = arith.divf %429, %430 : vector<16x128xf32>
    %432 = vector.extract_strided_slice %419 {offsets = [0, 256], sizes = [16, 128], strides = [1, 1]} : vector<16x512xf32> to vector<16x128xf32>
    %433 = math.tanh %432 : vector<16x128xf32>
    %434 = vector.extract_strided_slice %419 {offsets = [0, 384], sizes = [16, 128], strides = [1, 1]} : vector<16x512xf32> to vector<16x128xf32>
    %435 = arith.negf %434 : vector<16x128xf32>
    %436 = math.exp %435 : vector<16x128xf32>
    %cst_100 = arith.constant 1.000000e+00 : f32
    %437 = vector.broadcast %cst_100 : f32 to vector<16x128xf32>
    %438 = arith.addf %437, %436 : vector<16x128xf32>
    %439 = arith.divf %437, %438 : vector<16x128xf32>
    %440 = arith.mulf %431, %363 : vector<16x128xf32>
    %441 = arith.mulf %425, %433 : vector<16x128xf32>
    %442 = arith.addf %440, %441 : vector<16x128xf32>
    %443 = math.tanh %442 : vector<16x128xf32>
    %444 = arith.mulf %439, %443 : vector<16x128xf32>
    %445 = vector.shape_cast %372 : vector<16x1xi1> to vector<16x1xi1>
    %446 = vector.broadcast %445 : vector<16x1xi1> to vector<16x128xi1>
    %447 = arith.select %446, %444, %360 : vector<16x128xi1>, vector<16x128xf32>
    %448 = vector.shape_cast %372 : vector<16x1xi1> to vector<16x1xi1>
    %449 = vector.broadcast %448 : vector<16x1xi1> to vector<16x128xi1>
    %450 = arith.select %449, %442, %363 : vector<16x128xi1>, vector<16x128xf32>
    %c8_i32_101 = arith.constant 8 : i32
    %451 = arith.muli %arg0, %c8_i32_101 : i32
    %c5_i32_102 = arith.constant 5 : i32
    %452 = arith.addi %451, %c5_i32_102 : i32
    %c1_i32_103 = arith.constant 1 : i32
    %453 = arith.subi %c1_i32_103, %arg0 : i32
    %c8_i32_104 = arith.constant 8 : i32
    %454 = arith.muli %453, %c8_i32_104 : i32
    %c2_i32_105 = arith.constant 2 : i32
    %455 = arith.addi %454, %c2_i32_105 : i32
    %456 = vector.broadcast %452 : i32 to vector<16x1xi32>
    %457 = arith.cmpi slt, %456, %3 : vector<16x1xi32>
    %458 = vector.broadcast %455 : i32 to vector<16x1xi32>
    %459 = arith.cmpi slt, %458, %3 : vector<16x1xi32>
    %c5_106 = arith.constant 5 : index
    %c0_107 = arith.constant 0 : index
    %c0_108 = arith.constant 0 : index
    %460 = vector.load %arg2[%c5_106, %c0_107, %c0_108] : memref<8x16x512xbf16, #tpu.memory_space<vmem>>, vector<1x16x512xbf16>
    %461 = vector.shape_cast %460 : vector<1x16x512xbf16> to vector<16x512xbf16>
    %462 = arith.extf %461 : vector<16x512xbf16> to vector<16x512xf32>
    %463 = vector.broadcast %9 : vector<1x512xf32> to vector<16x512xf32>
    %464 = arith.addf %462, %463 : vector<16x512xf32>
    %465 = arith.truncf %408 : vector<16x128xf32> to vector<16x128xbf16>
    %cst_109 = arith.constant dense<0.000000e+00> : vector<16x512xf32>
    %466 = tpu.matmul %465, %5, %cst_109 {dimension_numbers = #tpu.dot_dimension_numbers<[1], [0], [0], [1], [0, 0, 1, 1], [], []>} : vector<16x128xbf16>, vector<128x512xbf16>, vector<16x512xf32> -> vector<16x512xf32>
    %467 = arith.addf %464, %466 : vector<16x512xf32>
    %468 = vector.extract_strided_slice %467 {offsets = [0, 0], sizes = [16, 128], strides = [1, 1]} : vector<16x512xf32> to vector<16x128xf32>
    %469 = arith.negf %468 : vector<16x128xf32>
    %470 = math.exp %469 : vector<16x128xf32>
    %cst_110 = arith.constant 1.000000e+00 : f32
    %471 = vector.broadcast %cst_110 : f32 to vector<16x128xf32>
    %472 = arith.addf %471, %470 : vector<16x128xf32>
    %473 = arith.divf %471, %472 : vector<16x128xf32>
    %474 = vector.extract_strided_slice %467 {offsets = [0, 128], sizes = [16, 128], strides = [1, 1]} : vector<16x512xf32> to vector<16x128xf32>
    %475 = arith.negf %474 : vector<16x128xf32>
    %476 = math.exp %475 : vector<16x128xf32>
    %cst_111 = arith.constant 1.000000e+00 : f32
    %477 = vector.broadcast %cst_111 : f32 to vector<16x128xf32>
    %478 = arith.addf %477, %476 : vector<16x128xf32>
    %479 = arith.divf %477, %478 : vector<16x128xf32>
    %480 = vector.extract_strided_slice %467 {offsets = [0, 256], sizes = [16, 128], strides = [1, 1]} : vector<16x512xf32> to vector<16x128xf32>
    %481 = math.tanh %480 : vector<16x128xf32>
    %482 = vector.extract_strided_slice %467 {offsets = [0, 384], sizes = [16, 128], strides = [1, 1]} : vector<16x512xf32> to vector<16x128xf32>
    %483 = arith.negf %482 : vector<16x128xf32>
    %484 = math.exp %483 : vector<16x128xf32>
    %cst_112 = arith.constant 1.000000e+00 : f32
    %485 = vector.broadcast %cst_112 : f32 to vector<16x128xf32>
    %486 = arith.addf %485, %484 : vector<16x128xf32>
    %487 = arith.divf %485, %486 : vector<16x128xf32>
    %488 = arith.mulf %479, %411 : vector<16x128xf32>
    %489 = arith.mulf %473, %481 : vector<16x128xf32>
    %490 = arith.addf %488, %489 : vector<16x128xf32>
    %491 = math.tanh %490 : vector<16x128xf32>
    %492 = arith.mulf %487, %491 : vector<16x128xf32>
    %493 = vector.shape_cast %457 : vector<16x1xi1> to vector<16x1xi1>
    %494 = vector.broadcast %493 : vector<16x1xi1> to vector<16x128xi1>
    %495 = arith.select %494, %492, %408 : vector<16x128xi1>, vector<16x128xf32>
    %496 = vector.shape_cast %457 : vector<16x1xi1> to vector<16x1xi1>
    %497 = vector.broadcast %496 : vector<16x1xi1> to vector<16x128xi1>
    %498 = arith.select %497, %490, %411 : vector<16x128xi1>, vector<16x128xf32>
    %c2_113 = arith.constant 2 : index
    %c0_114 = arith.constant 0 : index
    %c0_115 = arith.constant 0 : index
    %499 = vector.load %arg3[%c2_113, %c0_114, %c0_115] : memref<8x16x512xbf16, #tpu.memory_space<vmem>>, vector<1x16x512xbf16>
    %500 = vector.shape_cast %499 : vector<1x16x512xbf16> to vector<16x512xbf16>
    %501 = arith.extf %500 : vector<16x512xbf16> to vector<16x512xf32>
    %502 = vector.broadcast %11 : vector<1x512xf32> to vector<16x512xf32>
    %503 = arith.addf %501, %502 : vector<16x512xf32>
    %504 = arith.truncf %447 : vector<16x128xf32> to vector<16x128xbf16>
    %cst_116 = arith.constant dense<0.000000e+00> : vector<16x512xf32>
    %505 = tpu.matmul %504, %7, %cst_116 {dimension_numbers = #tpu.dot_dimension_numbers<[1], [0], [0], [1], [0, 0, 1, 1], [], []>} : vector<16x128xbf16>, vector<128x512xbf16>, vector<16x512xf32> -> vector<16x512xf32>
    %506 = arith.addf %503, %505 : vector<16x512xf32>
    %507 = vector.extract_strided_slice %506 {offsets = [0, 0], sizes = [16, 128], strides = [1, 1]} : vector<16x512xf32> to vector<16x128xf32>
    %508 = arith.negf %507 : vector<16x128xf32>
    %509 = math.exp %508 : vector<16x128xf32>
    %cst_117 = arith.constant 1.000000e+00 : f32
    %510 = vector.broadcast %cst_117 : f32 to vector<16x128xf32>
    %511 = arith.addf %510, %509 : vector<16x128xf32>
    %512 = arith.divf %510, %511 : vector<16x128xf32>
    %513 = vector.extract_strided_slice %506 {offsets = [0, 128], sizes = [16, 128], strides = [1, 1]} : vector<16x512xf32> to vector<16x128xf32>
    %514 = arith.negf %513 : vector<16x128xf32>
    %515 = math.exp %514 : vector<16x128xf32>
    %cst_118 = arith.constant 1.000000e+00 : f32
    %516 = vector.broadcast %cst_118 : f32 to vector<16x128xf32>
    %517 = arith.addf %516, %515 : vector<16x128xf32>
    %518 = arith.divf %516, %517 : vector<16x128xf32>
    %519 = vector.extract_strided_slice %506 {offsets = [0, 256], sizes = [16, 128], strides = [1, 1]} : vector<16x512xf32> to vector<16x128xf32>
    %520 = math.tanh %519 : vector<16x128xf32>
    %521 = vector.extract_strided_slice %506 {offsets = [0, 384], sizes = [16, 128], strides = [1, 1]} : vector<16x512xf32> to vector<16x128xf32>
    %522 = arith.negf %521 : vector<16x128xf32>
    %523 = math.exp %522 : vector<16x128xf32>
    %cst_119 = arith.constant 1.000000e+00 : f32
    %524 = vector.broadcast %cst_119 : f32 to vector<16x128xf32>
    %525 = arith.addf %524, %523 : vector<16x128xf32>
    %526 = arith.divf %524, %525 : vector<16x128xf32>
    %527 = arith.mulf %518, %450 : vector<16x128xf32>
    %528 = arith.mulf %512, %520 : vector<16x128xf32>
    %529 = arith.addf %527, %528 : vector<16x128xf32>
    %530 = math.tanh %529 : vector<16x128xf32>
    %531 = arith.mulf %526, %530 : vector<16x128xf32>
    %532 = vector.shape_cast %459 : vector<16x1xi1> to vector<16x1xi1>
    %533 = vector.broadcast %532 : vector<16x1xi1> to vector<16x128xi1>
    %534 = arith.select %533, %531, %447 : vector<16x128xi1>, vector<16x128xf32>
    %535 = vector.shape_cast %459 : vector<16x1xi1> to vector<16x1xi1>
    %536 = vector.broadcast %535 : vector<16x1xi1> to vector<16x128xi1>
    %537 = arith.select %536, %529, %450 : vector<16x128xi1>, vector<16x128xf32>
    %c8_i32_120 = arith.constant 8 : i32
    %538 = arith.muli %arg0, %c8_i32_120 : i32
    %c6_i32_121 = arith.constant 6 : i32
    %539 = arith.addi %538, %c6_i32_121 : i32
    %c1_i32_122 = arith.constant 1 : i32
    %540 = arith.subi %c1_i32_122, %arg0 : i32
    %c8_i32_123 = arith.constant 8 : i32
    %541 = arith.muli %540, %c8_i32_123 : i32
    %c1_i32_124 = arith.constant 1 : i32
    %542 = arith.addi %541, %c1_i32_124 : i32
    %543 = vector.broadcast %539 : i32 to vector<16x1xi32>
    %544 = arith.cmpi slt, %543, %3 : vector<16x1xi32>
    %545 = vector.broadcast %542 : i32 to vector<16x1xi32>
    %546 = arith.cmpi slt, %545, %3 : vector<16x1xi32>
    %c6_125 = arith.constant 6 : index
    %c0_126 = arith.constant 0 : index
    %c0_127 = arith.constant 0 : index
    %547 = vector.load %arg2[%c6_125, %c0_126, %c0_127] : memref<8x16x512xbf16, #tpu.memory_space<vmem>>, vector<1x16x512xbf16>
    %548 = vector.shape_cast %547 : vector<1x16x512xbf16> to vector<16x512xbf16>
    %549 = arith.extf %548 : vector<16x512xbf16> to vector<16x512xf32>
    %550 = vector.broadcast %9 : vector<1x512xf32> to vector<16x512xf32>
    %551 = arith.addf %549, %550 : vector<16x512xf32>
    %552 = arith.truncf %495 : vector<16x128xf32> to vector<16x128xbf16>
    %cst_128 = arith.constant dense<0.000000e+00> : vector<16x512xf32>
    %553 = tpu.matmul %552, %5, %cst_128 {dimension_numbers = #tpu.dot_dimension_numbers<[1], [0], [0], [1], [0, 0, 1, 1], [], []>} : vector<16x128xbf16>, vector<128x512xbf16>, vector<16x512xf32> -> vector<16x512xf32>
    %554 = arith.addf %551, %553 : vector<16x512xf32>
    %555 = vector.extract_strided_slice %554 {offsets = [0, 0], sizes = [16, 128], strides = [1, 1]} : vector<16x512xf32> to vector<16x128xf32>
    %556 = arith.negf %555 : vector<16x128xf32>
    %557 = math.exp %556 : vector<16x128xf32>
    %cst_129 = arith.constant 1.000000e+00 : f32
    %558 = vector.broadcast %cst_129 : f32 to vector<16x128xf32>
    %559 = arith.addf %558, %557 : vector<16x128xf32>
    %560 = arith.divf %558, %559 : vector<16x128xf32>
    %561 = vector.extract_strided_slice %554 {offsets = [0, 128], sizes = [16, 128], strides = [1, 1]} : vector<16x512xf32> to vector<16x128xf32>
    %562 = arith.negf %561 : vector<16x128xf32>
    %563 = math.exp %562 : vector<16x128xf32>
    %cst_130 = arith.constant 1.000000e+00 : f32
    %564 = vector.broadcast %cst_130 : f32 to vector<16x128xf32>
    %565 = arith.addf %564, %563 : vector<16x128xf32>
    %566 = arith.divf %564, %565 : vector<16x128xf32>
    %567 = vector.extract_strided_slice %554 {offsets = [0, 256], sizes = [16, 128], strides = [1, 1]} : vector<16x512xf32> to vector<16x128xf32>
    %568 = math.tanh %567 : vector<16x128xf32>
    %569 = vector.extract_strided_slice %554 {offsets = [0, 384], sizes = [16, 128], strides = [1, 1]} : vector<16x512xf32> to vector<16x128xf32>
    %570 = arith.negf %569 : vector<16x128xf32>
    %571 = math.exp %570 : vector<16x128xf32>
    %cst_131 = arith.constant 1.000000e+00 : f32
    %572 = vector.broadcast %cst_131 : f32 to vector<16x128xf32>
    %573 = arith.addf %572, %571 : vector<16x128xf32>
    %574 = arith.divf %572, %573 : vector<16x128xf32>
    %575 = arith.mulf %566, %498 : vector<16x128xf32>
    %576 = arith.mulf %560, %568 : vector<16x128xf32>
    %577 = arith.addf %575, %576 : vector<16x128xf32>
    %578 = math.tanh %577 : vector<16x128xf32>
    %579 = arith.mulf %574, %578 : vector<16x128xf32>
    %580 = vector.shape_cast %544 : vector<16x1xi1> to vector<16x1xi1>
    %581 = vector.broadcast %580 : vector<16x1xi1> to vector<16x128xi1>
    %582 = arith.select %581, %579, %495 : vector<16x128xi1>, vector<16x128xf32>
    %583 = vector.shape_cast %544 : vector<16x1xi1> to vector<16x1xi1>
    %584 = vector.broadcast %583 : vector<16x1xi1> to vector<16x128xi1>
    %585 = arith.select %584, %577, %498 : vector<16x128xi1>, vector<16x128xf32>
    %c1_132 = arith.constant 1 : index
    %c0_133 = arith.constant 0 : index
    %c0_134 = arith.constant 0 : index
    %586 = vector.load %arg3[%c1_132, %c0_133, %c0_134] : memref<8x16x512xbf16, #tpu.memory_space<vmem>>, vector<1x16x512xbf16>
    %587 = vector.shape_cast %586 : vector<1x16x512xbf16> to vector<16x512xbf16>
    %588 = arith.extf %587 : vector<16x512xbf16> to vector<16x512xf32>
    %589 = vector.broadcast %11 : vector<1x512xf32> to vector<16x512xf32>
    %590 = arith.addf %588, %589 : vector<16x512xf32>
    %591 = arith.truncf %534 : vector<16x128xf32> to vector<16x128xbf16>
    %cst_135 = arith.constant dense<0.000000e+00> : vector<16x512xf32>
    %592 = tpu.matmul %591, %7, %cst_135 {dimension_numbers = #tpu.dot_dimension_numbers<[1], [0], [0], [1], [0, 0, 1, 1], [], []>} : vector<16x128xbf16>, vector<128x512xbf16>, vector<16x512xf32> -> vector<16x512xf32>
    %593 = arith.addf %590, %592 : vector<16x512xf32>
    %594 = vector.extract_strided_slice %593 {offsets = [0, 0], sizes = [16, 128], strides = [1, 1]} : vector<16x512xf32> to vector<16x128xf32>
    %595 = arith.negf %594 : vector<16x128xf32>
    %596 = math.exp %595 : vector<16x128xf32>
    %cst_136 = arith.constant 1.000000e+00 : f32
    %597 = vector.broadcast %cst_136 : f32 to vector<16x128xf32>
    %598 = arith.addf %597, %596 : vector<16x128xf32>
    %599 = arith.divf %597, %598 : vector<16x128xf32>
    %600 = vector.extract_strided_slice %593 {offsets = [0, 128], sizes = [16, 128], strides = [1, 1]} : vector<16x512xf32> to vector<16x128xf32>
    %601 = arith.negf %600 : vector<16x128xf32>
    %602 = math.exp %601 : vector<16x128xf32>
    %cst_137 = arith.constant 1.000000e+00 : f32
    %603 = vector.broadcast %cst_137 : f32 to vector<16x128xf32>
    %604 = arith.addf %603, %602 : vector<16x128xf32>
    %605 = arith.divf %603, %604 : vector<16x128xf32>
    %606 = vector.extract_strided_slice %593 {offsets = [0, 256], sizes = [16, 128], strides = [1, 1]} : vector<16x512xf32> to vector<16x128xf32>
    %607 = math.tanh %606 : vector<16x128xf32>
    %608 = vector.extract_strided_slice %593 {offsets = [0, 384], sizes = [16, 128], strides = [1, 1]} : vector<16x512xf32> to vector<16x128xf32>
    %609 = arith.negf %608 : vector<16x128xf32>
    %610 = math.exp %609 : vector<16x128xf32>
    %cst_138 = arith.constant 1.000000e+00 : f32
    %611 = vector.broadcast %cst_138 : f32 to vector<16x128xf32>
    %612 = arith.addf %611, %610 : vector<16x128xf32>
    %613 = arith.divf %611, %612 : vector<16x128xf32>
    %614 = arith.mulf %605, %537 : vector<16x128xf32>
    %615 = arith.mulf %599, %607 : vector<16x128xf32>
    %616 = arith.addf %614, %615 : vector<16x128xf32>
    %617 = math.tanh %616 : vector<16x128xf32>
    %618 = arith.mulf %613, %617 : vector<16x128xf32>
    %619 = vector.shape_cast %546 : vector<16x1xi1> to vector<16x1xi1>
    %620 = vector.broadcast %619 : vector<16x1xi1> to vector<16x128xi1>
    %621 = arith.select %620, %618, %534 : vector<16x128xi1>, vector<16x128xf32>
    %622 = vector.shape_cast %546 : vector<16x1xi1> to vector<16x1xi1>
    %623 = vector.broadcast %622 : vector<16x1xi1> to vector<16x128xi1>
    %624 = arith.select %623, %616, %537 : vector<16x128xi1>, vector<16x128xf32>
    %c8_i32_139 = arith.constant 8 : i32
    %625 = arith.muli %arg0, %c8_i32_139 : i32
    %c7_i32_140 = arith.constant 7 : i32
    %626 = arith.addi %625, %c7_i32_140 : i32
    %c1_i32_141 = arith.constant 1 : i32
    %627 = arith.subi %c1_i32_141, %arg0 : i32
    %c8_i32_142 = arith.constant 8 : i32
    %628 = arith.muli %627, %c8_i32_142 : i32
    %c0_i32_143 = arith.constant 0 : i32
    %629 = arith.addi %628, %c0_i32_143 : i32
    %630 = vector.broadcast %626 : i32 to vector<16x1xi32>
    %631 = arith.cmpi slt, %630, %3 : vector<16x1xi32>
    %632 = vector.broadcast %629 : i32 to vector<16x1xi32>
    %633 = arith.cmpi slt, %632, %3 : vector<16x1xi32>
    %c7_144 = arith.constant 7 : index
    %c0_145 = arith.constant 0 : index
    %c0_146 = arith.constant 0 : index
    %634 = vector.load %arg2[%c7_144, %c0_145, %c0_146] : memref<8x16x512xbf16, #tpu.memory_space<vmem>>, vector<1x16x512xbf16>
    %635 = vector.shape_cast %634 : vector<1x16x512xbf16> to vector<16x512xbf16>
    %636 = arith.extf %635 : vector<16x512xbf16> to vector<16x512xf32>
    %637 = vector.broadcast %9 : vector<1x512xf32> to vector<16x512xf32>
    %638 = arith.addf %636, %637 : vector<16x512xf32>
    %639 = arith.truncf %582 : vector<16x128xf32> to vector<16x128xbf16>
    %cst_147 = arith.constant dense<0.000000e+00> : vector<16x512xf32>
    %640 = tpu.matmul %639, %5, %cst_147 {dimension_numbers = #tpu.dot_dimension_numbers<[1], [0], [0], [1], [0, 0, 1, 1], [], []>} : vector<16x128xbf16>, vector<128x512xbf16>, vector<16x512xf32> -> vector<16x512xf32>
    %641 = arith.addf %638, %640 : vector<16x512xf32>
    %642 = vector.extract_strided_slice %641 {offsets = [0, 0], sizes = [16, 128], strides = [1, 1]} : vector<16x512xf32> to vector<16x128xf32>
    %643 = arith.negf %642 : vector<16x128xf32>
    %644 = math.exp %643 : vector<16x128xf32>
    %cst_148 = arith.constant 1.000000e+00 : f32
    %645 = vector.broadcast %cst_148 : f32 to vector<16x128xf32>
    %646 = arith.addf %645, %644 : vector<16x128xf32>
    %647 = arith.divf %645, %646 : vector<16x128xf32>
    %648 = vector.extract_strided_slice %641 {offsets = [0, 128], sizes = [16, 128], strides = [1, 1]} : vector<16x512xf32> to vector<16x128xf32>
    %649 = arith.negf %648 : vector<16x128xf32>
    %650 = math.exp %649 : vector<16x128xf32>
    %cst_149 = arith.constant 1.000000e+00 : f32
    %651 = vector.broadcast %cst_149 : f32 to vector<16x128xf32>
    %652 = arith.addf %651, %650 : vector<16x128xf32>
    %653 = arith.divf %651, %652 : vector<16x128xf32>
    %654 = vector.extract_strided_slice %641 {offsets = [0, 256], sizes = [16, 128], strides = [1, 1]} : vector<16x512xf32> to vector<16x128xf32>
    %655 = math.tanh %654 : vector<16x128xf32>
    %656 = vector.extract_strided_slice %641 {offsets = [0, 384], sizes = [16, 128], strides = [1, 1]} : vector<16x512xf32> to vector<16x128xf32>
    %657 = arith.negf %656 : vector<16x128xf32>
    %658 = math.exp %657 : vector<16x128xf32>
    %cst_150 = arith.constant 1.000000e+00 : f32
    %659 = vector.broadcast %cst_150 : f32 to vector<16x128xf32>
    %660 = arith.addf %659, %658 : vector<16x128xf32>
    %661 = arith.divf %659, %660 : vector<16x128xf32>
    %662 = arith.mulf %653, %585 : vector<16x128xf32>
    %663 = arith.mulf %647, %655 : vector<16x128xf32>
    %664 = arith.addf %662, %663 : vector<16x128xf32>
    %665 = math.tanh %664 : vector<16x128xf32>
    %666 = arith.mulf %661, %665 : vector<16x128xf32>
    %667 = vector.shape_cast %631 : vector<16x1xi1> to vector<16x1xi1>
    %668 = vector.broadcast %667 : vector<16x1xi1> to vector<16x128xi1>
    %669 = arith.select %668, %666, %582 : vector<16x128xi1>, vector<16x128xf32>
    %670 = vector.shape_cast %631 : vector<16x1xi1> to vector<16x1xi1>
    %671 = vector.broadcast %670 : vector<16x1xi1> to vector<16x128xi1>
    %672 = arith.select %671, %664, %585 : vector<16x128xi1>, vector<16x128xf32>
    %c0_151 = arith.constant 0 : index
    %c0_152 = arith.constant 0 : index
    %c0_153 = arith.constant 0 : index
    %673 = vector.load %arg3[%c0_151, %c0_152, %c0_153] : memref<8x16x512xbf16, #tpu.memory_space<vmem>>, vector<1x16x512xbf16>
    %674 = vector.shape_cast %673 : vector<1x16x512xbf16> to vector<16x512xbf16>
    %675 = arith.extf %674 : vector<16x512xbf16> to vector<16x512xf32>
    %676 = vector.broadcast %11 : vector<1x512xf32> to vector<16x512xf32>
    %677 = arith.addf %675, %676 : vector<16x512xf32>
    %678 = arith.truncf %621 : vector<16x128xf32> to vector<16x128xbf16>
    %cst_154 = arith.constant dense<0.000000e+00> : vector<16x512xf32>
    %679 = tpu.matmul %678, %7, %cst_154 {dimension_numbers = #tpu.dot_dimension_numbers<[1], [0], [0], [1], [0, 0, 1, 1], [], []>} : vector<16x128xbf16>, vector<128x512xbf16>, vector<16x512xf32> -> vector<16x512xf32>
    %680 = arith.addf %677, %679 : vector<16x512xf32>
    %681 = vector.extract_strided_slice %680 {offsets = [0, 0], sizes = [16, 128], strides = [1, 1]} : vector<16x512xf32> to vector<16x128xf32>
    %682 = arith.negf %681 : vector<16x128xf32>
    %683 = math.exp %682 : vector<16x128xf32>
    %cst_155 = arith.constant 1.000000e+00 : f32
    %684 = vector.broadcast %cst_155 : f32 to vector<16x128xf32>
    %685 = arith.addf %684, %683 : vector<16x128xf32>
    %686 = arith.divf %684, %685 : vector<16x128xf32>
    %687 = vector.extract_strided_slice %680 {offsets = [0, 128], sizes = [16, 128], strides = [1, 1]} : vector<16x512xf32> to vector<16x128xf32>
    %688 = arith.negf %687 : vector<16x128xf32>
    %689 = math.exp %688 : vector<16x128xf32>
    %cst_156 = arith.constant 1.000000e+00 : f32
    %690 = vector.broadcast %cst_156 : f32 to vector<16x128xf32>
    %691 = arith.addf %690, %689 : vector<16x128xf32>
    %692 = arith.divf %690, %691 : vector<16x128xf32>
    %693 = vector.extract_strided_slice %680 {offsets = [0, 256], sizes = [16, 128], strides = [1, 1]} : vector<16x512xf32> to vector<16x128xf32>
    %694 = math.tanh %693 : vector<16x128xf32>
    %695 = vector.extract_strided_slice %680 {offsets = [0, 384], sizes = [16, 128], strides = [1, 1]} : vector<16x512xf32> to vector<16x128xf32>
    %696 = arith.negf %695 : vector<16x128xf32>
    %697 = math.exp %696 : vector<16x128xf32>
    %cst_157 = arith.constant 1.000000e+00 : f32
    %698 = vector.broadcast %cst_157 : f32 to vector<16x128xf32>
    %699 = arith.addf %698, %697 : vector<16x128xf32>
    %700 = arith.divf %698, %699 : vector<16x128xf32>
    %701 = arith.mulf %692, %624 : vector<16x128xf32>
    %702 = arith.mulf %686, %694 : vector<16x128xf32>
    %703 = arith.addf %701, %702 : vector<16x128xf32>
    %704 = math.tanh %703 : vector<16x128xf32>
    %705 = arith.mulf %700, %704 : vector<16x128xf32>
    %706 = vector.shape_cast %633 : vector<16x1xi1> to vector<16x1xi1>
    %707 = vector.broadcast %706 : vector<16x1xi1> to vector<16x128xi1>
    %708 = arith.select %707, %705, %621 : vector<16x128xi1>, vector<16x128xf32>
    %709 = vector.shape_cast %633 : vector<16x1xi1> to vector<16x1xi1>
    %710 = vector.broadcast %709 : vector<16x1xi1> to vector<16x128xi1>
    %711 = arith.select %710, %703, %624 : vector<16x128xi1>, vector<16x128xf32>
    %c0_158 = arith.constant 0 : index
    %c0_159 = arith.constant 0 : index
    %712 = vector.load %arg7[%c0_158, %c0_159] : memref<16x128xf32, #tpu.memory_space<vmem>>, vector<16x128xf32>
    tpu.vector_store %arg7[%c0_158, %c0_159], %669 {strides = array<i32>} : memref<16x128xf32, #tpu.memory_space<vmem>>, vector<16x128xf32>,
    %c0_160 = arith.constant 0 : index
    %c0_161 = arith.constant 0 : index
    %713 = vector.load %arg8[%c0_160, %c0_161] : memref<16x128xf32, #tpu.memory_space<vmem>>, vector<16x128xf32>
    tpu.vector_store %arg8[%c0_160, %c0_161], %672 {strides = array<i32>} : memref<16x128xf32, #tpu.memory_space<vmem>>, vector<16x128xf32>,
    %c0_162 = arith.constant 0 : index
    %c0_163 = arith.constant 0 : index
    %714 = vector.load %arg9[%c0_162, %c0_163] : memref<16x128xf32, #tpu.memory_space<vmem>>, vector<16x128xf32>
    tpu.vector_store %arg9[%c0_162, %c0_163], %708 {strides = array<i32>} : memref<16x128xf32, #tpu.memory_space<vmem>>, vector<16x128xf32>,
    %c0_164 = arith.constant 0 : index
    %c0_165 = arith.constant 0 : index
    %715 = vector.load %arg10[%c0_164, %c0_165] : memref<16x128xf32, #tpu.memory_space<vmem>>, vector<16x128xf32>
    tpu.vector_store %arg10[%c0_164, %c0_165], %711 {strides = array<i32>} : memref<16x128xf32, #tpu.memory_space<vmem>>, vector<16x128xf32>,
    %c0_166 = arith.constant 0 : index
    %c0_167 = arith.constant 0 : index
    %716 = vector.load %arg6[%c0_166, %c0_167] : memref<16x256xf32, #tpu.memory_space<vmem>>, vector<16x128xf32>
    tpu.vector_store %arg6[%c0_166, %c0_167], %669 {strides = array<i32>} : memref<16x256xf32, #tpu.memory_space<vmem>>, vector<16x128xf32>,
    %c0_168 = arith.constant 0 : index
    %c128 = arith.constant 128 : index
    %717 = vector.load %arg6[%c0_168, %c128] : memref<16x256xf32, #tpu.memory_space<vmem>>, vector<16x128xf32>
    tpu.vector_store %arg6[%c0_168, %c128], %708 {strides = array<i32>} : memref<16x256xf32, #tpu.memory_space<vmem>>, vector<16x128xf32>,
    return
  }
  func.func @transform_0(%arg0: i32) -> (i32, i32) {
    %c0_i32 = arith.constant 0 : i32
    %c0_i32_0 = arith.constant 0 : i32
    %c0_i32_1 = arith.constant 0 : i32
    return %c0_i32, %c0_i32_0 : i32, i32
  }
  func.func @transform_1(%arg0: i32) -> (i32, i32, i32) {
    %c0_i32 = arith.constant 0 : i32
    %c0_i32_0 = arith.constant 0 : i32
    %c0_i32_1 = arith.constant 0 : i32
    return %arg0, %c0_i32, %c0_i32_0 : i32, i32, i32
  }
  func.func @transform_2(%arg0: i32) -> (i32, i32, i32) {
    %c1_i32 = arith.constant 1 : i32
    %0 = arith.subi %c1_i32, %arg0 : i32
    %c0_i32 = arith.constant 0 : i32
    %c1_i32_0 = arith.constant 1 : i32
    %c0_i32_1 = arith.constant 0 : i32
    return %0, %c0_i32, %c1_i32_0 : i32, i32, i32
  }
  func.func @transform_3(%arg0: i32) -> (i32, i32, i32) {
    %c0_i32 = arith.constant 0 : i32
    %c0_i32_0 = arith.constant 0 : i32
    %c0_i32_1 = arith.constant 0 : i32
    %c0_i32_2 = arith.constant 0 : i32
    return %c0_i32, %c0_i32_0, %c0_i32_1 : i32, i32, i32
  }
  func.func @transform_4(%arg0: i32) -> (i32, i32, i32) {
    %c0_i32 = arith.constant 0 : i32
    %c0_i32_0 = arith.constant 0 : i32
    %c0_i32_1 = arith.constant 0 : i32
    %c0_i32_2 = arith.constant 0 : i32
    return %c0_i32, %c0_i32_0, %c0_i32_1 : i32, i32, i32
  }
  func.func @transform_5(%arg0: i32) -> (i32, i32) {
    %c0_i32 = arith.constant 0 : i32
    %c0_i32_0 = arith.constant 0 : i32
    %c0_i32_1 = arith.constant 0 : i32
    return %c0_i32, %c0_i32_0 : i32, i32
  }
}

</mosaic_0001>

<llo_original>
// kernel: tpu_custom_call.1
$region0: #{tpu_custom_call.1}
  #allocation0 [shape = 'u32[]', space=smem, size = 0x4, offset = 0x4, fixed_abs, tag = 'smem constant byte address 0x4 - core index']
  #allocation1 [shape = 'u32[144,128]{1,0:T(1,128)}', space=vmem, size = 0x12000, scoped, tag = 'internal scratch']
  #allocation2 [shape = 'f32[16,128]{1,0:T(8,128)}', space=vmem, size = 0x2000, scoped, tag = 'scratch operand']
  #allocation3 [shape = 'f32[16,128]{1,0:T(8,128)}', space=vmem, size = 0x2000, scoped, tag = 'scratch operand']
  #allocation4 [shape = 'f32[16,128]{1,0:T(8,128)}', space=vmem, size = 0x2000, scoped, tag = 'scratch operand']
  #allocation5 [shape = 'f32[16,128]{1,0:T(8,128)}', space=vmem, size = 0x2000, scoped, tag = 'scratch operand']
  %s0 = inlined_call_operand.vmem [shape: s32[16,1], index: 0, kind: input, shape index: {}]
  %s1 = inlined_call_operand.hbm [shape: bf16[16,16,1024], index: 1, kind: input, shape index: {}]
  %s2 = inlined_call_operand.hbm [shape: bf16[16,16,1024], index: 2, kind: input, shape index: {}]
  %s3 = inlined_call_operand.hbm [shape: bf16[2,128,512], index: 3, kind: input, shape index: {}]
  %s4 = inlined_call_operand.vmem [shape: f32[2,1,512], index: 4, kind: input, shape index: {}]
  %s5 = inlined_call_operand.hbm [shape: f32[16,256], index: 5, kind: output, shape index: {}]
  %s6 = sld [smem:[#allocation0]]
  $region69: #{tpu_custom_call.1} parent=0
    _
  %s8 = ssub.s32 1, %s6
  %s9 = scalar_select 0, %s8, %s6
  $region1: #{tpu_custom_call.1} parent=0
    #allocation6 [shape = 'u8[262144]{0}', space=vmem, size = 0x40000, scoped, tag = 'input window, operand 1']
    #allocation7 [shape = 's32[2]{0}', space=sflag, size = 0x8, scoped, tag = 'scoped memory for tpu_custom_call.1']
    #allocation8 [shape = 's32[2]{0}', space=sflag, size = 0x8, scoped, tag = 'scoped memory for tpu_custom_call.1']
    #allocation9 [shape = 'u8[262144]{0}', space=vmem, size = 0x40000, scoped, tag = 'input window, operand 2']
    #allocation10 [shape = 's32[2]{0}', space=sflag, size = 0x8, scoped, tag = 'scoped memory for tpu_custom_call.1']
    #allocation11 [shape = 'u8[262144]{0}', space=vmem, size = 0x40000, scoped, tag = 'input window, operand 3, single buffered']
    #allocation12 [shape = 'u8[16384]{0}', space=vmem, size = 0x4000, scoped, tag = 'output window, operand 0, single buffered']
    %10 = vsyncpa [#allocation7], 0
    %s11 = scalar_lea.sflag [#allocation7], 1
    %12 = vsyncpa %s11, 0
    %13 = vsyncpa [#allocation10], 0
    %s14 = scalar_lea.sflag [#allocation10], 1
    %15 = vsyncpa %s14, 0
    %16 = vsyncpa [#allocation8], 0
    loop: start=0, step=1, limit=4
    $region2: #{tpu_custom_call.1} parent=1 // loop_pre_header
      _
    $region3: #{tpu_custom_call.1} parent=1 // loop_header
      %s18 = sphi 0, %s22
      %p19 = scmp.ge.s32.totalorder %s18, 4
      %s26 = sphi 0, %s26
      %s28 = sphi 0, %s26
      %s29 = sphi 0, %s28
      %s43 = sphi 0, %s29
      %s49 = sphi 0, %s51
      %s52 = sphi 0, %s49
      %s53 = sphi 0, %s52
      %s69 = sphi 0, %s53
      %s77 = sphi 0, %s79
      %s80 = sphi 0, %s77
      %s81 = sphi 0, %s80
      %s97 = sphi 0, %s81
      %s101 = sphi 0, %s101
      %s103 = sphi 0, %s101
      %s104 = sphi 0, %s103
      %s118 = sphi 0, %s104
      %s122 = sphi 0, %s122
      %s124 = sphi 0, %s122
      %s125 = sphi 0, %s124
      %s139 = sphi 0, %s125
      %s143 = sphi 0, %s143
      %s145 = sphi 0, %s143
      %s146 = sphi 0, %s145
      %s160 = sphi 0, %s146
    $region4: #{tpu_custom_call.1} parent=1 // loop_header_branch
      %21 = sbr.rel (%p19) target = $region8
    $region5: #{tpu_custom_call.1} parent=1 // loop_body
      %s23 = ssub.s32 %s18, 1
      %s24 = ssub.s32 %s18, 2
      %s25 = sadd.s32 %s18, 1
      %s27 = sadd.s32 %s26, 1
      %p30 = scmp.eq.s32.totalorder %s18, 1
      %p31 = scmp.ne.s32.totalorder %s26, %s28
      %p32 = scmp.eq.s32.totalorder %s18, 0
      %p33 = por %p31, %p32
      %p34 = scmp.ne.s32.totalorder %s26, %s28
      %p35 = scmp.eq.s32.totalorder %s23, 1
      %p36 = por %p34, %p35
      %p37 = scmp.ne.s32.totalorder %s28, %s29
      %p38 = scmp.eq.s32.totalorder %s23, 0
      %p39 = por %p37, %p38
      %p40 = scmp.ne.s32.totalorder %s28, %s29
      %p41 = scmp.eq.s32.totalorder %s24, 1
      %p42 = por %p40, %p41
      %p44 = scmp.ne.s32.totalorder %s29, %s43
      %p45 = scmp.eq.s32.totalorder %s24, 0
      %p46 = por %p44, %p45
      %s47 = ssub.s32 %s18, %s25
      %p48 = scmp.eq.s32.totalorder %s47, 0
      %s50 = sadd.s32 %s49, 1
      %s51 = scalar_select %p48, %s49, %s50
      %p54 = pneg %p48
      %p55 = scmp.eq.s32.totalorder %s18, 1
      %p56 = por %p54, %p55
      %p57 = scmp.ne.s32.totalorder %s49, %s52
      %p58 = scmp.eq.s32.totalorder %s18, 0
      %p59 = por %p57, %p58
      %p60 = scmp.ne.s32.totalorder %s49, %s52
      %p61 = scmp.eq.s32.totalorder %s23, 1
      %p62 = por %p60, %p61
      %p63 = scmp.ne.s32.totalorder %s52, %s53
      %p64 = scmp.eq.s32.totalorder %s23, 0
      %p65 = por %p63, %p64
      %p66 = scmp.ne.s32.totalorder %s52, %s53
      %p67 = scmp.eq.s32.totalorder %s24, 1
      %p68 = por %p66, %p67
      %p70 = scmp.ne.s32.totalorder %s53, %s69
      %p71 = scmp.eq.s32.totalorder %s24, 0
      %p72 = por %p70, %p71
      %s73 = ssub.s32 1, %s18
      %s74 = ssub.s32 1, %s25
      %s75 = ssub.s32 %s73, %s74
      %p76 = scmp.eq.s32.totalorder %s75, 0
      %s78 = sadd.s32 %s77, 1
      %s79 = scalar_select %p76, %s77, %s78
      %p82 = pneg %p76
      %p83 = scmp.eq.s32.totalorder %s18, 1
      %p84 = por %p82, %p83
      %p85 = scmp.ne.s32.totalorder %s77, %s80
      %p86 = scmp.eq.s32.totalorder %s18, 0
      %p87 = por %p85, %p86
      %p88 = scmp.ne.s32.totalorder %s77, %s80
      %p89 = scmp.eq.s32.totalorder %s23, 1
      %p90 = por %p88, %p89
      %p91 = scmp.ne.s32.totalorder %s80, %s81
      %p92 = scmp.eq.s32.totalorder %s23, 0
      %p93 = por %p91, %p92
      %p94 = scmp.ne.s32.totalorder %s80, %s81
      %p95 = scmp.eq.s32.totalorder %s24, 1
      %p96 = por %p94, %p95
      %p98 = scmp.ne.s32.totalorder %s81, %s97
      %p99 = scmp.eq.s32.totalorder %s24, 0
      %p100 = por %p98, %p99
      %s102 = sadd.s32 %s101, 1
      %p105 = scmp.eq.s32.totalorder %s18, 1
      %p106 = scmp.ne.s32.totalorder %s101, %s103
      %p107 = scmp.eq.s32.totalorder %s18, 0
      %p108 = por %p106, %p107
      %p109 = scmp.ne.s32.totalorder %s101, %s103
      %p110 = scmp.eq.s32.totalorder %s23, 1
      %p111 = por %p109, %p110
      %p112 = scmp.ne.s32.totalorder %s103, %s104
      %p113 = scmp.eq.s32.totalorder %s23, 0
      %p114 = por %p112, %p113
      %p115 = scmp.ne.s32.totalorder %s103, %s104
      %p116 = scmp.eq.s32.totalorder %s24, 1
      %p117 = por %p115, %p116
      %p119 = scmp.ne.s32.totalorder %s104, %s118
      %p120 = scmp.eq.s32.totalorder %s24, 0
      %p121 = por %p119, %p120
      %s123 = sadd.s32 %s122, 1
      %p126 = scmp.eq.s32.totalorder %s18, 1
      %p127 = scmp.ne.s32.totalorder %s122, %s124
      %p128 = scmp.eq.s32.totalorder %s18, 0
      %p129 = por %p127, %p128
      %p130 = scmp.ne.s32.totalorder %s122, %s124
      %p131 = scmp.eq.s32.totalorder %s23, 1
      %p132 = por %p130, %p131
      %p133 = scmp.ne.s32.totalorder %s124, %s125
      %p134 = scmp.eq.s32.totalorder %s23, 0
      %p135 = por %p133, %p134
      %p136 = scmp.ne.s32.totalorder %s124, %s125
      %p137 = scmp.eq.s32.totalorder %s24, 1
      %p138 = por %p136, %p137
      %p140 = scmp.ne.s32.totalorder %s125, %s139
      %p141 = scmp.eq.s32.totalorder %s24, 0
      %p142 = por %p140, %p141
      %s144 = sadd.s32 %s143, 1
      %p147 = scmp.eq.s32.totalorder %s18, 1
      %p148 = scmp.ne.s32.totalorder %s143, %s145
      %p149 = scmp.eq.s32.totalorder %s18, 0
      %p150 = por %p148, %p149
      %p151 = scmp.ne.s32.totalorder %s143, %s145
      %p152 = scmp.eq.s32.totalorder %s23, 1
      %p153 = por %p151, %p152
      %p154 = scmp.ne.s32.totalorder %s145, %s146
      %p155 = scmp.eq.s32.totalorder %s23, 0
      %p156 = por %p154, %p155
      %p157 = scmp.ne.s32.totalorder %s145, %s146
      %p158 = scmp.eq.s32.totalorder %s24, 1
      %p159 = por %p157, %p158
      %p161 = scmp.ne.s32.totalorder %s146, %s160
      %p162 = scmp.eq.s32.totalorder %s24, 0
      %p163 = por %p161, %p162
      %p164 = scmp.le.s32.totalorder 1, %s18
      %p165 = scmp.lt.s32.totalorder %s18, 3
      %p166 = pnand %p164, %p165
      %p167 = pneg %p166
      // Predicated region
      $region9: #{tpu_custom_call.1} parent=5 // pred_check
        _
      $region10: #{tpu_custom_call.1} parent=5 // pred_check_branch
        %169 = sbr.rel (%p166) target = $region12
      $region11: #{tpu_custom_call.1} parent=5 // pred_region
        %s170 = ssub.s32 %s18, 1
        // Predicated region
        $region13: #{tpu_custom_call.1} parent=11 // pred_check
          %p171 = pneg %p39
        $region14: #{tpu_custom_call.1} parent=11 // pred_check_branch
          %173 = sbr.rel (%p171) target = $region16
        $region15: #{tpu_custom_call.1} parent=11 // pred_region
          _
        $region16: #{tpu_custom_call.1} parent=11 // pred_fallthru
          _
        // Predicated region
        $region17: #{tpu_custom_call.1} parent=11 // pred_check
          %p174 = pneg %p114
        $region18: #{tpu_custom_call.1} parent=11 // pred_check_branch
          %176 = sbr.rel (%p174) target = $region20
        $region19: #{tpu_custom_call.1} parent=11 // pred_region
          %s178 = ssub.s32 8192, 8192
          %179 = vsyncadd [#allocation10], %s178
          %s180 = sshll.u32 [#allocation11], 4
          %s181 = int_to_ptr.vmem [resolvable:$true] %s180
          %186 = dma.hbm_to_vmem [thread:$0]  %s3, 8192, %s181, [#allocation10], 256, 256, 16
        $region20: #{tpu_custom_call.1} parent=11 // pred_fallthru
          _
        // Predicated region
        $region21: #{tpu_custom_call.1} parent=11 // pred_check
          %p187 = pneg %p135
        $region22: #{tpu_custom_call.1} parent=11 // pred_check_branch
          %189 = sbr.rel (%p187) target = $region24
        $region23: #{tpu_custom_call.1} parent=11 // pred_region
          _
        $region24: #{tpu_custom_call.1} parent=11 // pred_fallthru
          _
      $region12: #{tpu_custom_call.1} parent=5 // pred_fallthru
        _
      %p190 = scmp.lt.s32.totalorder %s18, 2
      // Predicated region
      $region25: #{tpu_custom_call.1} parent=5 // pred_check
        %p191 = pneg %p190
      $region26: #{tpu_custom_call.1} parent=5 // pred_check_branch
        %193 = sbr.rel (%p191) target = $region28
      $region27: #{tpu_custom_call.1} parent=5 // pred_region
        // Predicated region
        $region29: #{tpu_custom_call.1} parent=27 // pred_check
          %p194 = pneg %p59
        $region30: #{tpu_custom_call.1} parent=27 // pred_check_branch
          %196 = sbr.rel (%p194) target = $region32
        $region31: #{tpu_custom_call.1} parent=27 // pred_region
          %s197 = sand.u32 %s49, 1
          %s198 = scalar_lea.sflag [#allocation7], %s197
          %s199 = sand.u32 %s49, 1
          %s200 = smul.addr %s199, 256
          %s201 = scalar_lea.vmem [#allocation6], %s200
          %s202 = smul.u32 8, %s18
          %s204 = ssub.s32 4096, 4096
          %205 = vsyncadd %s198, %s204
          %s206 = smul.addr %s202, 16
          %s207 = smul.addr %s206, 64
          %s208 = scalar_lea.hbm %s1, %s207
          %s209 = sshll.u32 %s201, 4
          %s210 = int_to_ptr.vmem [resolvable:$true] %s209
          %215 = dma.hbm_to_vmem [thread:$0]  %s208, 4096, %s210, %s198, 512, 256, 16
        $region32: #{tpu_custom_call.1} parent=27 // pred_fallthru
          _
        // Predicated region
        $region33: #{tpu_custom_call.1} parent=27 // pred_check
          %p216 = pneg %p87
        $region34: #{tpu_custom_call.1} parent=27 // pred_check_branch
          %218 = sbr.rel (%p216) target = $region36
        $region35: #{tpu_custom_call.1} parent=27 // pred_region
          %s219 = sand.u32 %s18, 1
          %s220 = scalar_lea.sflag [#allocation10], %s219
          %s221 = sand.u32 %s77, 1
          %s222 = smul.addr %s221, 256
          %s223 = scalar_lea.vmem [#allocation9], %s222
          %s224 = ssub.s32 1, %s18
          %s225 = smul.u32 8, %s224
          %s227 = ssub.s32 4096, 4096
          %228 = vsyncadd %s220, %s227
          %s229 = smul.addr %s225, 16
          %s230 = sadd.s32 4, %s229
          %s231 = smul.addr %s230, 64
          %s232 = scalar_lea.hbm %s2, %s231
          %s233 = sshll.u32 %s223, 4
          %s234 = int_to_ptr.vmem [resolvable:$true] %s233
          %239 = dma.hbm_to_vmem [thread:$0]  %s232, 4096, %s234, %s220, 512, 256, 16
        $region36: #{tpu_custom_call.1} parent=27 // pred_fallthru
          _
      $region28: #{tpu_custom_call.1} parent=5 // pred_fallthru
        _
      %p240 = scmp.le.s32.totalorder 1, %s18
      %p241 = scmp.lt.s32.totalorder %s18, 3
      %p242 = pnand %p240, %p241
      %p243 = pneg %p242
      // Predicated region
      $region37: #{tpu_custom_call.1} parent=5 // pred_check
        _
      $region38: #{tpu_custom_call.1} parent=5 // pred_check_branch
        %245 = sbr.rel (%p242) target = $region40
      $region39: #{tpu_custom_call.1} parent=5 // pred_region
        %s246 = ssub.s32 %s18, 1
        %s247 = sand.u32 %s52, 1
        %s248 = scalar_lea.sflag [#allocation7], %s247
        %s249 = sand.u32 %s52, 1
        %s250 = smul.addr %s249, 256
        %s251 = scalar_lea.vmem [#allocation6], %s250
        // Predicated region
        $region41: #{tpu_custom_call.1} parent=39 // pred_check
          %p252 = pneg %p65
        $region42: #{tpu_custom_call.1} parent=39 // pred_check_branch
          %254 = sbr.rel (%p252) target = $region44
        $region43: #{tpu_custom_call.1} parent=39 // pred_region
          %255 = dma.done %s248, 4096
        $region44: #{tpu_custom_call.1} parent=39 // pred_fallthru
          _
        %s256 = sand.u32 %s23, 1
        %s257 = scalar_lea.sflag [#allocation10], %s256
        %s258 = sand.u32 %s80, 1
        %s259 = smul.addr %s258, 256
        %s260 = scalar_lea.vmem [#allocation9], %s259
        // Predicated region
        $region45: #{tpu_custom_call.1} parent=39 // pred_check
          %p261 = pneg %p93
        $region46: #{tpu_custom_call.1} parent=39 // pred_check_branch
          %263 = sbr.rel (%p261) target = $region48
        $region47: #{tpu_custom_call.1} parent=39 // pred_region
          %264 = dma.done %s257, 4096
        $region48: #{tpu_custom_call.1} parent=39 // pred_fallthru
          _
        // Predicated region
        $region49: #{tpu_custom_call.1} parent=39 // pred_check
          %p265 = pneg %p114
        $region50: #{tpu_custom_call.1} parent=39 // pred_check_branch
          %267 = sbr.rel (%p265) target = $region52
        $region51: #{tpu_custom_call.1} parent=39 // pred_region
          %268 = dma.done [#allocation10], 8192
        $region52: #{tpu_custom_call.1} parent=39 // pred_fallthru
          _
        %p269 = pneg %p39
        %p270 = pneg %p36
        %s271 = sand.u32 %s52, 1
        %s272 = scalar_lea.sflag [#allocation7], %s271
        %s273 = sand.u32 %s52, 1
        %s274 = smul.addr %s273, 256
        %s275 = scalar_lea.vmem [#allocation6], %s274
        %p276 = pneg %p65
        %p277 = pneg %p62
        %s278 = sand.u32 %s23, 1
        %s279 = scalar_lea.sflag [#allocation10], %s278
        %s280 = sand.u32 %s80, 1
        %s281 = smul.addr %s280, 256
        %s282 = scalar_lea.vmem [#allocation9], %s281
        %p283 = pneg %p93
        %p284 = pneg %p90
        %p285 = pneg %p114
        %p286 = pneg %p111
        %p287 = pneg %p135
        %p288 = pneg %p132
        %p289 = pneg %p156
        %p290 = pneg %p153
        %s291 = smul.u32 8, %s23
        %s292 = ssub.s32 1, %s23
        %s293 = smul.u32 8, %s292
        %p295 = scmp.eq.s32.totalorder %s23, 0
        // Predicated region
        $region53: #{tpu_custom_call.1} parent=39 // pred_check
          %p296 = pneg %p295
        $region54: #{tpu_custom_call.1} parent=39 // pred_check_branch
          %298 = sbr.rel (%p296) target = $region56
        $region55: #{tpu_custom_call.1} parent=39 // pred_region
          %299 = vst [vmem:[#allocation2] sm:$0xff] 0.0
          %300 = vst [vmem:[#allocation2 + $0x8] sm:$0xff] 0.0
          %301 = vst [vmem:[#allocation3] sm:$0xff] 0.0
          %302 = vst [vmem:[#allocation3 + $0x8] sm:$0xff] 0.0
          %303 = vst [vmem:[#allocation4] sm:$0xff] 0.0
          %304 = vst [vmem:[#allocation4 + $0x8] sm:$0xff] 0.0
          %305 = vst [vmem:[#allocation5] sm:$0xff] 0.0
          %306 = vst [vmem:[#allocation5 + $0x8] sm:$0xff] 0.0
        $region56: #{tpu_custom_call.1} parent=39 // pred_fallthru
          _
        %v307 = vld [vmem:[%s0] sm:$0xff]
        %v308 = vld [vmem:[%s0 + $0x8] sm:$0xff]
        %v309 = vld [vmem:[#allocation11] sm:$0xff]
        %v310 = vld [vmem:[#allocation11 + $0x8] sm:$0xff]
        %v311 = vld [vmem:[#allocation11 + $0x10] sm:$0xff]
        %v312 = vld [vmem:[#allocation11 + $0x18] sm:$0xff]
        %v313 = vld [vmem:[#allocation11 + $0x20] sm:$0xff]
        %v314 = vld [vmem:[#allocation11 + $0x28] sm:$0xff]
        %v315 = vld [vmem:[#allocation11 + $0x30] sm:$0xff]
        %v316 = vld [vmem:[#allocation11 + $0x38] sm:$0xff]
        %v317 = vld [vmem:[#allocation11 + $0x40] sm:$0xff]
        %v318 = vld [vmem:[#allocation11 + $0x48] sm:$0xff]
        %v319 = vld [vmem:[#allocation11 + $0x50] sm:$0xff]
        %v320 = vld [vmem:[#allocation11 + $0x58] sm:$0xff]
        %v321 = vld [vmem:[#allocation11 + $0x60] sm:$0xff]
        %v322 = vld [vmem:[#allocation11 + $0x68] sm:$0xff]
        %v323 = vld [vmem:[#allocation11 + $0x70] sm:$0xff]
        %v324 = vld [vmem:[#allocation11 + $0x78] sm:$0xff]
        %v325 = vld [vmem:[#allocation11 + $0x80] sm:$0xff]
        %v326 = vld [vmem:[#allocation11 + $0x88] sm:$0xff]
        %v327 = vld [vmem:[#allocation11 + $0x90] sm:$0xff]
        %v328 = vld [vmem:[#allocation11 + $0x98] sm:$0xff]
        %v329 = vld [vmem:[#allocation11 + $0xa0] sm:$0xff]
        %v330 = vld [vmem:[#allocation11 + $0xa8] sm:$0xff]
        %v331 = vld [vmem:[#allocation11 + $0xb0] sm:$0xff]
        %v332 = vld [vmem:[#allocation11 + $0xb8] sm:$0xff]
        %v333 = vld [vmem:[#allocation11 + $0xc0] sm:$0xff]
        %v334 = vld [vmem:[#allocation11 + $0xc8] sm:$0xff]
        %v335 = vld [vmem:[#allocation11 + $0xd0] sm:$0xff]
        %v336 = vld [vmem:[#allocation11 + $0xd8] sm:$0xff]
        %v337 = vld [vmem:[#allocation11 + $0xe0] sm:$0xff]
        %v338 = vld [vmem:[#allocation11 + $0xe8] sm:$0xff]
        %v339 = vld [vmem:[#allocation11 + $0xf0] sm:$0xff]
        %v340 = vld [vmem:[#allocation11 + $0xf8] sm:$0xff]
        %s341 = scalar_lea.vmem [#allocation11], 256
        %v342 = vld [vmem:[%s341] sm:$0xff]
        %v343 = vld [vmem:[%s341 + $0x8] sm:$0xff]
        %v344 = vld [vmem:[%s341 + $0x10] sm:$0xff]
        %v345 = vld [vmem:[%s341 + $0x18] sm:$0xff]
        %v346 = vld [vmem:[%s341 + $0x20] sm:$0xff]
        %v347 = vld [vmem:[%s341 + $0x28] sm:$0xff]
        %v348 = vld [vmem:[%s341 + $0x30] sm:$0xff]
        %v349 = vld [vmem:[%s341 + $0x38] sm:$0xff]
        %v350 = vld [vmem:[%s341 + $0x40] sm:$0xff]
        %v351 = vld [vmem:[%s341 + $0x48] sm:$0xff]
        %v352 = vld [vmem:[%s341 + $0x50] sm:$0xff]
        %v353 = vld [vmem:[%s341 + $0x58] sm:$0xff]
        %v354 = vld [vmem:[%s341 + $0x60] sm:$0xff]
        %v355 = vld [vmem:[%s341 + $0x68] sm:$0xff]
        %v356 = vld [vmem:[%s341 + $0x70] sm:$0xff]
        %v357 = vld [vmem:[%s341 + $0x78] sm:$0xff]
        %v358 = vld [vmem:[%s341 + $0x80] sm:$0xff]
        %v359 = vld [vmem:[%s341 + $0x88] sm:$0xff]
        %v360 = vld [vmem:[%s341 + $0x90] sm:$0xff]
        %v361 = vld [vmem:[%s341 + $0x98] sm:$0xff]
        %v362 = vld [vmem:[%s341 + $0xa0] sm:$0xff]
        %v363 = vld [vmem:[%s341 + $0xa8] sm:$0xff]
        %v364 = vld [vmem:[%s341 + $0xb0] sm:$0xff]
        %v365 = vld [vmem:[%s341 + $0xb8] sm:$0xff]
        %v366 = vld [vmem:[%s341 + $0xc0] sm:$0xff]
        %v367 = vld [vmem:[%s341 + $0xc8] sm:$0xff]
        %v368 = vld [vmem:[%s341 + $0xd0] sm:$0xff]
        %v369 = vld [vmem:[%s341 + $0xd8] sm:$0xff]
        %v370 = vld [vmem:[%s341 + $0xe0] sm:$0xff]
        %v371 = vld [vmem:[%s341 + $0xe8] sm:$0xff]
        %v372 = vld [vmem:[%s341 + $0xf0] sm:$0xff]
        %v373 = vld [vmem:[%s341 + $0xf8] sm:$0xff]
        %v374 = vld [vmem:[%s4] sm:$0xf]
        %s375 = scalar_lea.vmem %s4, 4
        %v376 = vld [vmem:[%s375] sm:$0xf]
        %v377 = vld [vmem:[#allocation2] sm:$0xff]
        %v378 = vld [vmem:[#allocation2 + $0x8] sm:$0xff]
        %v379 = vld [vmem:[#allocation3] sm:$0xff]
        %v380 = vld [vmem:[#allocation3 + $0x8] sm:$0xff]
        %v381 = vld [vmem:[#allocation4] sm:$0xff]
        %v382 = vld [vmem:[#allocation4 + $0x8] sm:$0xff]
        %v383 = vld [vmem:[#allocation5] sm:$0xff]
        %v384 = vld [vmem:[#allocation5 + $0x8] sm:$0xff]
        %s385 = smul.u32 %s23, 8
        %s386 = ssub.s32 1, %s23
        %s387 = smul.u32 %s386, 8
        %s388 = sadd.s32 %s387, 7
        %v389 = vstv %s385
        %vm390 = vcmp.lt.s32.totalorder %v389, %v307
        %vm391 = vcmp.lt.s32.totalorder %v389, %v308
        %v392 = vstv %s388
        %vm393 = vcmp.lt.s32.totalorder %v392, %v307
        %vm394 = vcmp.lt.s32.totalorder %v392, %v308
        %v395 = vld [vmem:[%s251] sm:$0xff]
        %v396 = vld [vmem:[%s251 + $0x8] sm:$0xff]
        %v397 = vld [vmem:[%s251 + $0x10] sm:$0xff]
        %v398 = vld [vmem:[%s251 + $0x18] sm:$0xff]
        %v399 = vunpack.c.l.bf16 %v395
        %v400 = vunpack.c.h.bf16 %v395
        %v401 = vunpack.c.l.bf16 %v396
        %v402 = vunpack.c.h.bf16 %v396
        %v403 = vunpack.c.l.bf16 %v397
        %v404 = vunpack.c.h.bf16 %v397
        %v405 = vunpack.c.l.bf16 %v398
        %v406 = vunpack.c.h.bf16 %v398
        %v408 = vlaneseq
        %v409 = vshrl.u32 %v408, 7
        %v410 = vsub.s32 0, %v409
        %v411 = vrot.slane %v374, %v410
        %v412 = vlaneseq
        %v413 = vshrl.u32 %v412, 7
        %v414 = vsub.s32 1, %v413
        %v415 = vrot.slane %v374, %v414
        %v416 = vlaneseq
        %v417 = vshrl.u32 %v416, 7
        %v418 = vsub.s32 2, %v417
        %v419 = vrot.slane %v374, %v418
        %v420 = vlaneseq
        %v421 = vshrl.u32 %v420, 7
        %v422 = vsub.s32 3, %v421
        %v423 = vrot.slane %v374, %v422
        %v428 = vadd.f32 %v399, %v411
        %v429 = vadd.f32 %v400, %v415
        %v430 = vadd.f32 %v401, %v419
        %v431 = vadd.f32 %v402, %v423
        %v432 = vadd.f32 %v403, %v411
        %v433 = vadd.f32 %v404, %v415
        %v434 = vadd.f32 %v405, %v419
        %v435 = vadd.f32 %v406, %v423
        %v436 = vpack.c.bf16 %v378, %v377
        %v469 = vunpack.c.l.b16 %v309
        %v470 = vunpack.c.h.b16 %v309
        %v471 = vunpack.c.l.b16 %v310
        %v472 = vunpack.c.h.b16 %v310
        %v473 = vunpack.c.l.b16 %v311
        %v474 = vunpack.c.h.b16 %v311
        %v475 = vunpack.c.l.b16 %v312
        %v476 = vunpack.c.h.b16 %v312
        %v477 = vunpack.c.l.b16 %v313
        %v478 = vunpack.c.h.b16 %v313
        %v479 = vunpack.c.l.b16 %v314
        %v480 = vunpack.c.h.b16 %v314
        %v481 = vunpack.c.l.b16 %v315
        %v482 = vunpack.c.h.b16 %v315
        %v483 = vunpack.c.l.b16 %v316
        %v484 = vunpack.c.h.b16 %v316
        %v485 = vunpack.c.l.b16 %v317
        %v486 = vunpack.c.h.b16 %v317
        %v487 = vunpack.c.l.b16 %v318
        %v488 = vunpack.c.h.b16 %v318
        %v489 = vunpack.c.l.b16 %v319
        %v490 = vunpack.c.h.b16 %v319
        %v491 = vunpack.c.l.b16 %v320
        %v492 = vunpack.c.h.b16 %v320
        %v493 = vunpack.c.l.b16 %v321
        %v494 = vunpack.c.h.b16 %v321
        %v495 = vunpack.c.l.b16 %v322
        %v496 = vunpack.c.h.b16 %v322
        %v497 = vunpack.c.l.b16 %v323
        %v498 = vunpack.c.h.b16 %v323
        %v499 = vunpack.c.l.b16 %v324
        %v500 = vunpack.c.h.b16 %v324
        %v501 = vunpack.c.l.b16 %v325
        %v502 = vunpack.c.h.b16 %v325
        %v503 = vunpack.c.l.b16 %v326
        %v504 = vunpack.c.h.b16 %v326
        %v505 = vunpack.c.l.b16 %v327
        %v506 = vunpack.c.h.b16 %v327
        %v507 = vunpack.c.l.b16 %v328
        %v508 = vunpack.c.h.b16 %v328
        %v509 = vunpack.c.l.b16 %v329
        %v510 = vunpack.c.h.b16 %v329
        %v511 = vunpack.c.l.b16 %v330
        %v512 = vunpack.c.h.b16 %v330
        %v513 = vunpack.c.l.b16 %v331
        %v514 = vunpack.c.h.b16 %v331
        %v515 = vunpack.c.l.b16 %v332
        %v516 = vunpack.c.h.b16 %v332
        %v517 = vunpack.c.l.b16 %v333
        %v518 = vunpack.c.h.b16 %v333
        %v519 = vunpack.c.l.b16 %v334
        %v520 = vunpack.c.h.b16 %v334
        %v521 = vunpack.c.l.b16 %v335
        %v522 = vunpack.c.h.b16 %v335
        %v523 = vunpack.c.l.b16 %v336
        %v524 = vunpack.c.h.b16 %v336
        %v525 = vunpack.c.l.b16 %v337
        %v526 = vunpack.c.h.b16 %v337
        %v527 = vunpack.c.l.b16 %v338
        %v528 = vunpack.c.h.b16 %v338
        %v529 = vunpack.c.l.b16 %v339
        %v530 = vunpack.c.h.b16 %v339
        %v531 = vunpack.c.l.b16 %v340
        %v532 = vunpack.c.h.b16 %v340
        %v533 = vpack.c.b16 %v473, %v469
        %v534 = vpack.c.b16 %v474, %v470
        %v535 = vpack.c.b16 %v475, %v471
        %v536 = vpack.c.b16 %v476, %v472
        %v537 = vpack.c.b16 %v481, %v477
        %v538 = vpack.c.b16 %v482, %v478
        %v539 = vpack.c.b16 %v483, %v479
        %v540 = vpack.c.b16 %v484, %v480
        %v541 = vpack.c.b16 %v489, %v485
        %v542 = vpack.c.b16 %v490, %v486
        %v543 = vpack.c.b16 %v491, %v487
        %v544 = vpack.c.b16 %v492, %v488
        %v545 = vpack.c.b16 %v497, %v493
        %v546 = vpack.c.b16 %v498, %v494
        %v547 = vpack.c.b16 %v499, %v495
        %v548 = vpack.c.b16 %v500, %v496
        %v549 = vpack.c.b16 %v505, %v501
        %v550 = vpack.c.b16 %v506, %v502
        %v551 = vpack.c.b16 %v507, %v503
        %v552 = vpack.c.b16 %v508, %v504
        %v553 = vpack.c.b16 %v513, %v509
        %v554 = vpack.c.b16 %v514, %v510
        %v555 = vpack.c.b16 %v515, %v511
        %v556 = vpack.c.b16 %v516, %v512
        %v557 = vpack.c.b16 %v521, %v517
        %v558 = vpack.c.b16 %v522, %v518
        %v559 = vpack.c.b16 %v523, %v519
        %v560 = vpack.c.b16 %v524, %v520
        %v561 = vpack.c.b16 %v529, %v525
        %v562 = vpack.c.b16 %v530, %v526
        %v563 = vpack.c.b16 %v531, %v527
        %v564 = vpack.c.b16 %v532, %v528
        %597 = vmatprep.subr.bf16.mxu0 %v562
        %598 = vmatpush1.bf16.msra.mxu0 %v561
        %599 = vmatprep.subr.bf16.mxu0 %v558
        %600 = vmatpush1.bf16.msra.mxu0 %v557
        %601 = vmatprep.subr.bf16.mxu0 %v554
        %602 = vmatpush1.bf16.msra.mxu0 %v553
        %603 = vmatprep.subr.bf16.mxu0 %v550
        %604 = vmatpush1.bf16.msra.mxu0 %v549
        %605 = vmatprep.subr.bf16.mxu0 %v546
        %606 = vmatpush1.bf16.msra.mxu0 %v545
        %607 = vmatprep.subr.bf16.mxu0 %v542
        %608 = vmatpush1.bf16.msra.mxu0 %v541
        %609 = vmatprep.subr.bf16.mxu0 %v538
        %610 = vmatpush1.bf16.msra.mxu0 %v537
        %611 = vmatprep.subr.bf16.mxu0 %v534
        %612 = vmatpush1.bf16.msra.mxu0 %v533
        %613 = vmatprep.subr.bf16.mxu0 0
        %614 = vmatpush2.bf16.msra.mxu0 0
        %615 = vmatprep.subr.bf16.mxu0 0
        %616 = vmatpush2.bf16.msra.mxu0 0
        %617 = vmatprep.subr.bf16.mxu0 0
        %618 = vmatpush2.bf16.msra.mxu0 0
        %619 = vmatprep.subr.bf16.mxu0 0
        %620 = vmatpush2.bf16.msra.mxu0 0
        %621 = vmatprep.subr.bf16.mxu0 0
        %622 = vmatpush2.bf16.msra.mxu0 0
        %623 = vmatprep.subr.bf16.mxu0 0
        %624 = vmatpush2.bf16.msra.mxu0 0
        %625 = vmatprep.subr.bf16.mxu0 0
        %626 = vmatpush2.bf16.msra.mxu0 0
        %627 = vmatprep.subr.bf16.mxu0 0
        %628 = vmatpush2.bf16.msra.mxu0 0
        %629 = vmatprep.mubr.bf16.mxu0 0
        %630 = vmatmul.mubr.bf16.gmra.mxu0 %v436
        %v631 = vpop.f32.mrf.mxu0
        %v632 = vadd.f32 0.0, %v631
        %v633 = vpop.f32.mrf.mxu0
        %v634 = vadd.f32 0.0, %v633
        %v635 = vpop.f32.mrf.mxu0
        %v636 = vadd.f32 0.0, %v635
        %v637 = vpop.f32.mrf.mxu0
        %v638 = vadd.f32 0.0, %v637
        %639 = vdwg.mxu0
        %640 = vmatprep.subr.bf16.mxu0 %v564
        %641 = vmatpush1.bf16.msra.mxu0 %v563
        %642 = vmatprep.subr.bf16.mxu0 %v560
        %643 = vmatpush1.bf16.msra.mxu0 %v559
        %644 = vmatprep.subr.bf16.mxu0 %v556
        %645 = vmatpush1.bf16.msra.mxu0 %v555
        %646 = vmatprep.subr.bf16.mxu0 %v552
        %647 = vmatpush1.bf16.msra.mxu0 %v551
        %648 = vmatprep.subr.bf16.mxu0 %v548
        %649 = vmatpush1.bf16.msra.mxu0 %v547
        %650 = vmatprep.subr.bf16.mxu0 %v544
        %651 = vmatpush1.bf16.msra.mxu0 %v543
        %652 = vmatprep.subr.bf16.mxu0 %v540
        %653 = vmatpush1.bf16.msra.mxu0 %v539
        %654 = vmatprep.subr.bf16.mxu0 %v536
        %655 = vmatpush1.bf16.msra.mxu0 %v535
        %656 = vmatprep.subr.bf16.mxu0 0
        %657 = vmatpush2.bf16.msra.mxu0 0
        %658 = vmatprep.subr.bf16.mxu0 0
        %659 = vmatpush2.bf16.msra.mxu0 0
        %660 = vmatprep.subr.bf16.mxu0 0
        %661 = vmatpush2.bf16.msra.mxu0 0
        %662 = vmatprep.subr.bf16.mxu0 0
        %663 = vmatpush2.bf16.msra.mxu0 0
        %664 = vmatprep.subr.bf16.mxu0 0
        %665 = vmatpush2.bf16.msra.mxu0 0
        %666 = vmatprep.subr.bf16.mxu0 0
        %667 = vmatpush2.bf16.msra.mxu0 0
        %668 = vmatprep.subr.bf16.mxu0 0
        %669 = vmatpush2.bf16.msra.mxu0 0
        %670 = vmatprep.subr.bf16.mxu0 0
        %671 = vmatpush2.bf16.msra.mxu0 0
        %672 = vmatprep.mubr.bf16.mxu0 0
        %673 = vmatmul.mubr.bf16.gmra.mxu0 %v436
        %v674 = vpop.f32.mrf.mxu0
        %v675 = vadd.f32 0.0, %v674
        %v676 = vpop.f32.mrf.mxu0
        %v677 = vadd.f32 0.0, %v676
        %v678 = vpop.f32.mrf.mxu0
        %v679 = vadd.f32 0.0, %v678
        %v680 = vpop.f32.mrf.mxu0
        %v681 = vadd.f32 0.0, %v680
        %682 = vdwg.mxu0
        %v683 = vadd.f32 %v428, %v632
        %v684 = vadd.f32 %v429, %v634
        %v685 = vadd.f32 %v430, %v675
        %v686 = vadd.f32 %v431, %v677
        %v687 = vadd.f32 %v432, %v636
        %v688 = vadd.f32 %v433, %v638
        %v689 = vadd.f32 %v434, %v679
        %v690 = vadd.f32 %v435, %v681
        %v691 = vxor.u32 %v683, 2147483648
        %v692 = vxor.u32 %v687, 2147483648
        %v693 = vmul.f32 %v691, 1.442695
        %v694 = vpow.pop %v693
        %v695 = vmul.f32 %v692, 1.442695
        %v696 = vpow.pop %v695
        %v697 = vadd.f32 %v694, 1.0
        %v698 = vadd.f32 %v696, 1.0
        %v699 = vrcp.pop %v697
        %v700 = vmul.f32 1.0, %v699
        %v701 = vrcp.pop %v698
        %v702 = vmul.f32 1.0, %v701
        %v703 = vxor.u32 %v684, 2147483648
        %v704 = vxor.u32 %v688, 2147483648
        %v705 = vmul.f32 %v703, 1.442695
        %v706 = vpow.pop %v705
        %v707 = vmul.f32 %v704, 1.442695
        %v708 = vpow.pop %v707
        %v709 = vadd.f32 %v706, 1.0
        %v710 = vadd.f32 %v708, 1.0
        %v711 = vrcp.pop %v709
        %v712 = vmul.f32 1.0, %v711
        %v713 = vrcp.pop %v710
        %v714 = vmul.f32 1.0, %v713
        %v715 = vtanh.pop %v685
        %v716 = vtanh.pop %v689
        %v717 = vxor.u32 %v686, 2147483648
        %v718 = vxor.u32 %v690, 2147483648
        %v719 = vmul.f32 %v717, 1.442695
        %v720 = vpow.pop %v719
        %v721 = vmul.f32 %v718, 1.442695
        %v722 = vpow.pop %v721
        %v723 = vadd.f32 %v720, 1.0
        %v724 = vadd.f32 %v722, 1.0
        %v725 = vrcp.pop %v723
        %v726 = vmul.f32 1.0, %v725
        %v727 = vrcp.pop %v724
        %v728 = vmul.f32 1.0, %v727
        %v729 = vmul.f32 %v712, %v379
        %v730 = vmul.f32 %v714, %v380
        %v731 = vmul.f32 %v700, %v715
        %v732 = vmul.f32 %v702, %v716
        %v733 = vadd.f32 %v729, %v731
        %v734 = vadd.f32 %v730, %v732
        %v735 = vtanh.pop %v733
        %v736 = vtanh.pop %v734
        %v737 = vmul.f32 %v726, %v735
        %v738 = vmul.f32 %v728, %v736
        %v739 = vsel %vm390, 1, 0
        %v740 = vsel %vm391, 1, 0
        %741 = vset.pattern.permute.xlu0 0
        %742 = vperm.xlu0 %741, %v739
        %v743 = vpop.permute.xlu0 %742
        %744 = vset.pattern.permute.xlu0 0
        %745 = vperm.xlu0 %744, %v740
        %v746 = vpop.permute.xlu0 %745
        %vm747 = vcmp.eq.s32.totalorder %v743, 1
        %vm748 = vcmp.eq.s32.totalorder %v746, 1
        %v749 = vsel %vm747, %v737, %v377
        %v750 = vsel %vm748, %v738, %v378
        %v751 = vsel %vm747, %v733, %v379
        %v752 = vsel %vm748, %v734, %v380
        %s753 = scalar_lea.vmem %s260, 224 [#allocation9]
        %v754 = vld [vmem:[%s753] sm:$0xff]
        %v755 = vld [vmem:[%s753 + $0x8] sm:$0xff]
        %v756 = vld [vmem:[%s753 + $0x10] sm:$0xff]
        %v757 = vld [vmem:[%s753 + $0x18] sm:$0xff]
        %v758 = vunpack.c.l.bf16 %v754
        %v759 = vunpack.c.h.bf16 %v754
        %v760 = vunpack.c.l.bf16 %v755
        %v761 = vunpack.c.h.bf16 %v755
        %v762 = vunpack.c.l.bf16 %v756
        %v763 = vunpack.c.h.bf16 %v756
        %v764 = vunpack.c.l.bf16 %v757
        %v765 = vunpack.c.h.bf16 %v757
        %v767 = vlaneseq
        %v768 = vshrl.u32 %v767, 7
        %v769 = vsub.s32 0, %v768
        %v770 = vrot.slane %v376, %v769
        %v771 = vlaneseq
        %v772 = vshrl.u32 %v771, 7
        %v773 = vsub.s32 1, %v772
        %v774 = vrot.slane %v376, %v773
        %v775 = vlaneseq
        %v776 = vshrl.u32 %v775, 7
        %v777 = vsub.s32 2, %v776
        %v778 = vrot.slane %v376, %v777
        %v779 = vlaneseq
        %v780 = vshrl.u32 %v779, 7
        %v781 = vsub.s32 3, %v780
        %v782 = vrot.slane %v376, %v781
        %v787 = vadd.f32 %v758, %v770
        %v788 = vadd.f32 %v759, %v774
        %v789 = vadd.f32 %v760, %v778
        %v790 = vadd.f32 %v761, %v782
        %v791 = vadd.f32 %v762, %v770
        %v792 = vadd.f32 %v763, %v774
        %v793 = vadd.f32 %v764, %v778
        %v794 = vadd.f32 %v765, %v782
        %v795 = vpack.c.bf16 %v382, %v381
        %v828 = vunpack.c.l.b16 %v342
        %v829 = vunpack.c.h.b16 %v342
        %v830 = vunpack.c.l.b16 %v343
        %v831 = vunpack.c.h.b16 %v343
        %v832 = vunpack.c.l.b16 %v344
        %v833 = vunpack.c.h.b16 %v344
        %v834 = vunpack.c.l.b16 %v345
        %v835 = vunpack.c.h.b16 %v345
        %v836 = vunpack.c.l.b16 %v346
        %v837 = vunpack.c.h.b16 %v346
        %v838 = vunpack.c.l.b16 %v347
        %v839 = vunpack.c.h.b16 %v347
        %v840 = vunpack.c.l.b16 %v348
        %v841 = vunpack.c.h.b16 %v348
        %v842 = vunpack.c.l.b16 %v349
        %v843 = vunpack.c.h.b16 %v349
        %v844 = vunpack.c.l.b16 %v350
        %v845 = vunpack.c.h.b16 %v350
        %v846 = vunpack.c.l.b16 %v351
        %v847 = vunpack.c.h.b16 %v351
        %v848 = vunpack.c.l.b16 %v352
        %v849 = vunpack.c.h.b16 %v352
        %v850 = vunpack.c.l.b16 %v353
        %v851 = vunpack.c.h.b16 %v353
        %v852 = vunpack.c.l.b16 %v354
        %v853 = vunpack.c.h.b16 %v354
        %v854 = vunpack.c.l.b16 %v355
        %v855 = vunpack.c.h.b16 %v355
        %v856 = vunpack.c.l.b16 %v356
        %v857 = vunpack.c.h.b16 %v356
        %v858 = vunpack.c.l.b16 %v357
        %v859 = vunpack.c.h.b16 %v357
        %v860 = vunpack.c.l.b16 %v358
        %v861 = vunpack.c.h.b16 %v358
        %v862 = vunpack.c.l.b16 %v359
        %v863 = vunpack.c.h.b16 %v359
        %v864 = vunpack.c.l.b16 %v360
        %v865 = vunpack.c.h.b16 %v360
        %v866 = vunpack.c.l.b16 %v361
        %v867 = vunpack.c.h.b16 %v361
        %v868 = vunpack.c.l.b16 %v362
        %v869 = vunpack.c.h.b16 %v362
        %v870 = vunpack.c.l.b16 %v363
        %v871 = vunpack.c.h.b16 %v363
        %v872 = vunpack.c.l.b16 %v364
        %v873 = vunpack.c.h.b16 %v364
        %v874 = vunpack.c.l.b16 %v365
        %v875 = vunpack.c.h.b16 %v365
        %v876 = vunpack.c.l.b16 %v366
        %v877 = vunpack.c.h.b16 %v366
        %v878 = vunpack.c.l.b16 %v367
        %v879 = vunpack.c.h.b16 %v367
        %v880 = vunpack.c.l.b16 %v368
        %v881 = vunpack.c.h.b16 %v368
        %v882 = vunpack.c.l.b16 %v369
        %v883 = vunpack.c.h.b16 %v369
        %v884 = vunpack.c.l.b16 %v370
        %v885 = vunpack.c.h.b16 %v370
        %v886 = vunpack.c.l.b16 %v371
        %v887 = vunpack.c.h.b16 %v371
        %v888 = vunpack.c.l.b16 %v372
        %v889 = vunpack.c.h.b16 %v372
        %v890 = vunpack.c.l.b16 %v373
        %v891 = vunpack.c.h.b16 %v373
        %v892 = vpack.c.b16 %v832, %v828
        %v893 = vpack.c.b16 %v833, %v829
        %v894 = vpack.c.b16 %v834, %v830
        %v895 = vpack.c.b16 %v835, %v831
        %v896 = vpack.c.b16 %v840, %v836
        %v897 = vpack.c.b16 %v841, %v837
        %v898 = vpack.c.b16 %v842, %v838
        %v899 = vpack.c.b16 %v843, %v839
        %v900 = vpack.c.b16 %v848, %v844
        %v901 = vpack.c.b16 %v849, %v845
        %v902 = vpack.c.b16 %v850, %v846
        %v903 = vpack.c.b16 %v851, %v847
        %v904 = vpack.c.b16 %v856, %v852
        %v905 = vpack.c.b16 %v857, %v853
        %v906 = vpack.c.b16 %v858, %v854
        %v907 = vpack.c.b16 %v859, %v855
        %v908 = vpack.c.b16 %v864, %v860
        %v909 = vpack.c.b16 %v865, %v861
        %v910 = vpack.c.b16 %v866, %v862
        %v911 = vpack.c.b16 %v867, %v863
        %v912 = vpack.c.b16 %v872, %v868
        %v913 = vpack.c.b16 %v873, %v869
        %v914 = vpack.c.b16 %v874, %v870
        %v915 = vpack.c.b16 %v875, %v871
        %v916 = vpack.c.b16 %v880, %v876
        %v917 = vpack.c.b16 %v881, %v877
        %v918 = vpack.c.b16 %v882, %v878
        %v919 = vpack.c.b16 %v883, %v879
        %v920 = vpack.c.b16 %v888, %v884
        %v921 = vpack.c.b16 %v889, %v885
        %v922 = vpack.c.b16 %v890, %v886
        %v923 = vpack.c.b16 %v891, %v887
        %956 = vmatprep.subr.bf16.mxu0 %v921
        %957 = vmatpush1.bf16.msra.mxu0 %v920
        %958 = vmatprep.subr.bf16.mxu0 %v917
        %959 = vmatpush1.bf16.msra.mxu0 %v916
        %960 = vmatprep.subr.bf16.mxu0 %v913
        %961 = vmatpush1.bf16.msra.mxu0 %v912
        %962 = vmatprep.subr.bf16.mxu0 %v909
        %963 = vmatpush1.bf16.msra.mxu0 %v908
        %964 = vmatprep.subr.bf16.mxu0 %v905
        %965 = vmatpush1.bf16.msra.mxu0 %v904
        %966 = vmatprep.subr.bf16.mxu0 %v901
        %967 = vmatpush1.bf16.msra.mxu0 %v900
        %968 = vmatprep.subr.bf16.mxu0 %v897
        %969 = vmatpush1.bf16.msra.mxu0 %v896
        %970 = vmatprep.subr.bf16.mxu0 %v893
        %971 = vmatpush1.bf16.msra.mxu0 %v892
        %972 = vmatprep.subr.bf16.mxu0 0
        %973 = vmatpush2.bf16.msra.mxu0 0
        %974 = vmatprep.subr.bf16.mxu0 0
        %975 = vmatpush2.bf16.msra.mxu0 0
        %976 = vmatprep.subr.bf16.mxu0 0
        %977 = vmatpush2.bf16.msra.mxu0 0
        %978 = vmatprep.subr.bf16.mxu0 0
        %979 = vmatpush2.bf16.msra.mxu0 0
        %980 = vmatprep.subr.bf16.mxu0 0
        %981 = vmatpush2.bf16.msra.mxu0 0
        %982 = vmatprep.subr.bf16.mxu0 0
        %983 = vmatpush2.bf16.msra.mxu0 0
        %984 = vmatprep.subr.bf16.mxu0 0
        %985 = vmatpush2.bf16.msra.mxu0 0
        %986 = vmatprep.subr.bf16.mxu0 0
        %987 = vmatpush2.bf16.msra.mxu0 0
        %988 = vmatprep.mubr.bf16.mxu0 0
        %989 = vmatmul.mubr.bf16.gmra.mxu0 %v795
        %v990 = vpop.f32.mrf.mxu0
        %v991 = vadd.f32 0.0, %v990
        %v992 = vpop.f32.mrf.mxu0
        %v993 = vadd.f32 0.0, %v992
        %v994 = vpop.f32.mrf.mxu0
        %v995 = vadd.f32 0.0, %v994
        %v996 = vpop.f32.mrf.mxu0
        %v997 = vadd.f32 0.0, %v996
        %998 = vdwg.mxu0
        %999 = vmatprep.subr.bf16.mxu0 %v923
        %1000 = vmatpush1.bf16.msra.mxu0 %v922
        %1001 = vmatprep.subr.bf16.mxu0 %v919
        %1002 = vmatpush1.bf16.msra.mxu0 %v918
        %1003 = vmatprep.subr.bf16.mxu0 %v915
        %1004 = vmatpush1.bf16.msra.mxu0 %v914
        %1005 = vmatprep.subr.bf16.mxu0 %v911
        %1006 = vmatpush1.bf16.msra.mxu0 %v910
        %1007 = vmatprep.subr.bf16.mxu0 %v907
        %1008 = vmatpush1.bf16.msra.mxu0 %v906
        %1009 = vmatprep.subr.bf16.mxu0 %v903
        %1010 = vmatpush1.bf16.msra.mxu0 %v902
        %1011 = vmatprep.subr.bf16.mxu0 %v899
        %1012 = vmatpush1.bf16.msra.mxu0 %v898
        %1013 = vmatprep.subr.bf16.mxu0 %v895
        %1014 = vmatpush1.bf16.msra.mxu0 %v894
        %1015 = vmatprep.subr.bf16.mxu0 0
        %1016 = vmatpush2.bf16.msra.mxu0 0
        %1017 = vmatprep.subr.bf16.mxu0 0
        %1018 = vmatpush2.bf16.msra.mxu0 0
        %1019 = vmatprep.subr.bf16.mxu0 0
        %1020 = vmatpush2.bf16.msra.mxu0 0
        %1021 = vmatprep.subr.bf16.mxu0 0
        %1022 = vmatpush2.bf16.msra.mxu0 0
        %1023 = vmatprep.subr.bf16.mxu0 0
        %1024 = vmatpush2.bf16.msra.mxu0 0
        %1025 = vmatprep.subr.bf16.mxu0 0
        %1026 = vmatpush2.bf16.msra.mxu0 0
        %1027 = vmatprep.subr.bf16.mxu0 0
        %1028 = vmatpush2.bf16.msra.mxu0 0
        %1029 = vmatprep.subr.bf16.mxu0 0
        %1030 = vmatpush2.bf16.msra.mxu0 0
        %1031 = vmatprep.mubr.bf16.mxu0 0
        %1032 = vmatmul.mubr.bf16.gmra.mxu0 %v795
        %v1033 = vpop.f32.mrf.mxu0
        %v1034 = vadd.f32 0.0, %v1033
        %v1035 = vpop.f32.mrf.mxu0
        %v1036 = vadd.f32 0.0, %v1035
        %v1037 = vpop.f32.mrf.mxu0
        %v1038 = vadd.f32 0.0, %v1037
        %v1039 = vpop.f32.mrf.mxu0
        %v1040 = vadd.f32 0.0, %v1039
        %1041 = vdwg.mxu0
        %v1042 = vadd.f32 %v787, %v991
        %v1043 = vadd.f32 %v788, %v993
        %v1044 = vadd.f32 %v789, %v1034
        %v1045 = vadd.f32 %v790, %v1036
        %v1046 = vadd.f32 %v791, %v995
        %v1047 = vadd.f32 %v792, %v997
        %v1048 = vadd.f32 %v793, %v1038
        %v1049 = vadd.f32 %v794, %v1040
        %v1050 = vxor.u32 %v1042, 2147483648
        %v1051 = vxor.u32 %v1046, 2147483648
        %v1052 = vmul.f32 %v1050, 1.442695
        %v1053 = vpow.pop %v1052
        %v1054 = vmul.f32 %v1051, 1.442695
        %v1055 = vpow.pop %v1054
        %v1056 = vadd.f32 %v1053, 1.0
        %v1057 = vadd.f32 %v1055, 1.0
        %v1058 = vrcp.pop %v1056
        %v1059 = vmul.f32 1.0, %v1058
        %v1060 = vrcp.pop %v1057
        %v1061 = vmul.f32 1.0, %v1060
        %v1062 = vxor.u32 %v1043, 2147483648
        %v1063 = vxor.u32 %v1047, 2147483648
        %v1064 = vmul.f32 %v1062, 1.442695
        %v1065 = vpow.pop %v1064
        %v1066 = vmul.f32 %v1063, 1.442695
        %v1067 = vpow.pop %v1066
        %v1068 = vadd.f32 %v1065, 1.0
        %v1069 = vadd.f32 %v1067, 1.0
        %v1070 = vrcp.pop %v1068
        %v1071 = vmul.f32 1.0, %v1070
        %v1072 = vrcp.pop %v1069
        %v1073 = vmul.f32 1.0, %v1072
        %v1074 = vtanh.pop %v1044
        %v1075 = vtanh.pop %v1048
        %v1076 = vxor.u32 %v1045, 2147483648
        %v1077 = vxor.u32 %v1049, 2147483648
        %v1078 = vmul.f32 %v1076, 1.442695
        %v1079 = vpow.pop %v1078
        %v1080 = vmul.f32 %v1077, 1.442695
        %v1081 = vpow.pop %v1080
        %v1082 = vadd.f32 %v1079, 1.0
        %v1083 = vadd.f32 %v1081, 1.0
        %v1084 = vrcp.pop %v1082
        %v1085 = vmul.f32 1.0, %v1084
        %v1086 = vrcp.pop %v1083
        %v1087 = vmul.f32 1.0, %v1086
        %v1088 = vmul.f32 %v1071, %v383
        %v1089 = vmul.f32 %v1073, %v384
        %v1090 = vmul.f32 %v1059, %v1074
        %v1091 = vmul.f32 %v1061, %v1075
        %v1092 = vadd.f32 %v1088, %v1090
        %v1093 = vadd.f32 %v1089, %v1091
        %v1094 = vtanh.pop %v1092
        %v1095 = vtanh.pop %v1093
        %v1096 = vmul.f32 %v1085, %v1094
        %v1097 = vmul.f32 %v1087, %v1095
        %v1098 = vsel %vm393, 1, 0
        %v1099 = vsel %vm394, 1, 0
        %1100 = vset.pattern.permute.xlu0 0
        %1101 = vperm.xlu0 %1100, %v1098
        %v1102 = vpop.permute.xlu0 %1101
        %1103 = vset.pattern.permute.xlu0 0
        %1104 = vperm.xlu0 %1103, %v1099
        %v1105 = vpop.permute.xlu0 %1104
        %vm1106 = vcmp.eq.s32.totalorder %v1102, 1
        %vm1107 = vcmp.eq.s32.totalorder %v1105, 1
        %v1108 = vsel %vm1106, %v1096, %v381
        %v1109 = vsel %vm1107, %v1097, %v382
        %v1110 = vsel %vm1106, %v1092, %v383
        %v1111 = vsel %vm1107, %v1093, %v384
        %s1112 = sadd.s32 %s385, 1
        %s1113 = sadd.s32 %s387, 6
        %v1114 = vstv %s1112
        %vm1115 = vcmp.lt.s32.totalorder %v1114, %v307
        %vm1116 = vcmp.lt.s32.totalorder %v1114, %v308
        %v1117 = vstv %s1113
        %vm1118 = vcmp.lt.s32.totalorder %v1117, %v307
        %vm1119 = vcmp.lt.s32.totalorder %v1117, %v308
        %s1120 = scalar_lea.vmem %s251, 32 [#allocation6]
        %v1121 = vld [vmem:[%s1120] sm:$0xff]
        %v1122 = vld [vmem:[%s1120 + $0x8] sm:$0xff]
        %v1123 = vld [vmem:[%s1120 + $0x10] sm:$0xff]
        %v1124 = vld [vmem:[%s1120 + $0x18] sm:$0xff]
        %v1125 = vunpack.c.l.bf16 %v1121
        %v1126 = vunpack.c.h.bf16 %v1121
        %v1127 = vunpack.c.l.bf16 %v1122
        %v1128 = vunpack.c.h.bf16 %v1122
        %v1129 = vunpack.c.l.bf16 %v1123
        %v1130 = vunpack.c.h.bf16 %v1123
        %v1131 = vunpack.c.l.bf16 %v1124
        %v1132 = vunpack.c.h.bf16 %v1124
        %v1133 = vadd.f32 %v1125, %v411
        %v1134 = vadd.f32 %v1126, %v415
        %v1135 = vadd.f32 %v1127, %v419
        %v1136 = vadd.f32 %v1128, %v423
        %v1137 = vadd.f32 %v1129, %v411
        %v1138 = vadd.f32 %v1130, %v415
        %v1139 = vadd.f32 %v1131, %v419
        %v1140 = vadd.f32 %v1132, %v423
        %v1141 = vpack.c.bf16 %v750, %v749
        %1142 = vmatprep.subr.bf16.mxu0 %v562
        %1143 = vmatpush1.bf16.msra.mxu0 %v561
        %1144 = vmatprep.subr.bf16.mxu0 %v558
        %1145 = vmatpush1.bf16.msra.mxu0 %v557
        %1146 = vmatprep.subr.bf16.mxu0 %v554
        %1147 = vmatpush1.bf16.msra.mxu0 %v553
        %1148 = vmatprep.subr.bf16.mxu0 %v550
        %1149 = vmatpush1.bf16.msra.mxu0 %v549
        %1150 = vmatprep.subr.bf16.mxu0 %v546
        %1151 = vmatpush1.bf16.msra.mxu0 %v545
        %1152 = vmatprep.subr.bf16.mxu0 %v542
        %1153 = vmatpush1.bf16.msra.mxu0 %v541
        %1154 = vmatprep.subr.bf16.mxu0 %v538
        %1155 = vmatpush1.bf16.msra.mxu0 %v537
        %1156 = vmatprep.subr.bf16.mxu0 %v534
        %1157 = vmatpush1.bf16.msra.mxu0 %v533
        %1158 = vmatprep.subr.bf16.mxu0 0
        %1159 = vmatpush2.bf16.msra.mxu0 0
        %1160 = vmatprep.subr.bf16.mxu0 0
        %1161 = vmatpush2.bf16.msra.mxu0 0
        %1162 = vmatprep.subr.bf16.mxu0 0
        %1163 = vmatpush2.bf16.msra.mxu0 0
        %1164 = vmatprep.subr.bf16.mxu0 0
        %1165 = vmatpush2.bf16.msra.mxu0 0
        %1166 = vmatprep.subr.bf16.mxu0 0
        %1167 = vmatpush2.bf16.msra.mxu0 0
        %1168 = vmatprep.subr.bf16.mxu0 0
        %1169 = vmatpush2.bf16.msra.mxu0 0
        %1170 = vmatprep.subr.bf16.mxu0 0
        %1171 = vmatpush2.bf16.msra.mxu0 0
        %1172 = vmatprep.subr.bf16.mxu0 0
        %1173 = vmatpush2.bf16.msra.mxu0 0
        %1174 = vmatprep.mubr.bf16.mxu0 0
        %1175 = vmatmul.mubr.bf16.gmra.mxu0 %v1141
        %v1176 = vpop.f32.mrf.mxu0
        %v1177 = vadd.f32 0.0, %v1176
        %v1178 = vpop.f32.mrf.mxu0
        %v1179 = vadd.f32 0.0, %v1178
        %v1180 = vpop.f32.mrf.mxu0
        %v1181 = vadd.f32 0.0, %v1180
        %v1182 = vpop.f32.mrf.mxu0
        %v1183 = vadd.f32 0.0, %v1182
        %1184 = vdwg.mxu0
        %1185 = vmatprep.subr.bf16.mxu0 %v564
        %1186 = vmatpush1.bf16.msra.mxu0 %v563
        %1187 = vmatprep.subr.bf16.mxu0 %v560
        %1188 = vmatpush1.bf16.msra.mxu0 %v559
        %1189 = vmatprep.subr.bf16.mxu0 %v556
        %1190 = vmatpush1.bf16.msra.mxu0 %v555
        %1191 = vmatprep.subr.bf16.mxu0 %v552
        %1192 = vmatpush1.bf16.msra.mxu0 %v551
        %1193 = vmatprep.subr.bf16.mxu0 %v548
        %1194 = vmatpush1.bf16.msra.mxu0 %v547
        %1195 = vmatprep.subr.bf16.mxu0 %v544
        %1196 = vmatpush1.bf16.msra.mxu0 %v543
        %1197 = vmatprep.subr.bf16.mxu0 %v540
        %1198 = vmatpush1.bf16.msra.mxu0 %v539
        %1199 = vmatprep.subr.bf16.mxu0 %v536
        %1200 = vmatpush1.bf16.msra.mxu0 %v535
        %1201 = vmatprep.subr.bf16.mxu0 0
        %1202 = vmatpush2.bf16.msra.mxu0 0
        %1203 = vmatprep.subr.bf16.mxu0 0
        %1204 = vmatpush2.bf16.msra.mxu0 0
        %1205 = vmatprep.subr.bf16.mxu0 0
        %1206 = vmatpush2.bf16.msra.mxu0 0
        %1207 = vmatprep.subr.bf16.mxu0 0
        %1208 = vmatpush2.bf16.msra.mxu0 0
        %1209 = vmatprep.subr.bf16.mxu0 0
        %1210 = vmatpush2.bf16.msra.mxu0 0
        %1211 = vmatprep.subr.bf16.mxu0 0
        %1212 = vmatpush2.bf16.msra.mxu0 0
        %1213 = vmatprep.subr.bf16.mxu0 0
        %1214 = vmatpush2.bf16.msra.mxu0 0
        %1215 = vmatprep.subr.bf16.mxu0 0
        %1216 = vmatpush2.bf16.msra.mxu0 0
        %1217 = vmatprep.mubr.bf16.mxu0 0
        %1218 = vmatmul.mubr.bf16.gmra.mxu0 %v1141
        %v1219 = vpop.f32.mrf.mxu0
        %v1220 = vadd.f32 0.0, %v1219
        %v1221 = vpop.f32.mrf.mxu0
        %v1222 = vadd.f32 0.0, %v1221
        %v1223 = vpop.f32.mrf.mxu0
        %v1224 = vadd.f32 0.0, %v1223
        %v1225 = vpop.f32.mrf.mxu0
        %v1226 = vadd.f32 0.0, %v1225
        %1227 = vdwg.mxu0
        %v1228 = vadd.f32 %v1133, %v1177
        %v1229 = vadd.f32 %v1134, %v1179
        %v1230 = vadd.f32 %v1135, %v1220
        %v1231 = vadd.f32 %v1136, %v1222
        %v1232 = vadd.f32 %v1137, %v1181
        %v1233 = vadd.f32 %v1138, %v1183
        %v1234 = vadd.f32 %v1139, %v1224
        %v1235 = vadd.f32 %v1140, %v1226
        %v1236 = vxor.u32 %v1228, 2147483648
        %v1237 = vxor.u32 %v1232, 2147483648
        %v1238 = vmul.f32 %v1236, 1.442695
        %v1239 = vpow.pop %v1238
        %v1240 = vmul.f32 %v1237, 1.442695
        %v1241 = vpow.pop %v1240
        %v1242 = vadd.f32 %v1239, 1.0
        %v1243 = vadd.f32 %v1241, 1.0
        %v1244 = vrcp.pop %v1242
        %v1245 = vmul.f32 1.0, %v1244
        %v1246 = vrcp.pop %v1243
        %v1247 = vmul.f32 1.0, %v1246
        %v1248 = vxor.u32 %v1229, 2147483648
        %v1249 = vxor.u32 %v1233, 2147483648
        %v1250 = vmul.f32 %v1248, 1.442695
        %v1251 = vpow.pop %v1250
        %v1252 = vmul.f32 %v1249, 1.442695
        %v1253 = vpow.pop %v1252
        %v1254 = vadd.f32 %v1251, 1.0
        %v1255 = vadd.f32 %v1253, 1.0
        %v1256 = vrcp.pop %v1254
        %v1257 = vmul.f32 1.0, %v1256
        %v1258 = vrcp.pop %v1255
        %v1259 = vmul.f32 1.0, %v1258
        %v1260 = vtanh.pop %v1230
        %v1261 = vtanh.pop %v1234
        %v1262 = vxor.u32 %v1231, 2147483648
        %v1263 = vxor.u32 %v1235, 2147483648
        %v1264 = vmul.f32 %v1262, 1.442695
        %v1265 = vpow.pop %v1264
        %v1266 = vmul.f32 %v1263, 1.442695
        %v1267 = vpow.pop %v1266
        %v1268 = vadd.f32 %v1265, 1.0
        %v1269 = vadd.f32 %v1267, 1.0
        %v1270 = vrcp.pop %v1268
        %v1271 = vmul.f32 1.0, %v1270
        %v1272 = vrcp.pop %v1269
        %v1273 = vmul.f32 1.0, %v1272
        %v1274 = vmul.f32 %v1257, %v751
        %v1275 = vmul.f32 %v1259, %v752
        %v1276 = vmul.f32 %v1245, %v1260
        %v1277 = vmul.f32 %v1247, %v1261
        %v1278 = vadd.f32 %v1274, %v1276
        %v1279 = vadd.f32 %v1275, %v1277
        %v1280 = vtanh.pop %v1278
        %v1281 = vtanh.pop %v1279
        %v1282 = vmul.f32 %v1271, %v1280
        %v1283 = vmul.f32 %v1273, %v1281
        %v1284 = vsel %vm1115, 1, 0
        %v1285 = vsel %vm1116, 1, 0
        %1286 = vset.pattern.permute.xlu0 0
        %1287 = vperm.xlu0 %1286, %v1284
        %v1288 = vpop.permute.xlu0 %1287
        %1289 = vset.pattern.permute.xlu0 0
        %1290 = vperm.xlu0 %1289, %v1285
        %v1291 = vpop.permute.xlu0 %1290
        %vm1292 = vcmp.eq.s32.totalorder %v1288, 1
        %vm1293 = vcmp.eq.s32.totalorder %v1291, 1
        %v1294 = vsel %vm1292, %v1282, %v749
        %v1295 = vsel %vm1293, %v1283, %v750
        %v1296 = vsel %vm1292, %v1278, %v751
        %v1297 = vsel %vm1293, %v1279, %v752
        %s1298 = scalar_lea.vmem %s260, 192 [#allocation9]
        %v1299 = vld [vmem:[%s1298] sm:$0xff]
        %v1300 = vld [vmem:[%s1298 + $0x8] sm:$0xff]
        %v1301 = vld [vmem:[%s1298 + $0x10] sm:$0xff]
        %v1302 = vld [vmem:[%s1298 + $0x18] sm:$0xff]
        %v1303 = vunpack.c.l.bf16 %v1299
        %v1304 = vunpack.c.h.bf16 %v1299
        %v1305 = vunpack.c.l.bf16 %v1300
        %v1306 = vunpack.c.h.bf16 %v1300
        %v1307 = vunpack.c.l.bf16 %v1301
        %v1308 = vunpack.c.h.bf16 %v1301
        %v1309 = vunpack.c.l.bf16 %v1302
        %v1310 = vunpack.c.h.bf16 %v1302
        %v1311 = vadd.f32 %v1303, %v770
        %v1312 = vadd.f32 %v1304, %v774
        %v1313 = vadd.f32 %v1305, %v778
        %v1314 = vadd.f32 %v1306, %v782
        %v1315 = vadd.f32 %v1307, %v770
        %v1316 = vadd.f32 %v1308, %v774
        %v1317 = vadd.f32 %v1309, %v778
        %v1318 = vadd.f32 %v1310, %v782
        %v1319 = vpack.c.bf16 %v1109, %v1108
        %1320 = vmatprep.subr.bf16.mxu0 %v921
        %1321 = vmatpush1.bf16.msra.mxu0 %v920
        %1322 = vmatprep.subr.bf16.mxu0 %v917
        %1323 = vmatpush1.bf16.msra.mxu0 %v916
        %1324 = vmatprep.subr.bf16.mxu0 %v913
        %1325 = vmatpush1.bf16.msra.mxu0 %v912
        %1326 = vmatprep.subr.bf16.mxu0 %v909
        %1327 = vmatpush1.bf16.msra.mxu0 %v908
        %1328 = vmatprep.subr.bf16.mxu0 %v905
        %1329 = vmatpush1.bf16.msra.mxu0 %v904
        %1330 = vmatprep.subr.bf16.mxu0 %v901
        %1331 = vmatpush1.bf16.msra.mxu0 %v900
        %1332 = vmatprep.subr.bf16.mxu0 %v897
        %1333 = vmatpush1.bf16.msra.mxu0 %v896
        %1334 = vmatprep.subr.bf16.mxu0 %v893
        %1335 = vmatpush1.bf16.msra.mxu0 %v892
        %1336 = vmatprep.subr.bf16.mxu0 0
        %1337 = vmatpush2.bf16.msra.mxu0 0
        %1338 = vmatprep.subr.bf16.mxu0 0
        %1339 = vmatpush2.bf16.msra.mxu0 0
        %1340 = vmatprep.subr.bf16.mxu0 0
        %1341 = vmatpush2.bf16.msra.mxu0 0
        %1342 = vmatprep.subr.bf16.mxu0 0
        %1343 = vmatpush2.bf16.msra.mxu0 0
        %1344 = vmatprep.subr.bf16.mxu0 0
        %1345 = vmatpush2.bf16.msra.mxu0 0
        %1346 = vmatprep.subr.bf16.mxu0 0
        %1347 = vmatpush2.bf16.msra.mxu0 0
        %1348 = vmatprep.subr.bf16.mxu0 0
        %1349 = vmatpush2.bf16.msra.mxu0 0
        %1350 = vmatprep.subr.bf16.mxu0 0
        %1351 = vmatpush2.bf16.msra.mxu0 0
        %1352 = vmatprep.mubr.bf16.mxu0 0
        %1353 = vmatmul.mubr.bf16.gmra.mxu0 %v1319
        %v1354 = vpop.f32.mrf.mxu0
        %v1355 = vadd.f32 0.0, %v1354
        %v1356 = vpop.f32.mrf.mxu0
        %v1357 = vadd.f32 0.0, %v1356
        %v1358 = vpop.f32.mrf.mxu0
        %v1359 = vadd.f32 0.0, %v1358
        %v1360 = vpop.f32.mrf.mxu0
        %v1361 = vadd.f32 0.0, %v1360
        %1362 = vdwg.mxu0
        %1363 = vmatprep.subr.bf16.mxu0 %v923
        %1364 = vmatpush1.bf16.msra.mxu0 %v922
        %1365 = vmatprep.subr.bf16.mxu0 %v919
        %1366 = vmatpush1.bf16.msra.mxu0 %v918
        %1367 = vmatprep.subr.bf16.mxu0 %v915
        %1368 = vmatpush1.bf16.msra.mxu0 %v914
        %1369 = vmatprep.subr.bf16.mxu0 %v911
        %1370 = vmatpush1.bf16.msra.mxu0 %v910
        %1371 = vmatprep.subr.bf16.mxu0 %v907
        %1372 = vmatpush1.bf16.msra.mxu0 %v906
        %1373 = vmatprep.subr.bf16.mxu0 %v903
        %1374 = vmatpush1.bf16.msra.mxu0 %v902
        %1375 = vmatprep.subr.bf16.mxu0 %v899
        %1376 = vmatpush1.bf16.msra.mxu0 %v898
        %1377 = vmatprep.subr.bf16.mxu0 %v895
        %1378 = vmatpush1.bf16.msra.mxu0 %v894
        %1379 = vmatprep.subr.bf16.mxu0 0
        %1380 = vmatpush2.bf16.msra.mxu0 0
        %1381 = vmatprep.subr.bf16.mxu0 0
        %1382 = vmatpush2.bf16.msra.mxu0 0
        %1383 = vmatprep.subr.bf16.mxu0 0
        %1384 = vmatpush2.bf16.msra.mxu0 0
        %1385 = vmatprep.subr.bf16.mxu0 0
        %1386 = vmatpush2.bf16.msra.mxu0 0
        %1387 = vmatprep.subr.bf16.mxu0 0
        %1388 = vmatpush2.bf16.msra.mxu0 0
        %1389 = vmatprep.subr.bf16.mxu0 0
        %1390 = vmatpush2.bf16.msra.mxu0 0
        %1391 = vmatprep.subr.bf16.mxu0 0
        %1392 = vmatpush2.bf16.msra.mxu0 0
        %1393 = vmatprep.subr.bf16.mxu0 0
        %1394 = vmatpush2.bf16.msra.mxu0 0
        %1395 = vmatprep.mubr.bf16.mxu0 0
        %1396 = vmatmul.mubr.bf16.gmra.mxu0 %v1319
        %v1397 = vpop.f32.mrf.mxu0
        %v1398 = vadd.f32 0.0, %v1397
        %v1399 = vpop.f32.mrf.mxu0
        %v1400 = vadd.f32 0.0, %v1399
        %v1401 = vpop.f32.mrf.mxu0
        %v1402 = vadd.f32 0.0, %v1401
        %v1403 = vpop.f32.mrf.mxu0
        %v1404 = vadd.f32 0.0, %v1403
        %1405 = vdwg.mxu0
        %v1406 = vadd.f32 %v1311, %v1355
        %v1407 = vadd.f32 %v1312, %v1357
        %v1408 = vadd.f32 %v1313, %v1398
        %v1409 = vadd.f32 %v1314, %v1400
        %v1410 = vadd.f32 %v1315, %v1359
        %v1411 = vadd.f32 %v1316, %v1361
        %v1412 = vadd.f32 %v1317, %v1402
        %v1413 = vadd.f32 %v1318, %v1404
        %v1414 = vxor.u32 %v1406, 2147483648
        %v1415 = vxor.u32 %v1410, 2147483648
        %v1416 = vmul.f32 %v1414, 1.442695
        %v1417 = vpow.pop %v1416
        %v1418 = vmul.f32 %v1415, 1.442695
        %v1419 = vpow.pop %v1418
        %v1420 = vadd.f32 %v1417, 1.0
        %v1421 = vadd.f32 %v1419, 1.0
        %v1422 = vrcp.pop %v1420
        %v1423 = vmul.f32 1.0, %v1422
        %v1424 = vrcp.pop %v1421
        %v1425 = vmul.f32 1.0, %v1424
        %v1426 = vxor.u32 %v1407, 2147483648
        %v1427 = vxor.u32 %v1411, 2147483648
        %v1428 = vmul.f32 %v1426, 1.442695
        %v1429 = vpow.pop %v1428
        %v1430 = vmul.f32 %v1427, 1.442695
        %v1431 = vpow.pop %v1430
        %v1432 = vadd.f32 %v1429, 1.0
        %v1433 = vadd.f32 %v1431, 1.0
        %v1434 = vrcp.pop %v1432
        %v1435 = vmul.f32 1.0, %v1434
        %v1436 = vrcp.pop %v1433
        %v1437 = vmul.f32 1.0, %v1436
        %v1438 = vtanh.pop %v1408
        %v1439 = vtanh.pop %v1412
        %v1440 = vxor.u32 %v1409, 2147483648
        %v1441 = vxor.u32 %v1413, 2147483648
        %v1442 = vmul.f32 %v1440, 1.442695
        %v1443 = vpow.pop %v1442
        %v1444 = vmul.f32 %v1441, 1.442695
        %v1445 = vpow.pop %v1444
        %v1446 = vadd.f32 %v1443, 1.0
        %v1447 = vadd.f32 %v1445, 1.0
        %v1448 = vrcp.pop %v1446
        %v1449 = vmul.f32 1.0, %v1448
        %v1450 = vrcp.pop %v1447
        %v1451 = vmul.f32 1.0, %v1450
        %v1452 = vmul.f32 %v1435, %v1110
        %v1453 = vmul.f32 %v1437, %v1111
        %v1454 = vmul.f32 %v1423, %v1438
        %v1455 = vmul.f32 %v1425, %v1439
        %v1456 = vadd.f32 %v1452, %v1454
        %v1457 = vadd.f32 %v1453, %v1455
        %v1458 = vtanh.pop %v1456
        %v1459 = vtanh.pop %v1457
        %v1460 = vmul.f32 %v1449, %v1458
        %v1461 = vmul.f32 %v1451, %v1459
        %v1462 = vsel %vm1118, 1, 0
        %v1463 = vsel %vm1119, 1, 0
        %1464 = vset.pattern.permute.xlu0 0
        %1465 = vperm.xlu0 %1464, %v1462
        %v1466 = vpop.permute.xlu0 %1465
        %1467 = vset.pattern.permute.xlu0 0
        %1468 = vperm.xlu0 %1467, %v1463
        %v1469 = vpop.permute.xlu0 %1468
        %vm1470 = vcmp.eq.s32.totalorder %v1466, 1
        %vm1471 = vcmp.eq.s32.totalorder %v1469, 1
        %v1472 = vsel %vm1470, %v1460, %v1108
        %v1473 = vsel %vm1471, %v1461, %v1109
        %v1474 = vsel %vm1470, %v1456, %v1110
        %v1475 = vsel %vm1471, %v1457, %v1111
        %s1476 = sadd.s32 %s385, 2
        %s1477 = sadd.s32 %s387, 5
        %v1478 = vstv %s1476
        %vm1479 = vcmp.lt.s32.totalorder %v1478, %v307
        %vm1480 = vcmp.lt.s32.totalorder %v1478, %v308
        %v1481 = vstv %s1477
        %vm1482 = vcmp.lt.s32.totalorder %v1481, %v307
        %vm1483 = vcmp.lt.s32.totalorder %v1481, %v308
        %s1484 = scalar_lea.vmem %s251, 64 [#allocation6]
        %v1485 = vld [vmem:[%s1484] sm:$0xff]
        %v1486 = vld [vmem:[%s1484 + $0x8] sm:$0xff]
        %v1487 = vld [vmem:[%s1484 + $0x10] sm:$0xff]
        %v1488 = vld [vmem:[%s1484 + $0x18] sm:$0xff]
        %v1489 = vunpack.c.l.bf16 %v1485
        %v1490 = vunpack.c.h.bf16 %v1485
        %v1491 = vunpack.c.l.bf16 %v1486
        %v1492 = vunpack.c.h.bf16 %v1486
        %v1493 = vunpack.c.l.bf16 %v1487
        %v1494 = vunpack.c.h.bf16 %v1487
        %v1495 = vunpack.c.l.bf16 %v1488
        %v1496 = vunpack.c.h.bf16 %v1488
        %v1497 = vadd.f32 %v1489, %v411
        %v1498 = vadd.f32 %v1490, %v415
        %v1499 = vadd.f32 %v1491, %v419
        %v1500 = vadd.f32 %v1492, %v423
        %v1501 = vadd.f32 %v1493, %v411
        %v1502 = vadd.f32 %v1494, %v415
        %v1503 = vadd.f32 %v1495, %v419
        %v1504 = vadd.f32 %v1496, %v423
        %v1505 = vpack.c.bf16 %v1295, %v1294
        %1506 = vmatprep.subr.bf16.mxu0 %v562
        %1507 = vmatpush1.bf16.msra.mxu0 %v561
        %1508 = vmatprep.subr.bf16.mxu0 %v558
        %1509 = vmatpush1.bf16.msra.mxu0 %v557
        %1510 = vmatprep.subr.bf16.mxu0 %v554
        %1511 = vmatpush1.bf16.msra.mxu0 %v553
        %1512 = vmatprep.subr.bf16.mxu0 %v550
        %1513 = vmatpush1.bf16.msra.mxu0 %v549
        %1514 = vmatprep.subr.bf16.mxu0 %v546
        %1515 = vmatpush1.bf16.msra.mxu0 %v545
        %1516 = vmatprep.subr.bf16.mxu0 %v542
        %1517 = vmatpush1.bf16.msra.mxu0 %v541
        %1518 = vmatprep.subr.bf16.mxu0 %v538
        %1519 = vmatpush1.bf16.msra.mxu0 %v537
        %1520 = vmatprep.subr.bf16.mxu0 %v534
        %1521 = vmatpush1.bf16.msra.mxu0 %v533
        %1522 = vmatprep.subr.bf16.mxu0 0
        %1523 = vmatpush2.bf16.msra.mxu0 0
        %1524 = vmatprep.subr.bf16.mxu0 0
        %1525 = vmatpush2.bf16.msra.mxu0 0
        %1526 = vmatprep.subr.bf16.mxu0 0
        %1527 = vmatpush2.bf16.msra.mxu0 0
        %1528 = vmatprep.subr.bf16.mxu0 0
        %1529 = vmatpush2.bf16.msra.mxu0 0
        %1530 = vmatprep.subr.bf16.mxu0 0
        %1531 = vmatpush2.bf16.msra.mxu0 0
        %1532 = vmatprep.subr.bf16.mxu0 0
        %1533 = vmatpush2.bf16.msra.mxu0 0
        %1534 = vmatprep.subr.bf16.mxu0 0
        %1535 = vmatpush2.bf16.msra.mxu0 0
        %1536 = vmatprep.subr.bf16.mxu0 0
        %1537 = vmatpush2.bf16.msra.mxu0 0
        %1538 = vmatprep.mubr.bf16.mxu0 0
        %1539 = vmatmul.mubr.bf16.gmra.mxu0 %v1505
        %v1540 = vpop.f32.mrf.mxu0
        %v1541 = vadd.f32 0.0, %v1540
        %v1542 = vpop.f32.mrf.mxu0
        %v1543 = vadd.f32 0.0, %v1542
        %v1544 = vpop.f32.mrf.mxu0
        %v1545 = vadd.f32 0.0, %v1544
        %v1546 = vpop.f32.mrf.mxu0
        %v1547 = vadd.f32 0.0, %v1546
        %1548 = vdwg.mxu0
        %1549 = vmatprep.subr.bf16.mxu0 %v564
        %1550 = vmatpush1.bf16.msra.mxu0 %v563
        %1551 = vmatprep.subr.bf16.mxu0 %v560
        %1552 = vmatpush1.bf16.msra.mxu0 %v559
        %1553 = vmatprep.subr.bf16.mxu0 %v556
        %1554 = vmatpush1.bf16.msra.mxu0 %v555
        %1555 = vmatprep.subr.bf16.mxu0 %v552
        %1556 = vmatpush1.bf16.msra.mxu0 %v551
        %1557 = vmatprep.subr.bf16.mxu0 %v548
        %1558 = vmatpush1.bf16.msra.mxu0 %v547
        %1559 = vmatprep.subr.bf16.mxu0 %v544
        %1560 = vmatpush1.bf16.msra.mxu0 %v543
        %1561 = vmatprep.subr.bf16.mxu0 %v540
        %1562 = vmatpush1.bf16.msra.mxu0 %v539
        %1563 = vmatprep.subr.bf16.mxu0 %v536
        %1564 = vmatpush1.bf16.msra.mxu0 %v535
        %1565 = vmatprep.subr.bf16.mxu0 0
        %1566 = vmatpush2.bf16.msra.mxu0 0
        %1567 = vmatprep.subr.bf16.mxu0 0
        %1568 = vmatpush2.bf16.msra.mxu0 0
        %1569 = vmatprep.subr.bf16.mxu0 0
        %1570 = vmatpush2.bf16.msra.mxu0 0
        %1571 = vmatprep.subr.bf16.mxu0 0
        %1572 = vmatpush2.bf16.msra.mxu0 0
        %1573 = vmatprep.subr.bf16.mxu0 0
        %1574 = vmatpush2.bf16.msra.mxu0 0
        %1575 = vmatprep.subr.bf16.mxu0 0
        %1576 = vmatpush2.bf16.msra.mxu0 0
        %1577 = vmatprep.subr.bf16.mxu0 0
        %1578 = vmatpush2.bf16.msra.mxu0 0
        %1579 = vmatprep.subr.bf16.mxu0 0
        %1580 = vmatpush2.bf16.msra.mxu0 0
        %1581 = vmatprep.mubr.bf16.mxu0 0
        %1582 = vmatmul.mubr.bf16.gmra.mxu0 %v1505
        %v1583 = vpop.f32.mrf.mxu0
        %v1584 = vadd.f32 0.0, %v1583
        %v1585 = vpop.f32.mrf.mxu0
        %v1586 = vadd.f32 0.0, %v1585
        %v1587 = vpop.f32.mrf.mxu0
        %v1588 = vadd.f32 0.0, %v1587
        %v1589 = vpop.f32.mrf.mxu0
        %v1590 = vadd.f32 0.0, %v1589
        %1591 = vdwg.mxu0
        %v1592 = vadd.f32 %v1497, %v1541
        %v1593 = vadd.f32 %v1498, %v1543
        %v1594 = vadd.f32 %v1499, %v1584
        %v1595 = vadd.f32 %v1500, %v1586
        %v1596 = vadd.f32 %v1501, %v1545
        %v1597 = vadd.f32 %v1502, %v1547
        %v1598 = vadd.f32 %v1503, %v1588
        %v1599 = vadd.f32 %v1504, %v1590
        %v1600 = vxor.u32 %v1592, 2147483648
        %v1601 = vxor.u32 %v1596, 2147483648
        %v1602 = vmul.f32 %v1600, 1.442695
        %v1603 = vpow.pop %v1602
        %v1604 = vmul.f32 %v1601, 1.442695
        %v1605 = vpow.pop %v1604
        %v1606 = vadd.f32 %v1603, 1.0
        %v1607 = vadd.f32 %v1605, 1.0
        %v1608 = vrcp.pop %v1606
        %v1609 = vmul.f32 1.0, %v1608
        %v1610 = vrcp.pop %v1607
        %v1611 = vmul.f32 1.0, %v1610
        %v1612 = vxor.u32 %v1593, 2147483648
        %v1613 = vxor.u32 %v1597, 2147483648
        %v1614 = vmul.f32 %v1612, 1.442695
        %v1615 = vpow.pop %v1614
        %v1616 = vmul.f32 %v1613, 1.442695
        %v1617 = vpow.pop %v1616
        %v1618 = vadd.f32 %v1615, 1.0
        %v1619 = vadd.f32 %v1617, 1.0
        %v1620 = vrcp.pop %v1618
        %v1621 = vmul.f32 1.0, %v1620
        %v1622 = vrcp.pop %v1619
        %v1623 = vmul.f32 1.0, %v1622
        %v1624 = vtanh.pop %v1594
        %v1625 = vtanh.pop %v1598
        %v1626 = vxor.u32 %v1595, 2147483648
        %v1627 = vxor.u32 %v1599, 2147483648
        %v1628 = vmul.f32 %v1626, 1.442695
        %v1629 = vpow.pop %v1628
        %v1630 = vmul.f32 %v1627, 1.442695
        %v1631 = vpow.pop %v1630
        %v1632 = vadd.f32 %v1629, 1.0
        %v1633 = vadd.f32 %v1631, 1.0
        %v1634 = vrcp.pop %v1632
        %v1635 = vmul.f32 1.0, %v1634
        %v1636 = vrcp.pop %v1633
        %v1637 = vmul.f32 1.0, %v1636
        %v1638 = vmul.f32 %v1621, %v1296
        %v1639 = vmul.f32 %v1623, %v1297
        %v1640 = vmul.f32 %v1609, %v1624
        %v1641 = vmul.f32 %v1611, %v1625
        %v1642 = vadd.f32 %v1638, %v1640
        %v1643 = vadd.f32 %v1639, %v1641
        %v1644 = vtanh.pop %v1642
        %v1645 = vtanh.pop %v1643
        %v1646 = vmul.f32 %v1635, %v1644
        %v1647 = vmul.f32 %v1637, %v1645
        %v1648 = vsel %vm1479, 1, 0
        %v1649 = vsel %vm1480, 1, 0
        %1650 = vset.pattern.permute.xlu0 0
        %1651 = vperm.xlu0 %1650, %v1648
        %v1652 = vpop.permute.xlu0 %1651
        %1653 = vset.pattern.permute.xlu0 0
        %1654 = vperm.xlu0 %1653, %v1649
        %v1655 = vpop.permute.xlu0 %1654
        %vm1656 = vcmp.eq.s32.totalorder %v1652, 1
        %vm1657 = vcmp.eq.s32.totalorder %v1655, 1
        %v1658 = vsel %vm1656, %v1646, %v1294
        %v1659 = vsel %vm1657, %v1647, %v1295
        %v1660 = vsel %vm1656, %v1642, %v1296
        %v1661 = vsel %vm1657, %v1643, %v1297
        %s1662 = scalar_lea.vmem %s260, 160 [#allocation9]
        %v1663 = vld [vmem:[%s1662] sm:$0xff]
        %v1664 = vld [vmem:[%s1662 + $0x8] sm:$0xff]
        %v1665 = vld [vmem:[%s1662 + $0x10] sm:$0xff]
        %v1666 = vld [vmem:[%s1662 + $0x18] sm:$0xff]
        %v1667 = vunpack.c.l.bf16 %v1663
        %v1668 = vunpack.c.h.bf16 %v1663
        %v1669 = vunpack.c.l.bf16 %v1664
        %v1670 = vunpack.c.h.bf16 %v1664
        %v1671 = vunpack.c.l.bf16 %v1665
        %v1672 = vunpack.c.h.bf16 %v1665
        %v1673 = vunpack.c.l.bf16 %v1666
        %v1674 = vunpack.c.h.bf16 %v1666
        %v1675 = vadd.f32 %v1667, %v770
        %v1676 = vadd.f32 %v1668, %v774
        %v1677 = vadd.f32 %v1669, %v778
        %v1678 = vadd.f32 %v1670, %v782
        %v1679 = vadd.f32 %v1671, %v770
        %v1680 = vadd.f32 %v1672, %v774
        %v1681 = vadd.f32 %v1673, %v778
        %v1682 = vadd.f32 %v1674, %v782
        %v1683 = vpack.c.bf16 %v1473, %v1472
        %1684 = vmatprep.subr.bf16.mxu0 %v921
        %1685 = vmatpush1.bf16.msra.mxu0 %v920
        %1686 = vmatprep.subr.bf16.mxu0 %v917
        %1687 = vmatpush1.bf16.msra.mxu0 %v916
        %1688 = vmatprep.subr.bf16.mxu0 %v913
        %1689 = vmatpush1.bf16.msra.mxu0 %v912
        %1690 = vmatprep.subr.bf16.mxu0 %v909
        %1691 = vmatpush1.bf16.msra.mxu0 %v908
        %1692 = vmatprep.subr.bf16.mxu0 %v905
        %1693 = vmatpush1.bf16.msra.mxu0 %v904
        %1694 = vmatprep.subr.bf16.mxu0 %v901
        %1695 = vmatpush1.bf16.msra.mxu0 %v900
        %1696 = vmatprep.subr.bf16.mxu0 %v897
        %1697 = vmatpush1.bf16.msra.mxu0 %v896
        %1698 = vmatprep.subr.bf16.mxu0 %v893
        %1699 = vmatpush1.bf16.msra.mxu0 %v892
        %1700 = vmatprep.subr.bf16.mxu0 0
        %1701 = vmatpush2.bf16.msra.mxu0 0
        %1702 = vmatprep.subr.bf16.mxu0 0
        %1703 = vmatpush2.bf16.msra.mxu0 0
        %1704 = vmatprep.subr.bf16.mxu0 0
        %1705 = vmatpush2.bf16.msra.mxu0 0
        %1706 = vmatprep.subr.bf16.mxu0 0
        %1707 = vmatpush2.bf16.msra.mxu0 0
        %1708 = vmatprep.subr.bf16.mxu0 0
        %1709 = vmatpush2.bf16.msra.mxu0 0
        %1710 = vmatprep.subr.bf16.mxu0 0
        %1711 = vmatpush2.bf16.msra.mxu0 0
        %1712 = vmatprep.subr.bf16.mxu0 0
        %1713 = vmatpush2.bf16.msra.mxu0 0
        %1714 = vmatprep.subr.bf16.mxu0 0
        %1715 = vmatpush2.bf16.msra.mxu0 0
        %1716 = vmatprep.mubr.bf16.mxu0 0
        %1717 = vmatmul.mubr.bf16.gmra.mxu0 %v1683
        %v1718 = vpop.f32.mrf.mxu0
        %v1719 = vadd.f32 0.0, %v1718
        %v1720 = vpop.f32.mrf.mxu0
        %v1721 = vadd.f32 0.0, %v1720
        %v1722 = vpop.f32.mrf.mxu0
        %v1723 = vadd.f32 0.0, %v1722
        %v1724 = vpop.f32.mrf.mxu0
        %v1725 = vadd.f32 0.0, %v1724
        %1726 = vdwg.mxu0
        %1727 = vmatprep.subr.bf16.mxu0 %v923
        %1728 = vmatpush1.bf16.msra.mxu0 %v922
        %1729 = vmatprep.subr.bf16.mxu0 %v919
        %1730 = vmatpush1.bf16.msra.mxu0 %v918
        %1731 = vmatprep.subr.bf16.mxu0 %v915
        %1732 = vmatpush1.bf16.msra.mxu0 %v914
        %1733 = vmatprep.subr.bf16.mxu0 %v911
        %1734 = vmatpush1.bf16.msra.mxu0 %v910
        %1735 = vmatprep.subr.bf16.mxu0 %v907
        %1736 = vmatpush1.bf16.msra.mxu0 %v906
        %1737 = vmatprep.subr.bf16.mxu0 %v903
        %1738 = vmatpush1.bf16.msra.mxu0 %v902
        %1739 = vmatprep.subr.bf16.mxu0 %v899
        %1740 = vmatpush1.bf16.msra.mxu0 %v898
        %1741 = vmatprep.subr.bf16.mxu0 %v895
        %1742 = vmatpush1.bf16.msra.mxu0 %v894
        %1743 = vmatprep.subr.bf16.mxu0 0
        %1744 = vmatpush2.bf16.msra.mxu0 0
        %1745 = vmatprep.subr.bf16.mxu0 0
        %1746 = vmatpush2.bf16.msra.mxu0 0
        %1747 = vmatprep.subr.bf16.mxu0 0
        %1748 = vmatpush2.bf16.msra.mxu0 0
        %1749 = vmatprep.subr.bf16.mxu0 0
        %1750 = vmatpush2.bf16.msra.mxu0 0
        %1751 = vmatprep.subr.bf16.mxu0 0
        %1752 = vmatpush2.bf16.msra.mxu0 0
        %1753 = vmatprep.subr.bf16.mxu0 0
        %1754 = vmatpush2.bf16.msra.mxu0 0
        %1755 = vmatprep.subr.bf16.mxu0 0
        %1756 = vmatpush2.bf16.msra.mxu0 0
        %1757 = vmatprep.subr.bf16.mxu0 0
        %1758 = vmatpush2.bf16.msra.mxu0 0
        %1759 = vmatprep.mubr.bf16.mxu0 0
        %1760 = vmatmul.mubr.bf16.gmra.mxu0 %v1683
        %v1761 = vpop.f32.mrf.mxu0
        %v1762 = vadd.f32 0.0, %v1761
        %v1763 = vpop.f32.mrf.mxu0
        %v1764 = vadd.f32 0.0, %v1763
        %v1765 = vpop.f32.mrf.mxu0
        %v1766 = vadd.f32 0.0, %v1765
        %v1767 = vpop.f32.mrf.mxu0
        %v1768 = vadd.f32 0.0, %v1767
        %1769 = vdwg.mxu0
        %v1770 = vadd.f32 %v1675, %v1719
        %v1771 = vadd.f32 %v1676, %v1721
        %v1772 = vadd.f32 %v1677, %v1762
        %v1773 = vadd.f32 %v1678, %v1764
        %v1774 = vadd.f32 %v1679, %v1723
        %v1775 = vadd.f32 %v1680, %v1725
        %v1776 = vadd.f32 %v1681, %v1766
        %v1777 = vadd.f32 %v1682, %v1768
        %v1778 = vxor.u32 %v1770, 2147483648
        %v1779 = vxor.u32 %v1774, 2147483648
        %v1780 = vmul.f32 %v1778, 1.442695
        %v1781 = vpow.pop %v1780
        %v1782 = vmul.f32 %v1779, 1.442695
        %v1783 = vpow.pop %v1782
        %v1784 = vadd.f32 %v1781, 1.0
        %v1785 = vadd.f32 %v1783, 1.0
        %v1786 = vrcp.pop %v1784
        %v1787 = vmul.f32 1.0, %v1786
        %v1788 = vrcp.pop %v1785
        %v1789 = vmul.f32 1.0, %v1788
        %v1790 = vxor.u32 %v1771, 2147483648
        %v1791 = vxor.u32 %v1775, 2147483648
        %v1792 = vmul.f32 %v1790, 1.442695
        %v1793 = vpow.pop %v1792
        %v1794 = vmul.f32 %v1791, 1.442695
        %v1795 = vpow.pop %v1794
        %v1796 = vadd.f32 %v1793, 1.0
        %v1797 = vadd.f32 %v1795, 1.0
        %v1798 = vrcp.pop %v1796
        %v1799 = vmul.f32 1.0, %v1798
        %v1800 = vrcp.pop %v1797
        %v1801 = vmul.f32 1.0, %v1800
        %v1802 = vtanh.pop %v1772
        %v1803 = vtanh.pop %v1776
        %v1804 = vxor.u32 %v1773, 2147483648
        %v1805 = vxor.u32 %v1777, 2147483648
        %v1806 = vmul.f32 %v1804, 1.442695
        %v1807 = vpow.pop %v1806
        %v1808 = vmul.f32 %v1805, 1.442695
        %v1809 = vpow.pop %v1808
        %v1810 = vadd.f32 %v1807, 1.0
        %v1811 = vadd.f32 %v1809, 1.0
        %v1812 = vrcp.pop %v1810
        %v1813 = vmul.f32 1.0, %v1812
        %v1814 = vrcp.pop %v1811
        %v1815 = vmul.f32 1.0, %v1814
        %v1816 = vmul.f32 %v1799, %v1474
        %v1817 = vmul.f32 %v1801, %v1475
        %v1818 = vmul.f32 %v1787, %v1802
        %v1819 = vmul.f32 %v1789, %v1803
        %v1820 = vadd.f32 %v1816, %v1818
        %v1821 = vadd.f32 %v1817, %v1819
        %v1822 = vtanh.pop %v1820
        %v1823 = vtanh.pop %v1821
        %v1824 = vmul.f32 %v1813, %v1822
        %v1825 = vmul.f32 %v1815, %v1823
        %v1826 = vsel %vm1482, 1, 0
        %v1827 = vsel %vm1483, 1, 0
        %1828 = vset.pattern.permute.xlu0 0
        %1829 = vperm.xlu0 %1828, %v1826
        %v1830 = vpop.permute.xlu0 %1829
        %1831 = vset.pattern.permute.xlu0 0
        %1832 = vperm.xlu0 %1831, %v1827
        %v1833 = vpop.permute.xlu0 %1832
        %vm1834 = vcmp.eq.s32.totalorder %v1830, 1
        %vm1835 = vcmp.eq.s32.totalorder %v1833, 1
        %v1836 = vsel %vm1834, %v1824, %v1472
        %v1837 = vsel %vm1835, %v1825, %v1473
        %v1838 = vsel %vm1834, %v1820, %v1474
        %v1839 = vsel %vm1835, %v1821, %v1475
        %s1840 = sadd.s32 %s385, 3
        %s1841 = sadd.s32 %s387, 4
        %v1842 = vstv %s1840
        %vm1843 = vcmp.lt.s32.totalorder %v1842, %v307
        %vm1844 = vcmp.lt.s32.totalorder %v1842, %v308
        %v1845 = vstv %s1841
        %vm1846 = vcmp.lt.s32.totalorder %v1845, %v307
        %vm1847 = vcmp.lt.s32.totalorder %v1845, %v308
        %s1848 = scalar_lea.vmem %s251, 96 [#allocation6]
        %v1849 = vld [vmem:[%s1848] sm:$0xff]
        %v1850 = vld [vmem:[%s1848 + $0x8] sm:$0xff]
        %v1851 = vld [vmem:[%s1848 + $0x10] sm:$0xff]
        %v1852 = vld [vmem:[%s1848 + $0x18] sm:$0xff]
        %v1853 = vunpack.c.l.bf16 %v1849
        %v1854 = vunpack.c.h.bf16 %v1849
        %v1855 = vunpack.c.l.bf16 %v1850
        %v1856 = vunpack.c.h.bf16 %v1850
        %v1857 = vunpack.c.l.bf16 %v1851
        %v1858 = vunpack.c.h.bf16 %v1851
        %v1859 = vunpack.c.l.bf16 %v1852
        %v1860 = vunpack.c.h.bf16 %v1852
        %v1861 = vadd.f32 %v1853, %v411
        %v1862 = vadd.f32 %v1854, %v415
        %v1863 = vadd.f32 %v1855, %v419
        %v1864 = vadd.f32 %v1856, %v423
        %v1865 = vadd.f32 %v1857, %v411
        %v1866 = vadd.f32 %v1858, %v415
        %v1867 = vadd.f32 %v1859, %v419
        %v1868 = vadd.f32 %v1860, %v423
        %v1869 = vpack.c.bf16 %v1659, %v1658
        %1870 = vmatprep.subr.bf16.mxu0 %v562
        %1871 = vmatpush1.bf16.msra.mxu0 %v561
        %1872 = vmatprep.subr.bf16.mxu0 %v558
        %1873 = vmatpush1.bf16.msra.mxu0 %v557
        %1874 = vmatprep.subr.bf16.mxu0 %v554
        %1875 = vmatpush1.bf16.msra.mxu0 %v553
        %1876 = vmatprep.subr.bf16.mxu0 %v550
        %1877 = vmatpush1.bf16.msra.mxu0 %v549
        %1878 = vmatprep.subr.bf16.mxu0 %v546
        %1879 = vmatpush1.bf16.msra.mxu0 %v545
        %1880 = vmatprep.subr.bf16.mxu0 %v542
        %1881 = vmatpush1.bf16.msra.mxu0 %v541
        %1882 = vmatprep.subr.bf16.mxu0 %v538
        %1883 = vmatpush1.bf16.msra.mxu0 %v537
        %1884 = vmatprep.subr.bf16.mxu0 %v534
        %1885 = vmatpush1.bf16.msra.mxu0 %v533
        %1886 = vmatprep.subr.bf16.mxu0 0
        %1887 = vmatpush2.bf16.msra.mxu0 0
        %1888 = vmatprep.subr.bf16.mxu0 0
        %1889 = vmatpush2.bf16.msra.mxu0 0
        %1890 = vmatprep.subr.bf16.mxu0 0
        %1891 = vmatpush2.bf16.msra.mxu0 0
        %1892 = vmatprep.subr.bf16.mxu0 0
        %1893 = vmatpush2.bf16.msra.mxu0 0
        %1894 = vmatprep.subr.bf16.mxu0 0
        %1895 = vmatpush2.bf16.msra.mxu0 0
        %1896 = vmatprep.subr.bf16.mxu0 0
        %1897 = vmatpush2.bf16.msra.mxu0 0
        %1898 = vmatprep.subr.bf16.mxu0 0
        %1899 = vmatpush2.bf16.msra.mxu0 0
        %1900 = vmatprep.subr.bf16.mxu0 0
        %1901 = vmatpush2.bf16.msra.mxu0 0
        %1902 = vmatprep.mubr.bf16.mxu0 0
        %1903 = vmatmul.mubr.bf16.gmra.mxu0 %v1869
        %v1904 = vpop.f32.mrf.mxu0
        %v1905 = vadd.f32 0.0, %v1904
        %v1906 = vpop.f32.mrf.mxu0
        %v1907 = vadd.f32 0.0, %v1906
        %v1908 = vpop.f32.mrf.mxu0
        %v1909 = vadd.f32 0.0, %v1908
        %v1910 = vpop.f32.mrf.mxu0
        %v1911 = vadd.f32 0.0, %v1910
        %1912 = vdwg.mxu0
        %1913 = vmatprep.subr.bf16.mxu0 %v564
        %1914 = vmatpush1.bf16.msra.mxu0 %v563
        %1915 = vmatprep.subr.bf16.mxu0 %v560
        %1916 = vmatpush1.bf16.msra.mxu0 %v559
        %1917 = vmatprep.subr.bf16.mxu0 %v556
        %1918 = vmatpush1.bf16.msra.mxu0 %v555
        %1919 = vmatprep.subr.bf16.mxu0 %v552
        %1920 = vmatpush1.bf16.msra.mxu0 %v551
        %1921 = vmatprep.subr.bf16.mxu0 %v548
        %1922 = vmatpush1.bf16.msra.mxu0 %v547
        %1923 = vmatprep.subr.bf16.mxu0 %v544
        %1924 = vmatpush1.bf16.msra.mxu0 %v543
        %1925 = vmatprep.subr.bf16.mxu0 %v540
        %1926 = vmatpush1.bf16.msra.mxu0 %v539
        %1927 = vmatprep.subr.bf16.mxu0 %v536
        %1928 = vmatpush1.bf16.msra.mxu0 %v535
        %1929 = vmatprep.subr.bf16.mxu0 0
        %1930 = vmatpush2.bf16.msra.mxu0 0
        %1931 = vmatprep.subr.bf16.mxu0 0
        %1932 = vmatpush2.bf16.msra.mxu0 0
        %1933 = vmatprep.subr.bf16.mxu0 0
        %1934 = vmatpush2.bf16.msra.mxu0 0
        %1935 = vmatprep.subr.bf16.mxu0 0
        %1936 = vmatpush2.bf16.msra.mxu0 0
        %1937 = vmatprep.subr.bf16.mxu0 0
        %1938 = vmatpush2.bf16.msra.mxu0 0
        %1939 = vmatprep.subr.bf16.mxu0 0
        %1940 = vmatpush2.bf16.msra.mxu0 0
        %1941 = vmatprep.subr.bf16.mxu0 0
        %1942 = vmatpush2.bf16.msra.mxu0 0
        %1943 = vmatprep.subr.bf16.mxu0 0
        %1944 = vmatpush2.bf16.msra.mxu0 0
        %1945 = vmatprep.mubr.bf16.mxu0 0
        %1946 = vmatmul.mubr.bf16.gmra.mxu0 %v1869
        %v1947 = vpop.f32.mrf.mxu0
        %v1948 = vadd.f32 0.0, %v1947
        %v1949 = vpop.f32.mrf.mxu0
        %v1950 = vadd.f32 0.0, %v1949
        %v1951 = vpop.f32.mrf.mxu0
        %v1952 = vadd.f32 0.0, %v1951
        %v1953 = vpop.f32.mrf.mxu0
        %v1954 = vadd.f32 0.0, %v1953
        %1955 = vdwg.mxu0
        %v1956 = vadd.f32 %v1861, %v1905
        %v1957 = vadd.f32 %v1862, %v1907
        %v1958 = vadd.f32 %v1863, %v1948
        %v1959 = vadd.f32 %v1864, %v1950
        %v1960 = vadd.f32 %v1865, %v1909
        %v1961 = vadd.f32 %v1866, %v1911
        %v1962 = vadd.f32 %v1867, %v1952
        %v1963 = vadd.f32 %v1868, %v1954
        %v1964 = vxor.u32 %v1956, 2147483648
        %v1965 = vxor.u32 %v1960, 2147483648
        %v1966 = vmul.f32 %v1964, 1.442695
        %v1967 = vpow.pop %v1966
        %v1968 = vmul.f32 %v1965, 1.442695
        %v1969 = vpow.pop %v1968
        %v1970 = vadd.f32 %v1967, 1.0
        %v1971 = vadd.f32 %v1969, 1.0
        %v1972 = vrcp.pop %v1970
        %v1973 = vmul.f32 1.0, %v1972
        %v1974 = vrcp.pop %v1971
        %v1975 = vmul.f32 1.0, %v1974
        %v1976 = vxor.u32 %v1957, 2147483648
        %v1977 = vxor.u32 %v1961, 2147483648
        %v1978 = vmul.f32 %v1976, 1.442695
        %v1979 = vpow.pop %v1978
        %v1980 = vmul.f32 %v1977, 1.442695
        %v1981 = vpow.pop %v1980
        %v1982 = vadd.f32 %v1979, 1.0
        %v1983 = vadd.f32 %v1981, 1.0
        %v1984 = vrcp.pop %v1982
        %v1985 = vmul.f32 1.0, %v1984
        %v1986 = vrcp.pop %v1983
        %v1987 = vmul.f32 1.0, %v1986
        %v1988 = vtanh.pop %v1958
        %v1989 = vtanh.pop %v1962
        %v1990 = vxor.u32 %v1959, 2147483648
        %v1991 = vxor.u32 %v1963, 2147483648
        %v1992 = vmul.f32 %v1990, 1.442695
        %v1993 = vpow.pop %v1992
        %v1994 = vmul.f32 %v1991, 1.442695
        %v1995 = vpow.pop %v1994
        %v1996 = vadd.f32 %v1993, 1.0
        %v1997 = vadd.f32 %v1995, 1.0
        %v1998 = vrcp.pop %v1996
        %v1999 = vmul.f32 1.0, %v1998
        %v2000 = vrcp.pop %v1997
        %v2001 = vmul.f32 1.0, %v2000
        %v2002 = vmul.f32 %v1985, %v1660
        %v2003 = vmul.f32 %v1987, %v1661
        %v2004 = vmul.f32 %v1973, %v1988
        %v2005 = vmul.f32 %v1975, %v1989
        %v2006 = vadd.f32 %v2002, %v2004
        %v2007 = vadd.f32 %v2003, %v2005
        %v2008 = vtanh.pop %v2006
        %v2009 = vtanh.pop %v2007
        %v2010 = vmul.f32 %v1999, %v2008
        %v2011 = vmul.f32 %v2001, %v2009
        %v2012 = vsel %vm1843, 1, 0
        %v2013 = vsel %vm1844, 1, 0
        %2014 = vset.pattern.permute.xlu0 0
        %2015 = vperm.xlu0 %2014, %v2012
        %v2016 = vpop.permute.xlu0 %2015
        %2017 = vset.pattern.permute.xlu0 0
        %2018 = vperm.xlu0 %2017, %v2013
        %v2019 = vpop.permute.xlu0 %2018
        %vm2020 = vcmp.eq.s32.totalorder %v2016, 1
        %vm2021 = vcmp.eq.s32.totalorder %v2019, 1
        %v2022 = vsel %vm2020, %v2010, %v1658
        %v2023 = vsel %vm2021, %v2011, %v1659
        %v2024 = vsel %vm2020, %v2006, %v1660
        %v2025 = vsel %vm2021, %v2007, %v1661
        %s2026 = scalar_lea.vmem %s260, 128 [#allocation9]
        %v2027 = vld [vmem:[%s2026] sm:$0xff]
        %v2028 = vld [vmem:[%s2026 + $0x8] sm:$0xff]
        %v2029 = vld [vmem:[%s2026 + $0x10] sm:$0xff]
        %v2030 = vld [vmem:[%s2026 + $0x18] sm:$0xff]
        %v2031 = vunpack.c.l.bf16 %v2027
        %v2032 = vunpack.c.h.bf16 %v2027
        %v2033 = vunpack.c.l.bf16 %v2028
        %v2034 = vunpack.c.h.bf16 %v2028
        %v2035 = vunpack.c.l.bf16 %v2029
        %v2036 = vunpack.c.h.bf16 %v2029
        %v2037 = vunpack.c.l.bf16 %v2030
        %v2038 = vunpack.c.h.bf16 %v2030
        %v2039 = vadd.f32 %v2031, %v770
        %v2040 = vadd.f32 %v2032, %v774
        %v2041 = vadd.f32 %v2033, %v778
        %v2042 = vadd.f32 %v2034, %v782
        %v2043 = vadd.f32 %v2035, %v770
        %v2044 = vadd.f32 %v2036, %v774
        %v2045 = vadd.f32 %v2037, %v778
        %v2046 = vadd.f32 %v2038, %v782
        %v2047 = vpack.c.bf16 %v1837, %v1836
        %2048 = vmatprep.subr.bf16.mxu0 %v921
        %2049 = vmatpush1.bf16.msra.mxu0 %v920
        %2050 = vmatprep.subr.bf16.mxu0 %v917
        %2051 = vmatpush1.bf16.msra.mxu0 %v916
        %2052 = vmatprep.subr.bf16.mxu0 %v913
        %2053 = vmatpush1.bf16.msra.mxu0 %v912
        %2054 = vmatprep.subr.bf16.mxu0 %v909
        %2055 = vmatpush1.bf16.msra.mxu0 %v908
        %2056 = vmatprep.subr.bf16.mxu0 %v905
        %2057 = vmatpush1.bf16.msra.mxu0 %v904
        %2058 = vmatprep.subr.bf16.mxu0 %v901
        %2059 = vmatpush1.bf16.msra.mxu0 %v900
        %2060 = vmatprep.subr.bf16.mxu0 %v897
        %2061 = vmatpush1.bf16.msra.mxu0 %v896
        %2062 = vmatprep.subr.bf16.mxu0 %v893
        %2063 = vmatpush1.bf16.msra.mxu0 %v892
        %2064 = vmatprep.subr.bf16.mxu0 0
        %2065 = vmatpush2.bf16.msra.mxu0 0
        %2066 = vmatprep.subr.bf16.mxu0 0
        %2067 = vmatpush2.bf16.msra.mxu0 0
        %2068 = vmatprep.subr.bf16.mxu0 0
        %2069 = vmatpush2.bf16.msra.mxu0 0
        %2070 = vmatprep.subr.bf16.mxu0 0
        %2071 = vmatpush2.bf16.msra.mxu0 0
        %2072 = vmatprep.subr.bf16.mxu0 0
        %2073 = vmatpush2.bf16.msra.mxu0 0
        %2074 = vmatprep.subr.bf16.mxu0 0
        %2075 = vmatpush2.bf16.msra.mxu0 0
        %2076 = vmatprep.subr.bf16.mxu0 0
        %2077 = vmatpush2.bf16.msra.mxu0 0
        %2078 = vmatprep.subr.bf16.mxu0 0
        %2079 = vmatpush2.bf16.msra.mxu0 0
        %2080 = vmatprep.mubr.bf16.mxu0 0
        %2081 = vmatmul.mubr.bf16.gmra.mxu0 %v2047
        %v2082 = vpop.f32.mrf.mxu0
        %v2083 = vadd.f32 0.0, %v2082
        %v2084 = vpop.f32.mrf.mxu0
        %v2085 = vadd.f32 0.0, %v2084
        %v2086 = vpop.f32.mrf.mxu0
        %v2087 = vadd.f32 0.0, %v2086
        %v2088 = vpop.f32.mrf.mxu0
        %v2089 = vadd.f32 0.0, %v2088
        %2090 = vdwg.mxu0
        %2091 = vmatprep.subr.bf16.mxu0 %v923
        %2092 = vmatpush1.bf16.msra.mxu0 %v922
        %2093 = vmatprep.subr.bf16.mxu0 %v919
        %2094 = vmatpush1.bf16.msra.mxu0 %v918
        %2095 = vmatprep.subr.bf16.mxu0 %v915
        %2096 = vmatpush1.bf16.msra.mxu0 %v914
        %2097 = vmatprep.subr.bf16.mxu0 %v911
        %2098 = vmatpush1.bf16.msra.mxu0 %v910
        %2099 = vmatprep.subr.bf16.mxu0 %v907
        %2100 = vmatpush1.bf16.msra.mxu0 %v906
        %2101 = vmatprep.subr.bf16.mxu0 %v903
        %2102 = vmatpush1.bf16.msra.mxu0 %v902
        %2103 = vmatprep.subr.bf16.mxu0 %v899
        %2104 = vmatpush1.bf16.msra.mxu0 %v898
        %2105 = vmatprep.subr.bf16.mxu0 %v895
        %2106 = vmatpush1.bf16.msra.mxu0 %v894
        %2107 = vmatprep.subr.bf16.mxu0 0
        %2108 = vmatpush2.bf16.msra.mxu0 0
        %2109 = vmatprep.subr.bf16.mxu0 0
        %2110 = vmatpush2.bf16.msra.mxu0 0
        %2111 = vmatprep.subr.bf16.mxu0 0
        %2112 = vmatpush2.bf16.msra.mxu0 0
        %2113 = vmatprep.subr.bf16.mxu0 0
        %2114 = vmatpush2.bf16.msra.mxu0 0
        %2115 = vmatprep.subr.bf16.mxu0 0
        %2116 = vmatpush2.bf16.msra.mxu0 0
        %2117 = vmatprep.subr.bf16.mxu0 0
        %2118 = vmatpush2.bf16.msra.mxu0 0
        %2119 = vmatprep.subr.bf16.mxu0 0
        %2120 = vmatpush2.bf16.msra.mxu0 0
        %2121 = vmatprep.subr.bf16.mxu0 0
        %2122 = vmatpush2.bf16.msra.mxu0 0
        %2123 = vmatprep.mubr.bf16.mxu0 0
        %2124 = vmatmul.mubr.bf16.gmra.mxu0 %v2047
        %v2125 = vpop.f32.mrf.mxu0
        %v2126 = vadd.f32 0.0, %v2125
        %v2127 = vpop.f32.mrf.mxu0
        %v2128 = vadd.f32 0.0, %v2127
        %v2129 = vpop.f32.mrf.mxu0
        %v2130 = vadd.f32 0.0, %v2129
        %v2131 = vpop.f32.mrf.mxu0
        %v2132 = vadd.f32 0.0, %v2131
        %2133 = vdwg.mxu0
        %v2134 = vadd.f32 %v2039, %v2083
        %v2135 = vadd.f32 %v2040, %v2085
        %v2136 = vadd.f32 %v2041, %v2126
        %v2137 = vadd.f32 %v2042, %v2128
        %v2138 = vadd.f32 %v2043, %v2087
        %v2139 = vadd.f32 %v2044, %v2089
        %v2140 = vadd.f32 %v2045, %v2130
        %v2141 = vadd.f32 %v2046, %v2132
        %v2142 = vxor.u32 %v2134, 2147483648
        %v2143 = vxor.u32 %v2138, 2147483648
        %v2144 = vmul.f32 %v2142, 1.442695
        %v2145 = vpow.pop %v2144
        %v2146 = vmul.f32 %v2143, 1.442695
        %v2147 = vpow.pop %v2146
        %v2148 = vadd.f32 %v2145, 1.0
        %v2149 = vadd.f32 %v2147, 1.0
        %v2150 = vrcp.pop %v2148
        %v2151 = vmul.f32 1.0, %v2150
        %v2152 = vrcp.pop %v2149
        %v2153 = vmul.f32 1.0, %v2152
        %v2154 = vxor.u32 %v2135, 2147483648
        %v2155 = vxor.u32 %v2139, 2147483648
        %v2156 = vmul.f32 %v2154, 1.442695
        %v2157 = vpow.pop %v2156
        %v2158 = vmul.f32 %v2155, 1.442695
        %v2159 = vpow.pop %v2158
        %v2160 = vadd.f32 %v2157, 1.0
        %v2161 = vadd.f32 %v2159, 1.0
        %v2162 = vrcp.pop %v2160
        %v2163 = vmul.f32 1.0, %v2162
        %v2164 = vrcp.pop %v2161
        %v2165 = vmul.f32 1.0, %v2164
        %v2166 = vtanh.pop %v2136
        %v2167 = vtanh.pop %v2140
        %v2168 = vxor.u32 %v2137, 2147483648
        %v2169 = vxor.u32 %v2141, 2147483648
        %v2170 = vmul.f32 %v2168, 1.442695
        %v2171 = vpow.pop %v2170
        %v2172 = vmul.f32 %v2169, 1.442695
        %v2173 = vpow.pop %v2172
        %v2174 = vadd.f32 %v2171, 1.0
        %v2175 = vadd.f32 %v2173, 1.0
        %v2176 = vrcp.pop %v2174
        %v2177 = vmul.f32 1.0, %v2176
        %v2178 = vrcp.pop %v2175
        %v2179 = vmul.f32 1.0, %v2178
        %v2180 = vmul.f32 %v2163, %v1838
        %v2181 = vmul.f32 %v2165, %v1839
        %v2182 = vmul.f32 %v2151, %v2166
        %v2183 = vmul.f32 %v2153, %v2167
        %v2184 = vadd.f32 %v2180, %v2182
        %v2185 = vadd.f32 %v2181, %v2183
        %v2186 = vtanh.pop %v2184
        %v2187 = vtanh.pop %v2185
        %v2188 = vmul.f32 %v2177, %v2186
        %v2189 = vmul.f32 %v2179, %v2187
        %v2190 = vsel %vm1846, 1, 0
        %v2191 = vsel %vm1847, 1, 0
        %2192 = vset.pattern.permute.xlu0 0
        %2193 = vperm.xlu0 %2192, %v2190
        %v2194 = vpop.permute.xlu0 %2193
        %2195 = vset.pattern.permute.xlu0 0
        %2196 = vperm.xlu0 %2195, %v2191
        %v2197 = vpop.permute.xlu0 %2196
        %vm2198 = vcmp.eq.s32.totalorder %v2194, 1
        %vm2199 = vcmp.eq.s32.totalorder %v2197, 1
        %v2200 = vsel %vm2198, %v2188, %v1836
        %v2201 = vsel %vm2199, %v2189, %v1837
        %v2202 = vsel %vm2198, %v2184, %v1838
        %v2203 = vsel %vm2199, %v2185, %v1839
        %s2204 = sadd.s32 %s385, 4
        %s2205 = sadd.s32 %s387, 3
        %v2206 = vstv %s2204
        %vm2207 = vcmp.lt.s32.totalorder %v2206, %v307
        %vm2208 = vcmp.lt.s32.totalorder %v2206, %v308
        %v2209 = vstv %s2205
        %vm2210 = vcmp.lt.s32.totalorder %v2209, %v307
        %vm2211 = vcmp.lt.s32.totalorder %v2209, %v308
        %s2212 = scalar_lea.vmem %s251, 128 [#allocation6]
        %v2213 = vld [vmem:[%s2212] sm:$0xff]
        %v2214 = vld [vmem:[%s2212 + $0x8] sm:$0xff]
        %v2215 = vld [vmem:[%s2212 + $0x10] sm:$0xff]
        %v2216 = vld [vmem:[%s2212 + $0x18] sm:$0xff]
        %v2217 = vunpack.c.l.bf16 %v2213
        %v2218 = vunpack.c.h.bf16 %v2213
        %v2219 = vunpack.c.l.bf16 %v2214
        %v2220 = vunpack.c.h.bf16 %v2214
        %v2221 = vunpack.c.l.bf16 %v2215
        %v2222 = vunpack.c.h.bf16 %v2215
        %v2223 = vunpack.c.l.bf16 %v2216
        %v2224 = vunpack.c.h.bf16 %v2216
        %v2225 = vadd.f32 %v2217, %v411
        %v2226 = vadd.f32 %v2218, %v415
        %v2227 = vadd.f32 %v2219, %v419
        %v2228 = vadd.f32 %v2220, %v423
        %v2229 = vadd.f32 %v2221, %v411
        %v2230 = vadd.f32 %v2222, %v415
        %v2231 = vadd.f32 %v2223, %v419
        %v2232 = vadd.f32 %v2224, %v423
        %v2233 = vpack.c.bf16 %v2023, %v2022
        %2234 = vmatprep.subr.bf16.mxu0 %v562
        %2235 = vmatpush1.bf16.msra.mxu0 %v561
        %2236 = vmatprep.subr.bf16.mxu0 %v558
        %2237 = vmatpush1.bf16.msra.mxu0 %v557
        %2238 = vmatprep.subr.bf16.mxu0 %v554
        %2239 = vmatpush1.bf16.msra.mxu0 %v553
        %2240 = vmatprep.subr.bf16.mxu0 %v550
        %2241 = vmatpush1.bf16.msra.mxu0 %v549
        %2242 = vmatprep.subr.bf16.mxu0 %v546
        %2243 = vmatpush1.bf16.msra.mxu0 %v545
        %2244 = vmatprep.subr.bf16.mxu0 %v542
        %2245 = vmatpush1.bf16.msra.mxu0 %v541
        %2246 = vmatprep.subr.bf16.mxu0 %v538
        %2247 = vmatpush1.bf16.msra.mxu0 %v537
        %2248 = vmatprep.subr.bf16.mxu0 %v534
        %2249 = vmatpush1.bf16.msra.mxu0 %v533
        %2250 = vmatprep.subr.bf16.mxu0 0
        %2251 = vmatpush2.bf16.msra.mxu0 0
        %2252 = vmatprep.subr.bf16.mxu0 0
        %2253 = vmatpush2.bf16.msra.mxu0 0
        %2254 = vmatprep.subr.bf16.mxu0 0
        %2255 = vmatpush2.bf16.msra.mxu0 0
        %2256 = vmatprep.subr.bf16.mxu0 0
        %2257 = vmatpush2.bf16.msra.mxu0 0
        %2258 = vmatprep.subr.bf16.mxu0 0
        %2259 = vmatpush2.bf16.msra.mxu0 0
        %2260 = vmatprep.subr.bf16.mxu0 0
        %2261 = vmatpush2.bf16.msra.mxu0 0
        %2262 = vmatprep.subr.bf16.mxu0 0
        %2263 = vmatpush2.bf16.msra.mxu0 0
        %2264 = vmatprep.subr.bf16.mxu0 0
        %2265 = vmatpush2.bf16.msra.mxu0 0
        %2266 = vmatprep.mubr.bf16.mxu0 0
        %2267 = vmatmul.mubr.bf16.gmra.mxu0 %v2233
        %v2268 = vpop.f32.mrf.mxu0
        %v2269 = vadd.f32 0.0, %v2268
        %v2270 = vpop.f32.mrf.mxu0
        %v2271 = vadd.f32 0.0, %v2270
        %v2272 = vpop.f32.mrf.mxu0
        %v2273 = vadd.f32 0.0, %v2272
        %v2274 = vpop.f32.mrf.mxu0
        %v2275 = vadd.f32 0.0, %v2274
        %2276 = vdwg.mxu0
        %2277 = vmatprep.subr.bf16.mxu0 %v564
        %2278 = vmatpush1.bf16.msra.mxu0 %v563
        %2279 = vmatprep.subr.bf16.mxu0 %v560
        %2280 = vmatpush1.bf16.msra.mxu0 %v559
        %2281 = vmatprep.subr.bf16.mxu0 %v556
        %2282 = vmatpush1.bf16.msra.mxu0 %v555
        %2283 = vmatprep.subr.bf16.mxu0 %v552
        %2284 = vmatpush1.bf16.msra.mxu0 %v551
        %2285 = vmatprep.subr.bf16.mxu0 %v548
        %2286 = vmatpush1.bf16.msra.mxu0 %v547
        %2287 = vmatprep.subr.bf16.mxu0 %v544
        %2288 = vmatpush1.bf16.msra.mxu0 %v543
        %2289 = vmatprep.subr.bf16.mxu0 %v540
        %2290 = vmatpush1.bf16.msra.mxu0 %v539
        %2291 = vmatprep.subr.bf16.mxu0 %v536
        %2292 = vmatpush1.bf16.msra.mxu0 %v535
        %2293 = vmatprep.subr.bf16.mxu0 0
        %2294 = vmatpush2.bf16.msra.mxu0 0
        %2295 = vmatprep.subr.bf16.mxu0 0
        %2296 = vmatpush2.bf16.msra.mxu0 0
        %2297 = vmatprep.subr.bf16.mxu0 0
        %2298 = vmatpush2.bf16.msra.mxu0 0
        %2299 = vmatprep.subr.bf16.mxu0 0
        %2300 = vmatpush2.bf16.msra.mxu0 0
        %2301 = vmatprep.subr.bf16.mxu0 0
        %2302 = vmatpush2.bf16.msra.mxu0 0
        %2303 = vmatprep.subr.bf16.mxu0 0
        %2304 = vmatpush2.bf16.msra.mxu0 0
        %2305 = vmatprep.subr.bf16.mxu0 0
        %2306 = vmatpush2.bf16.msra.mxu0 0
        %2307 = vmatprep.subr.bf16.mxu0 0
        %2308 = vmatpush2.bf16.msra.mxu0 0
        %2309 = vmatprep.mubr.bf16.mxu0 0
        %2310 = vmatmul.mubr.bf16.gmra.mxu0 %v2233
        %v2311 = vpop.f32.mrf.mxu0
        %v2312 = vadd.f32 0.0, %v2311
        %v2313 = vpop.f32.mrf.mxu0
        %v2314 = vadd.f32 0.0, %v2313
        %v2315 = vpop.f32.mrf.mxu0
        %v2316 = vadd.f32 0.0, %v2315
        %v2317 = vpop.f32.mrf.mxu0
        %v2318 = vadd.f32 0.0, %v2317
        %2319 = vdwg.mxu0
        %v2320 = vadd.f32 %v2225, %v2269
        %v2321 = vadd.f32 %v2226, %v2271
        %v2322 = vadd.f32 %v2227, %v2312
        %v2323 = vadd.f32 %v2228, %v2314
        %v2324 = vadd.f32 %v2229, %v2273
        %v2325 = vadd.f32 %v2230, %v2275
        %v2326 = vadd.f32 %v2231, %v2316
        %v2327 = vadd.f32 %v2232, %v2318
        %v2328 = vxor.u32 %v2320, 2147483648
        %v2329 = vxor.u32 %v2324, 2147483648
        %v2330 = vmul.f32 %v2328, 1.442695
        %v2331 = vpow.pop %v2330
        %v2332 = vmul.f32 %v2329, 1.442695
        %v2333 = vpow.pop %v2332
        %v2334 = vadd.f32 %v2331, 1.0
        %v2335 = vadd.f32 %v2333, 1.0
        %v2336 = vrcp.pop %v2334
        %v2337 = vmul.f32 1.0, %v2336
        %v2338 = vrcp.pop %v2335
        %v2339 = vmul.f32 1.0, %v2338
        %v2340 = vxor.u32 %v2321, 2147483648
        %v2341 = vxor.u32 %v2325, 2147483648
        %v2342 = vmul.f32 %v2340, 1.442695
        %v2343 = vpow.pop %v2342
        %v2344 = vmul.f32 %v2341, 1.442695
        %v2345 = vpow.pop %v2344
        %v2346 = vadd.f32 %v2343, 1.0
        %v2347 = vadd.f32 %v2345, 1.0
        %v2348 = vrcp.pop %v2346
        %v2349 = vmul.f32 1.0, %v2348
        %v2350 = vrcp.pop %v2347
        %v2351 = vmul.f32 1.0, %v2350
        %v2352 = vtanh.pop %v2322
        %v2353 = vtanh.pop %v2326
        %v2354 = vxor.u32 %v2323, 2147483648
        %v2355 = vxor.u32 %v2327, 2147483648
        %v2356 = vmul.f32 %v2354, 1.442695
        %v2357 = vpow.pop %v2356
        %v2358 = vmul.f32 %v2355, 1.442695
        %v2359 = vpow.pop %v2358
        %v2360 = vadd.f32 %v2357, 1.0
        %v2361 = vadd.f32 %v2359, 1.0
        %v2362 = vrcp.pop %v2360
        %v2363 = vmul.f32 1.0, %v2362
        %v2364 = vrcp.pop %v2361
        %v2365 = vmul.f32 1.0, %v2364
        %v2366 = vmul.f32 %v2349, %v2024
        %v2367 = vmul.f32 %v2351, %v2025
        %v2368 = vmul.f32 %v2337, %v2352
        %v2369 = vmul.f32 %v2339, %v2353
        %v2370 = vadd.f32 %v2366, %v2368
        %v2371 = vadd.f32 %v2367, %v2369
        %v2372 = vtanh.pop %v2370
        %v2373 = vtanh.pop %v2371
        %v2374 = vmul.f32 %v2363, %v2372
        %v2375 = vmul.f32 %v2365, %v2373
        %v2376 = vsel %vm2207, 1, 0
        %v2377 = vsel %vm2208, 1, 0
        %2378 = vset.pattern.permute.xlu0 0
        %2379 = vperm.xlu0 %2378, %v2376
        %v2380 = vpop.permute.xlu0 %2379
        %2381 = vset.pattern.permute.xlu0 0
        %2382 = vperm.xlu0 %2381, %v2377
        %v2383 = vpop.permute.xlu0 %2382
        %vm2384 = vcmp.eq.s32.totalorder %v2380, 1
        %vm2385 = vcmp.eq.s32.totalorder %v2383, 1
        %v2386 = vsel %vm2384, %v2374, %v2022
        %v2387 = vsel %vm2385, %v2375, %v2023
        %v2388 = vsel %vm2384, %v2370, %v2024
        %v2389 = vsel %vm2385, %v2371, %v2025
        %s2390 = scalar_lea.vmem %s260, 96 [#allocation9]
        %v2391 = vld [vmem:[%s2390] sm:$0xff]
        %v2392 = vld [vmem:[%s2390 + $0x8] sm:$0xff]
        %v2393 = vld [vmem:[%s2390 + $0x10] sm:$0xff]
        %v2394 = vld [vmem:[%s2390 + $0x18] sm:$0xff]
        %v2395 = vunpack.c.l.bf16 %v2391
        %v2396 = vunpack.c.h.bf16 %v2391
        %v2397 = vunpack.c.l.bf16 %v2392
        %v2398 = vunpack.c.h.bf16 %v2392
        %v2399 = vunpack.c.l.bf16 %v2393
        %v2400 = vunpack.c.h.bf16 %v2393
        %v2401 = vunpack.c.l.bf16 %v2394
        %v2402 = vunpack.c.h.bf16 %v2394
        %v2403 = vadd.f32 %v2395, %v770
        %v2404 = vadd.f32 %v2396, %v774
        %v2405 = vadd.f32 %v2397, %v778
        %v2406 = vadd.f32 %v2398, %v782
        %v2407 = vadd.f32 %v2399, %v770
        %v2408 = vadd.f32 %v2400, %v774
        %v2409 = vadd.f32 %v2401, %v778
        %v2410 = vadd.f32 %v2402, %v782
        %v2411 = vpack.c.bf16 %v2201, %v2200
        %2412 = vmatprep.subr.bf16.mxu0 %v921
        %2413 = vmatpush1.bf16.msra.mxu0 %v920
        %2414 = vmatprep.subr.bf16.mxu0 %v917
        %2415 = vmatpush1.bf16.msra.mxu0 %v916
        %2416 = vmatprep.subr.bf16.mxu0 %v913
        %2417 = vmatpush1.bf16.msra.mxu0 %v912
        %2418 = vmatprep.subr.bf16.mxu0 %v909
        %2419 = vmatpush1.bf16.msra.mxu0 %v908
        %2420 = vmatprep.subr.bf16.mxu0 %v905
        %2421 = vmatpush1.bf16.msra.mxu0 %v904
        %2422 = vmatprep.subr.bf16.mxu0 %v901
        %2423 = vmatpush1.bf16.msra.mxu0 %v900
        %2424 = vmatprep.subr.bf16.mxu0 %v897
        %2425 = vmatpush1.bf16.msra.mxu0 %v896
        %2426 = vmatprep.subr.bf16.mxu0 %v893
        %2427 = vmatpush1.bf16.msra.mxu0 %v892
        %2428 = vmatprep.subr.bf16.mxu0 0
        %2429 = vmatpush2.bf16.msra.mxu0 0
        %2430 = vmatprep.subr.bf16.mxu0 0
        %2431 = vmatpush2.bf16.msra.mxu0 0
        %2432 = vmatprep.subr.bf16.mxu0 0
        %2433 = vmatpush2.bf16.msra.mxu0 0
        %2434 = vmatprep.subr.bf16.mxu0 0
        %2435 = vmatpush2.bf16.msra.mxu0 0
        %2436 = vmatprep.subr.bf16.mxu0 0
        %2437 = vmatpush2.bf16.msra.mxu0 0
        %2438 = vmatprep.subr.bf16.mxu0 0
        %2439 = vmatpush2.bf16.msra.mxu0 0
        %2440 = vmatprep.subr.bf16.mxu0 0
        %2441 = vmatpush2.bf16.msra.mxu0 0
        %2442 = vmatprep.subr.bf16.mxu0 0
        %2443 = vmatpush2.bf16.msra.mxu0 0
        %2444 = vmatprep.mubr.bf16.mxu0 0
        %2445 = vmatmul.mubr.bf16.gmra.mxu0 %v2411
        %v2446 = vpop.f32.mrf.mxu0
        %v2447 = vadd.f32 0.0, %v2446
        %v2448 = vpop.f32.mrf.mxu0
        %v2449 = vadd.f32 0.0, %v2448
        %v2450 = vpop.f32.mrf.mxu0
        %v2451 = vadd.f32 0.0, %v2450
        %v2452 = vpop.f32.mrf.mxu0
        %v2453 = vadd.f32 0.0, %v2452
        %2454 = vdwg.mxu0
        %2455 = vmatprep.subr.bf16.mxu0 %v923
        %2456 = vmatpush1.bf16.msra.mxu0 %v922
        %2457 = vmatprep.subr.bf16.mxu0 %v919
        %2458 = vmatpush1.bf16.msra.mxu0 %v918
        %2459 = vmatprep.subr.bf16.mxu0 %v915
        %2460 = vmatpush1.bf16.msra.mxu0 %v914
        %2461 = vmatprep.subr.bf16.mxu0 %v911
        %2462 = vmatpush1.bf16.msra.mxu0 %v910
        %2463 = vmatprep.subr.bf16.mxu0 %v907
        %2464 = vmatpush1.bf16.msra.mxu0 %v906
        %2465 = vmatprep.subr.bf16.mxu0 %v903
        %2466 = vmatpush1.bf16.msra.mxu0 %v902
        %2467 = vmatprep.subr.bf16.mxu0 %v899
        %2468 = vmatpush1.bf16.msra.mxu0 %v898
        %2469 = vmatprep.subr.bf16.mxu0 %v895
        %2470 = vmatpush1.bf16.msra.mxu0 %v894
        %2471 = vmatprep.subr.bf16.mxu0 0
        %2472 = vmatpush2.bf16.msra.mxu0 0
        %2473 = vmatprep.subr.bf16.mxu0 0
        %2474 = vmatpush2.bf16.msra.mxu0 0
        %2475 = vmatprep.subr.bf16.mxu0 0
        %2476 = vmatpush2.bf16.msra.mxu0 0
        %2477 = vmatprep.subr.bf16.mxu0 0
        %2478 = vmatpush2.bf16.msra.mxu0 0
        %2479 = vmatprep.subr.bf16.mxu0 0
        %2480 = vmatpush2.bf16.msra.mxu0 0
        %2481 = vmatprep.subr.bf16.mxu0 0
        %2482 = vmatpush2.bf16.msra.mxu0 0
        %2483 = vmatprep.subr.bf16.mxu0 0
        %2484 = vmatpush2.bf16.msra.mxu0 0
        %2485 = vmatprep.subr.bf16.mxu0 0
        %2486 = vmatpush2.bf16.msra.mxu0 0
        %2487 = vmatprep.mubr.bf16.mxu0 0
        %2488 = vmatmul.mubr.bf16.gmra.mxu0 %v2411
        %v2489 = vpop.f32.mrf.mxu0
        %v2490 = vadd.f32 0.0, %v2489
        %v2491 = vpop.f32.mrf.mxu0
        %v2492 = vadd.f32 0.0, %v2491
        %v2493 = vpop.f32.mrf.mxu0
        %v2494 = vadd.f32 0.0, %v2493
        %v2495 = vpop.f32.mrf.mxu0
        %v2496 = vadd.f32 0.0, %v2495
        %2497 = vdwg.mxu0
        %v2498 = vadd.f32 %v2403, %v2447
        %v2499 = vadd.f32 %v2404, %v2449
        %v2500 = vadd.f32 %v2405, %v2490
        %v2501 = vadd.f32 %v2406, %v2492
        %v2502 = vadd.f32 %v2407, %v2451
        %v2503 = vadd.f32 %v2408, %v2453
        %v2504 = vadd.f32 %v2409, %v2494
        %v2505 = vadd.f32 %v2410, %v2496
        %v2506 = vxor.u32 %v2498, 2147483648
        %v2507 = vxor.u32 %v2502, 2147483648
        %v2508 = vmul.f32 %v2506, 1.442695
        %v2509 = vpow.pop %v2508
        %v2510 = vmul.f32 %v2507, 1.442695
        %v2511 = vpow.pop %v2510
        %v2512 = vadd.f32 %v2509, 1.0
        %v2513 = vadd.f32 %v2511, 1.0
        %v2514 = vrcp.pop %v2512
        %v2515 = vmul.f32 1.0, %v2514
        %v2516 = vrcp.pop %v2513
        %v2517 = vmul.f32 1.0, %v2516
        %v2518 = vxor.u32 %v2499, 2147483648
        %v2519 = vxor.u32 %v2503, 2147483648
        %v2520 = vmul.f32 %v2518, 1.442695
        %v2521 = vpow.pop %v2520
        %v2522 = vmul.f32 %v2519, 1.442695
        %v2523 = vpow.pop %v2522
        %v2524 = vadd.f32 %v2521, 1.0
        %v2525 = vadd.f32 %v2523, 1.0
        %v2526 = vrcp.pop %v2524
        %v2527 = vmul.f32 1.0, %v2526
        %v2528 = vrcp.pop %v2525
        %v2529 = vmul.f32 1.0, %v2528
        %v2530 = vtanh.pop %v2500
        %v2531 = vtanh.pop %v2504
        %v2532 = vxor.u32 %v2501, 2147483648
        %v2533 = vxor.u32 %v2505, 2147483648
        %v2534 = vmul.f32 %v2532, 1.442695
        %v2535 = vpow.pop %v2534
        %v2536 = vmul.f32 %v2533, 1.442695
        %v2537 = vpow.pop %v2536
        %v2538 = vadd.f32 %v2535, 1.0
        %v2539 = vadd.f32 %v2537, 1.0
        %v2540 = vrcp.pop %v2538
        %v2541 = vmul.f32 1.0, %v2540
        %v2542 = vrcp.pop %v2539
        %v2543 = vmul.f32 1.0, %v2542
        %v2544 = vmul.f32 %v2527, %v2202
        %v2545 = vmul.f32 %v2529, %v2203
        %v2546 = vmul.f32 %v2515, %v2530
        %v2547 = vmul.f32 %v2517, %v2531
        %v2548 = vadd.f32 %v2544, %v2546
        %v2549 = vadd.f32 %v2545, %v2547
        %v2550 = vtanh.pop %v2548
        %v2551 = vtanh.pop %v2549
        %v2552 = vmul.f32 %v2541, %v2550
        %v2553 = vmul.f32 %v2543, %v2551
        %v2554 = vsel %vm2210, 1, 0
        %v2555 = vsel %vm2211, 1, 0
        %2556 = vset.pattern.permute.xlu0 0
        %2557 = vperm.xlu0 %2556, %v2554
        %v2558 = vpop.permute.xlu0 %2557
        %2559 = vset.pattern.permute.xlu0 0
        %2560 = vperm.xlu0 %2559, %v2555
        %v2561 = vpop.permute.xlu0 %2560
        %vm2562 = vcmp.eq.s32.totalorder %v2558, 1
        %vm2563 = vcmp.eq.s32.totalorder %v2561, 1
        %v2564 = vsel %vm2562, %v2552, %v2200
        %v2565 = vsel %vm2563, %v2553, %v2201
        %v2566 = vsel %vm2562, %v2548, %v2202
        %v2567 = vsel %vm2563, %v2549, %v2203
        %s2568 = sadd.s32 %s385, 5
        %s2569 = sadd.s32 %s387, 2
        %v2570 = vstv %s2568
        %vm2571 = vcmp.lt.s32.totalorder %v2570, %v307
        %vm2572 = vcmp.lt.s32.totalorder %v2570, %v308
        %v2573 = vstv %s2569
        %vm2574 = vcmp.lt.s32.totalorder %v2573, %v307
        %vm2575 = vcmp.lt.s32.totalorder %v2573, %v308
        %s2576 = scalar_lea.vmem %s251, 160 [#allocation6]
        %v2577 = vld [vmem:[%s2576] sm:$0xff]
        %v2578 = vld [vmem:[%s2576 + $0x8] sm:$0xff]
        %v2579 = vld [vmem:[%s2576 + $0x10] sm:$0xff]
        %v2580 = vld [vmem:[%s2576 + $0x18] sm:$0xff]
        %v2581 = vunpack.c.l.bf16 %v2577
        %v2582 = vunpack.c.h.bf16 %v2577
        %v2583 = vunpack.c.l.bf16 %v2578
        %v2584 = vunpack.c.h.bf16 %v2578
        %v2585 = vunpack.c.l.bf16 %v2579
        %v2586 = vunpack.c.h.bf16 %v2579
        %v2587 = vunpack.c.l.bf16 %v2580
        %v2588 = vunpack.c.h.bf16 %v2580
        %v2589 = vadd.f32 %v2581, %v411
        %v2590 = vadd.f32 %v2582, %v415
        %v2591 = vadd.f32 %v2583, %v419
        %v2592 = vadd.f32 %v2584, %v423
        %v2593 = vadd.f32 %v2585, %v411
        %v2594 = vadd.f32 %v2586, %v415
        %v2595 = vadd.f32 %v2587, %v419
        %v2596 = vadd.f32 %v2588, %v423
        %v2597 = vpack.c.bf16 %v2387, %v2386
        %2598 = vmatprep.subr.bf16.mxu0 %v562
        %2599 = vmatpush1.bf16.msra.mxu0 %v561
        %2600 = vmatprep.subr.bf16.mxu0 %v558
        %2601 = vmatpush1.bf16.msra.mxu0 %v557
        %2602 = vmatprep.subr.bf16.mxu0 %v554
        %2603 = vmatpush1.bf16.msra.mxu0 %v553
        %2604 = vmatprep.subr.bf16.mxu0 %v550
        %2605 = vmatpush1.bf16.msra.mxu0 %v549
        %2606 = vmatprep.subr.bf16.mxu0 %v546
        %2607 = vmatpush1.bf16.msra.mxu0 %v545
        %2608 = vmatprep.subr.bf16.mxu0 %v542
        %2609 = vmatpush1.bf16.msra.mxu0 %v541
        %2610 = vmatprep.subr.bf16.mxu0 %v538
        %2611 = vmatpush1.bf16.msra.mxu0 %v537
        %2612 = vmatprep.subr.bf16.mxu0 %v534
        %2613 = vmatpush1.bf16.msra.mxu0 %v533
        %2614 = vmatprep.subr.bf16.mxu0 0
        %2615 = vmatpush2.bf16.msra.mxu0 0
        %2616 = vmatprep.subr.bf16.mxu0 0
        %2617 = vmatpush2.bf16.msra.mxu0 0
        %2618 = vmatprep.subr.bf16.mxu0 0
        %2619 = vmatpush2.bf16.msra.mxu0 0
        %2620 = vmatprep.subr.bf16.mxu0 0
        %2621 = vmatpush2.bf16.msra.mxu0 0
        %2622 = vmatprep.subr.bf16.mxu0 0
        %2623 = vmatpush2.bf16.msra.mxu0 0
        %2624 = vmatprep.subr.bf16.mxu0 0
        %2625 = vmatpush2.bf16.msra.mxu0 0
        %2626 = vmatprep.subr.bf16.mxu0 0
        %2627 = vmatpush2.bf16.msra.mxu0 0
        %2628 = vmatprep.subr.bf16.mxu0 0
        %2629 = vmatpush2.bf16.msra.mxu0 0
        %2630 = vmatprep.mubr.bf16.mxu0 0
        %2631 = vmatmul.mubr.bf16.gmra.mxu0 %v2597
        %v2632 = vpop.f32.mrf.mxu0
        %v2633 = vadd.f32 0.0, %v2632
        %v2634 = vpop.f32.mrf.mxu0
        %v2635 = vadd.f32 0.0, %v2634
        %v2636 = vpop.f32.mrf.mxu0
        %v2637 = vadd.f32 0.0, %v2636
        %v2638 = vpop.f32.mrf.mxu0
        %v2639 = vadd.f32 0.0, %v2638
        %2640 = vdwg.mxu0
        %2641 = vmatprep.subr.bf16.mxu0 %v564
        %2642 = vmatpush1.bf16.msra.mxu0 %v563
        %2643 = vmatprep.subr.bf16.mxu0 %v560
        %2644 = vmatpush1.bf16.msra.mxu0 %v559
        %2645 = vmatprep.subr.bf16.mxu0 %v556
        %2646 = vmatpush1.bf16.msra.mxu0 %v555
        %2647 = vmatprep.subr.bf16.mxu0 %v552
        %2648 = vmatpush1.bf16.msra.mxu0 %v551
        %2649 = vmatprep.subr.bf16.mxu0 %v548
        %2650 = vmatpush1.bf16.msra.mxu0 %v547
        %2651 = vmatprep.subr.bf16.mxu0 %v544
        %2652 = vmatpush1.bf16.msra.mxu0 %v543
        %2653 = vmatprep.subr.bf16.mxu0 %v540
        %2654 = vmatpush1.bf16.msra.mxu0 %v539
        %2655 = vmatprep.subr.bf16.mxu0 %v536
        %2656 = vmatpush1.bf16.msra.mxu0 %v535
        %2657 = vmatprep.subr.bf16.mxu0 0
        %2658 = vmatpush2.bf16.msra.mxu0 0
        %2659 = vmatprep.subr.bf16.mxu0 0
        %2660 = vmatpush2.bf16.msra.mxu0 0
        %2661 = vmatprep.subr.bf16.mxu0 0
        %2662 = vmatpush2.bf16.msra.mxu0 0
        %2663 = vmatprep.subr.bf16.mxu0 0
        %2664 = vmatpush2.bf16.msra.mxu0 0
        %2665 = vmatprep.subr.bf16.mxu0 0
        %2666 = vmatpush2.bf16.msra.mxu0 0
        %2667 = vmatprep.subr.bf16.mxu0 0
        %2668 = vmatpush2.bf16.msra.mxu0 0
        %2669 = vmatprep.subr.bf16.mxu0 0
        %2670 = vmatpush2.bf16.msra.mxu0 0
        %2671 = vmatprep.subr.bf16.mxu0 0
        %2672 = vmatpush2.bf16.msra.mxu0 0
        %2673 = vmatprep.mubr.bf16.mxu0 0
        %2674 = vmatmul.mubr.bf16.gmra.mxu0 %v2597
        %v2675 = vpop.f32.mrf.mxu0
        %v2676 = vadd.f32 0.0, %v2675
        %v2677 = vpop.f32.mrf.mxu0
        %v2678 = vadd.f32 0.0, %v2677
        %v2679 = vpop.f32.mrf.mxu0
        %v2680 = vadd.f32 0.0, %v2679
        %v2681 = vpop.f32.mrf.mxu0
        %v2682 = vadd.f32 0.0, %v2681
        %2683 = vdwg.mxu0
        %v2684 = vadd.f32 %v2589, %v2633
        %v2685 = vadd.f32 %v2590, %v2635
        %v2686 = vadd.f32 %v2591, %v2676
        %v2687 = vadd.f32 %v2592, %v2678
        %v2688 = vadd.f32 %v2593, %v2637
        %v2689 = vadd.f32 %v2594, %v2639
        %v2690 = vadd.f32 %v2595, %v2680
        %v2691 = vadd.f32 %v2596, %v2682
        %v2692 = vxor.u32 %v2684, 2147483648
        %v2693 = vxor.u32 %v2688, 2147483648
        %v2694 = vmul.f32 %v2692, 1.442695
        %v2695 = vpow.pop %v2694
        %v2696 = vmul.f32 %v2693, 1.442695
        %v2697 = vpow.pop %v2696
        %v2698 = vadd.f32 %v2695, 1.0
        %v2699 = vadd.f32 %v2697, 1.0
        %v2700 = vrcp.pop %v2698
        %v2701 = vmul.f32 1.0, %v2700
        %v2702 = vrcp.pop %v2699
        %v2703 = vmul.f32 1.0, %v2702
        %v2704 = vxor.u32 %v2685, 2147483648
        %v2705 = vxor.u32 %v2689, 2147483648
        %v2706 = vmul.f32 %v2704, 1.442695
        %v2707 = vpow.pop %v2706
        %v2708 = vmul.f32 %v2705, 1.442695
        %v2709 = vpow.pop %v2708
        %v2710 = vadd.f32 %v2707, 1.0
        %v2711 = vadd.f32 %v2709, 1.0
        %v2712 = vrcp.pop %v2710
        %v2713 = vmul.f32 1.0, %v2712
        %v2714 = vrcp.pop %v2711
        %v2715 = vmul.f32 1.0, %v2714
        %v2716 = vtanh.pop %v2686
        %v2717 = vtanh.pop %v2690
        %v2718 = vxor.u32 %v2687, 2147483648
        %v2719 = vxor.u32 %v2691, 2147483648
        %v2720 = vmul.f32 %v2718, 1.442695
        %v2721 = vpow.pop %v2720
        %v2722 = vmul.f32 %v2719, 1.442695
        %v2723 = vpow.pop %v2722
        %v2724 = vadd.f32 %v2721, 1.0
        %v2725 = vadd.f32 %v2723, 1.0
        %v2726 = vrcp.pop %v2724
        %v2727 = vmul.f32 1.0, %v2726
        %v2728 = vrcp.pop %v2725
        %v2729 = vmul.f32 1.0, %v2728
        %v2730 = vmul.f32 %v2713, %v2388
        %v2731 = vmul.f32 %v2715, %v2389
        %v2732 = vmul.f32 %v2701, %v2716
        %v2733 = vmul.f32 %v2703, %v2717
        %v2734 = vadd.f32 %v2730, %v2732
        %v2735 = vadd.f32 %v2731, %v2733
        %v2736 = vtanh.pop %v2734
        %v2737 = vtanh.pop %v2735
        %v2738 = vmul.f32 %v2727, %v2736
        %v2739 = vmul.f32 %v2729, %v2737
        %v2740 = vsel %vm2571, 1, 0
        %v2741 = vsel %vm2572, 1, 0
        %2742 = vset.pattern.permute.xlu0 0
        %2743 = vperm.xlu0 %2742, %v2740
        %v2744 = vpop.permute.xlu0 %2743
        %2745 = vset.pattern.permute.xlu0 0
        %2746 = vperm.xlu0 %2745, %v2741
        %v2747 = vpop.permute.xlu0 %2746
        %vm2748 = vcmp.eq.s32.totalorder %v2744, 1
        %vm2749 = vcmp.eq.s32.totalorder %v2747, 1
        %v2750 = vsel %vm2748, %v2738, %v2386
        %v2751 = vsel %vm2749, %v2739, %v2387
        %v2752 = vsel %vm2748, %v2734, %v2388
        %v2753 = vsel %vm2749, %v2735, %v2389
        %s2754 = scalar_lea.vmem %s260, 64 [#allocation9]
        %v2755 = vld [vmem:[%s2754] sm:$0xff]
        %v2756 = vld [vmem:[%s2754 + $0x8] sm:$0xff]
        %v2757 = vld [vmem:[%s2754 + $0x10] sm:$0xff]
        %v2758 = vld [vmem:[%s2754 + $0x18] sm:$0xff]
        %v2759 = vunpack.c.l.bf16 %v2755
        %v2760 = vunpack.c.h.bf16 %v2755
        %v2761 = vunpack.c.l.bf16 %v2756
        %v2762 = vunpack.c.h.bf16 %v2756
        %v2763 = vunpack.c.l.bf16 %v2757
        %v2764 = vunpack.c.h.bf16 %v2757
        %v2765 = vunpack.c.l.bf16 %v2758
        %v2766 = vunpack.c.h.bf16 %v2758
        %v2767 = vadd.f32 %v2759, %v770
        %v2768 = vadd.f32 %v2760, %v774
        %v2769 = vadd.f32 %v2761, %v778
        %v2770 = vadd.f32 %v2762, %v782
        %v2771 = vadd.f32 %v2763, %v770
        %v2772 = vadd.f32 %v2764, %v774
        %v2773 = vadd.f32 %v2765, %v778
        %v2774 = vadd.f32 %v2766, %v782
        %v2775 = vpack.c.bf16 %v2565, %v2564
        %2776 = vmatprep.subr.bf16.mxu0 %v921
        %2777 = vmatpush1.bf16.msra.mxu0 %v920
        %2778 = vmatprep.subr.bf16.mxu0 %v917
        %2779 = vmatpush1.bf16.msra.mxu0 %v916
        %2780 = vmatprep.subr.bf16.mxu0 %v913
        %2781 = vmatpush1.bf16.msra.mxu0 %v912
        %2782 = vmatprep.subr.bf16.mxu0 %v909
        %2783 = vmatpush1.bf16.msra.mxu0 %v908
        %2784 = vmatprep.subr.bf16.mxu0 %v905
        %2785 = vmatpush1.bf16.msra.mxu0 %v904
        %2786 = vmatprep.subr.bf16.mxu0 %v901
        %2787 = vmatpush1.bf16.msra.mxu0 %v900
        %2788 = vmatprep.subr.bf16.mxu0 %v897
        %2789 = vmatpush1.bf16.msra.mxu0 %v896
        %2790 = vmatprep.subr.bf16.mxu0 %v893
        %2791 = vmatpush1.bf16.msra.mxu0 %v892
        %2792 = vmatprep.subr.bf16.mxu0 0
        %2793 = vmatpush2.bf16.msra.mxu0 0
        %2794 = vmatprep.subr.bf16.mxu0 0
        %2795 = vmatpush2.bf16.msra.mxu0 0
        %2796 = vmatprep.subr.bf16.mxu0 0
        %2797 = vmatpush2.bf16.msra.mxu0 0
        %2798 = vmatprep.subr.bf16.mxu0 0
        %2799 = vmatpush2.bf16.msra.mxu0 0
        %2800 = vmatprep.subr.bf16.mxu0 0
        %2801 = vmatpush2.bf16.msra.mxu0 0
        %2802 = vmatprep.subr.bf16.mxu0 0
        %2803 = vmatpush2.bf16.msra.mxu0 0
        %2804 = vmatprep.subr.bf16.mxu0 0
        %2805 = vmatpush2.bf16.msra.mxu0 0
        %2806 = vmatprep.subr.bf16.mxu0 0
        %2807 = vmatpush2.bf16.msra.mxu0 0
        %2808 = vmatprep.mubr.bf16.mxu0 0
        %2809 = vmatmul.mubr.bf16.gmra.mxu0 %v2775
        %v2810 = vpop.f32.mrf.mxu0
        %v2811 = vadd.f32 0.0, %v2810
        %v2812 = vpop.f32.mrf.mxu0
        %v2813 = vadd.f32 0.0, %v2812
        %v2814 = vpop.f32.mrf.mxu0
        %v2815 = vadd.f32 0.0, %v2814
        %v2816 = vpop.f32.mrf.mxu0
        %v2817 = vadd.f32 0.0, %v2816
        %2818 = vdwg.mxu0
        %2819 = vmatprep.subr.bf16.mxu0 %v923
        %2820 = vmatpush1.bf16.msra.mxu0 %v922
        %2821 = vmatprep.subr.bf16.mxu0 %v919
        %2822 = vmatpush1.bf16.msra.mxu0 %v918
        %2823 = vmatprep.subr.bf16.mxu0 %v915
        %2824 = vmatpush1.bf16.msra.mxu0 %v914
        %2825 = vmatprep.subr.bf16.mxu0 %v911
        %2826 = vmatpush1.bf16.msra.mxu0 %v910
        %2827 = vmatprep.subr.bf16.mxu0 %v907
        %2828 = vmatpush1.bf16.msra.mxu0 %v906
        %2829 = vmatprep.subr.bf16.mxu0 %v903
        %2830 = vmatpush1.bf16.msra.mxu0 %v902
        %2831 = vmatprep.subr.bf16.mxu0 %v899
        %2832 = vmatpush1.bf16.msra.mxu0 %v898
        %2833 = vmatprep.subr.bf16.mxu0 %v895
        %2834 = vmatpush1.bf16.msra.mxu0 %v894
        %2835 = vmatprep.subr.bf16.mxu0 0
        %2836 = vmatpush2.bf16.msra.mxu0 0
        %2837 = vmatprep.subr.bf16.mxu0 0
        %2838 = vmatpush2.bf16.msra.mxu0 0
        %2839 = vmatprep.subr.bf16.mxu0 0
        %2840 = vmatpush2.bf16.msra.mxu0 0
        %2841 = vmatprep.subr.bf16.mxu0 0
        %2842 = vmatpush2.bf16.msra.mxu0 0
        %2843 = vmatprep.subr.bf16.mxu0 0
        %2844 = vmatpush2.bf16.msra.mxu0 0
        %2845 = vmatprep.subr.bf16.mxu0 0
        %2846 = vmatpush2.bf16.msra.mxu0 0
        %2847 = vmatprep.subr.bf16.mxu0 0
        %2848 = vmatpush2.bf16.msra.mxu0 0
        %2849 = vmatprep.subr.bf16.mxu0 0
        %2850 = vmatpush2.bf16.msra.mxu0 0
        %2851 = vmatprep.mubr.bf16.mxu0 0
        %2852 = vmatmul.mubr.bf16.gmra.mxu0 %v2775
        %v2853 = vpop.f32.mrf.mxu0
        %v2854 = vadd.f32 0.0, %v2853
        %v2855 = vpop.f32.mrf.mxu0
        %v2856 = vadd.f32 0.0, %v2855
        %v2857 = vpop.f32.mrf.mxu0
        %v2858 = vadd.f32 0.0, %v2857
        %v2859 = vpop.f32.mrf.mxu0
        %v2860 = vadd.f32 0.0, %v2859
        %2861 = vdwg.mxu0
        %v2862 = vadd.f32 %v2767, %v2811
        %v2863 = vadd.f32 %v2768, %v2813
        %v2864 = vadd.f32 %v2769, %v2854
        %v2865 = vadd.f32 %v2770, %v2856
        %v2866 = vadd.f32 %v2771, %v2815
        %v2867 = vadd.f32 %v2772, %v2817
        %v2868 = vadd.f32 %v2773, %v2858
        %v2869 = vadd.f32 %v2774, %v2860
        %v2870 = vxor.u32 %v2862, 2147483648
        %v2871 = vxor.u32 %v2866, 2147483648
        %v2872 = vmul.f32 %v2870, 1.442695
        %v2873 = vpow.pop %v2872
        %v2874 = vmul.f32 %v2871, 1.442695
        %v2875 = vpow.pop %v2874
        %v2876 = vadd.f32 %v2873, 1.0
        %v2877 = vadd.f32 %v2875, 1.0
        %v2878 = vrcp.pop %v2876
        %v2879 = vmul.f32 1.0, %v2878
        %v2880 = vrcp.pop %v2877
        %v2881 = vmul.f32 1.0, %v2880
        %v2882 = vxor.u32 %v2863, 2147483648
        %v2883 = vxor.u32 %v2867, 2147483648
        %v2884 = vmul.f32 %v2882, 1.442695
        %v2885 = vpow.pop %v2884
        %v2886 = vmul.f32 %v2883, 1.442695
        %v2887 = vpow.pop %v2886
        %v2888 = vadd.f32 %v2885, 1.0
        %v2889 = vadd.f32 %v2887, 1.0
        %v2890 = vrcp.pop %v2888
        %v2891 = vmul.f32 1.0, %v2890
        %v2892 = vrcp.pop %v2889
        %v2893 = vmul.f32 1.0, %v2892
        %v2894 = vtanh.pop %v2864
        %v2895 = vtanh.pop %v2868
        %v2896 = vxor.u32 %v2865, 2147483648
        %v2897 = vxor.u32 %v2869, 2147483648
        %v2898 = vmul.f32 %v2896, 1.442695
        %v2899 = vpow.pop %v2898
        %v2900 = vmul.f32 %v2897, 1.442695
        %v2901 = vpow.pop %v2900
        %v2902 = vadd.f32 %v2899, 1.0
        %v2903 = vadd.f32 %v2901, 1.0
        %v2904 = vrcp.pop %v2902
        %v2905 = vmul.f32 1.0, %v2904
        %v2906 = vrcp.pop %v2903
        %v2907 = vmul.f32 1.0, %v2906
        %v2908 = vmul.f32 %v2891, %v2566
        %v2909 = vmul.f32 %v2893, %v2567
        %v2910 = vmul.f32 %v2879, %v2894
        %v2911 = vmul.f32 %v2881, %v2895
        %v2912 = vadd.f32 %v2908, %v2910
        %v2913 = vadd.f32 %v2909, %v2911
        %v2914 = vtanh.pop %v2912
        %v2915 = vtanh.pop %v2913
        %v2916 = vmul.f32 %v2905, %v2914
        %v2917 = vmul.f32 %v2907, %v2915
        %v2918 = vsel %vm2574, 1, 0
        %v2919 = vsel %vm2575, 1, 0
        %2920 = vset.pattern.permute.xlu0 0
        %2921 = vperm.xlu0 %2920, %v2918
        %v2922 = vpop.permute.xlu0 %2921
        %2923 = vset.pattern.permute.xlu0 0
        %2924 = vperm.xlu0 %2923, %v2919
        %v2925 = vpop.permute.xlu0 %2924
        %vm2926 = vcmp.eq.s32.totalorder %v2922, 1
        %vm2927 = vcmp.eq.s32.totalorder %v2925, 1
        %v2928 = vsel %vm2926, %v2916, %v2564
        %v2929 = vsel %vm2927, %v2917, %v2565
        %v2930 = vsel %vm2926, %v2912, %v2566
        %v2931 = vsel %vm2927, %v2913, %v2567
        %s2932 = sadd.s32 %s385, 6
        %s2933 = sadd.s32 %s387, 1
        %v2934 = vstv %s2932
        %vm2935 = vcmp.lt.s32.totalorder %v2934, %v307
        %vm2936 = vcmp.lt.s32.totalorder %v2934, %v308
        %v2937 = vstv %s2933
        %vm2938 = vcmp.lt.s32.totalorder %v2937, %v307
        %vm2939 = vcmp.lt.s32.totalorder %v2937, %v308
        %s2940 = scalar_lea.vmem %s251, 192 [#allocation6]
        %v2941 = vld [vmem:[%s2940] sm:$0xff]
        %v2942 = vld [vmem:[%s2940 + $0x8] sm:$0xff]
        %v2943 = vld [vmem:[%s2940 + $0x10] sm:$0xff]
        %v2944 = vld [vmem:[%s2940 + $0x18] sm:$0xff]
        %v2945 = vunpack.c.l.bf16 %v2941
        %v2946 = vunpack.c.h.bf16 %v2941
        %v2947 = vunpack.c.l.bf16 %v2942
        %v2948 = vunpack.c.h.bf16 %v2942
        %v2949 = vunpack.c.l.bf16 %v2943
        %v2950 = vunpack.c.h.bf16 %v2943
        %v2951 = vunpack.c.l.bf16 %v2944
        %v2952 = vunpack.c.h.bf16 %v2944
        %v2953 = vadd.f32 %v2945, %v411
        %v2954 = vadd.f32 %v2946, %v415
        %v2955 = vadd.f32 %v2947, %v419
        %v2956 = vadd.f32 %v2948, %v423
        %v2957 = vadd.f32 %v2949, %v411
        %v2958 = vadd.f32 %v2950, %v415
        %v2959 = vadd.f32 %v2951, %v419
        %v2960 = vadd.f32 %v2952, %v423
        %v2961 = vpack.c.bf16 %v2751, %v2750
        %2962 = vmatprep.subr.bf16.mxu0 %v562
        %2963 = vmatpush1.bf16.msra.mxu0 %v561
        %2964 = vmatprep.subr.bf16.mxu0 %v558
        %2965 = vmatpush1.bf16.msra.mxu0 %v557
        %2966 = vmatprep.subr.bf16.mxu0 %v554
        %2967 = vmatpush1.bf16.msra.mxu0 %v553
        %2968 = vmatprep.subr.bf16.mxu0 %v550
        %2969 = vmatpush1.bf16.msra.mxu0 %v549
        %2970 = vmatprep.subr.bf16.mxu0 %v546
        %2971 = vmatpush1.bf16.msra.mxu0 %v545
        %2972 = vmatprep.subr.bf16.mxu0 %v542
        %2973 = vmatpush1.bf16.msra.mxu0 %v541
        %2974 = vmatprep.subr.bf16.mxu0 %v538
        %2975 = vmatpush1.bf16.msra.mxu0 %v537
        %2976 = vmatprep.subr.bf16.mxu0 %v534
        %2977 = vmatpush1.bf16.msra.mxu0 %v533
        %2978 = vmatprep.subr.bf16.mxu0 0
        %2979 = vmatpush2.bf16.msra.mxu0 0
        %2980 = vmatprep.subr.bf16.mxu0 0
        %2981 = vmatpush2.bf16.msra.mxu0 0
        %2982 = vmatprep.subr.bf16.mxu0 0
        %2983 = vmatpush2.bf16.msra.mxu0 0
        %2984 = vmatprep.subr.bf16.mxu0 0
        %2985 = vmatpush2.bf16.msra.mxu0 0
        %2986 = vmatprep.subr.bf16.mxu0 0
        %2987 = vmatpush2.bf16.msra.mxu0 0
        %2988 = vmatprep.subr.bf16.mxu0 0
        %2989 = vmatpush2.bf16.msra.mxu0 0
        %2990 = vmatprep.subr.bf16.mxu0 0
        %2991 = vmatpush2.bf16.msra.mxu0 0
        %2992 = vmatprep.subr.bf16.mxu0 0
        %2993 = vmatpush2.bf16.msra.mxu0 0
        %2994 = vmatprep.mubr.bf16.mxu0 0
        %2995 = vmatmul.mubr.bf16.gmra.mxu0 %v2961
        %v2996 = vpop.f32.mrf.mxu0
        %v2997 = vadd.f32 0.0, %v2996
        %v2998 = vpop.f32.mrf.mxu0
        %v2999 = vadd.f32 0.0, %v2998
        %v3000 = vpop.f32.mrf.mxu0
        %v3001 = vadd.f32 0.0, %v3000
        %v3002 = vpop.f32.mrf.mxu0
        %v3003 = vadd.f32 0.0, %v3002
        %3004 = vdwg.mxu0
        %3005 = vmatprep.subr.bf16.mxu0 %v564
        %3006 = vmatpush1.bf16.msra.mxu0 %v563
        %3007 = vmatprep.subr.bf16.mxu0 %v560
        %3008 = vmatpush1.bf16.msra.mxu0 %v559
        %3009 = vmatprep.subr.bf16.mxu0 %v556
        %3010 = vmatpush1.bf16.msra.mxu0 %v555
        %3011 = vmatprep.subr.bf16.mxu0 %v552
        %3012 = vmatpush1.bf16.msra.mxu0 %v551
        %3013 = vmatprep.subr.bf16.mxu0 %v548
        %3014 = vmatpush1.bf16.msra.mxu0 %v547
        %3015 = vmatprep.subr.bf16.mxu0 %v544
        %3016 = vmatpush1.bf16.msra.mxu0 %v543
        %3017 = vmatprep.subr.bf16.mxu0 %v540
        %3018 = vmatpush1.bf16.msra.mxu0 %v539
        %3019 = vmatprep.subr.bf16.mxu0 %v536
        %3020 = vmatpush1.bf16.msra.mxu0 %v535
        %3021 = vmatprep.subr.bf16.mxu0 0
        %3022 = vmatpush2.bf16.msra.mxu0 0
        %3023 = vmatprep.subr.bf16.mxu0 0
        %3024 = vmatpush2.bf16.msra.mxu0 0
        %3025 = vmatprep.subr.bf16.mxu0 0
        %3026 = vmatpush2.bf16.msra.mxu0 0
        %3027 = vmatprep.subr.bf16.mxu0 0
        %3028 = vmatpush2.bf16.msra.mxu0 0
        %3029 = vmatprep.subr.bf16.mxu0 0
        %3030 = vmatpush2.bf16.msra.mxu0 0
        %3031 = vmatprep.subr.bf16.mxu0 0
        %3032 = vmatpush2.bf16.msra.mxu0 0
        %3033 = vmatprep.subr.bf16.mxu0 0
        %3034 = vmatpush2.bf16.msra.mxu0 0
        %3035 = vmatprep.subr.bf16.mxu0 0
        %3036 = vmatpush2.bf16.msra.mxu0 0
        %3037 = vmatprep.mubr.bf16.mxu0 0
        %3038 = vmatmul.mubr.bf16.gmra.mxu0 %v2961
        %v3039 = vpop.f32.mrf.mxu0
        %v3040 = vadd.f32 0.0, %v3039
        %v3041 = vpop.f32.mrf.mxu0
        %v3042 = vadd.f32 0.0, %v3041
        %v3043 = vpop.f32.mrf.mxu0
        %v3044 = vadd.f32 0.0, %v3043
        %v3045 = vpop.f32.mrf.mxu0
        %v3046 = vadd.f32 0.0, %v3045
        %3047 = vdwg.mxu0
        %v3048 = vadd.f32 %v2953, %v2997
        %v3049 = vadd.f32 %v2954, %v2999
        %v3050 = vadd.f32 %v2955, %v3040
        %v3051 = vadd.f32 %v2956, %v3042
        %v3052 = vadd.f32 %v2957, %v3001
        %v3053 = vadd.f32 %v2958, %v3003
        %v3054 = vadd.f32 %v2959, %v3044
        %v3055 = vadd.f32 %v2960, %v3046
        %v3056 = vxor.u32 %v3048, 2147483648
        %v3057 = vxor.u32 %v3052, 2147483648
        %v3058 = vmul.f32 %v3056, 1.442695
        %v3059 = vpow.pop %v3058
        %v3060 = vmul.f32 %v3057, 1.442695
        %v3061 = vpow.pop %v3060
        %v3062 = vadd.f32 %v3059, 1.0
        %v3063 = vadd.f32 %v3061, 1.0
        %v3064 = vrcp.pop %v3062
        %v3065 = vmul.f32 1.0, %v3064
        %v3066 = vrcp.pop %v3063
        %v3067 = vmul.f32 1.0, %v3066
        %v3068 = vxor.u32 %v3049, 2147483648
        %v3069 = vxor.u32 %v3053, 2147483648
        %v3070 = vmul.f32 %v3068, 1.442695
        %v3071 = vpow.pop %v3070
        %v3072 = vmul.f32 %v3069, 1.442695
        %v3073 = vpow.pop %v3072
        %v3074 = vadd.f32 %v3071, 1.0
        %v3075 = vadd.f32 %v3073, 1.0
        %v3076 = vrcp.pop %v3074
        %v3077 = vmul.f32 1.0, %v3076
        %v3078 = vrcp.pop %v3075
        %v3079 = vmul.f32 1.0, %v3078
        %v3080 = vtanh.pop %v3050
        %v3081 = vtanh.pop %v3054
        %v3082 = vxor.u32 %v3051, 2147483648
        %v3083 = vxor.u32 %v3055, 2147483648
        %v3084 = vmul.f32 %v3082, 1.442695
        %v3085 = vpow.pop %v3084
        %v3086 = vmul.f32 %v3083, 1.442695
        %v3087 = vpow.pop %v3086
        %v3088 = vadd.f32 %v3085, 1.0
        %v3089 = vadd.f32 %v3087, 1.0
        %v3090 = vrcp.pop %v3088
        %v3091 = vmul.f32 1.0, %v3090
        %v3092 = vrcp.pop %v3089
        %v3093 = vmul.f32 1.0, %v3092
        %v3094 = vmul.f32 %v3077, %v2752
        %v3095 = vmul.f32 %v3079, %v2753
        %v3096 = vmul.f32 %v3065, %v3080
        %v3097 = vmul.f32 %v3067, %v3081
        %v3098 = vadd.f32 %v3094, %v3096
        %v3099 = vadd.f32 %v3095, %v3097
        %v3100 = vtanh.pop %v3098
        %v3101 = vtanh.pop %v3099
        %v3102 = vmul.f32 %v3091, %v3100
        %v3103 = vmul.f32 %v3093, %v3101
        %v3104 = vsel %vm2935, 1, 0
        %v3105 = vsel %vm2936, 1, 0
        %3106 = vset.pattern.permute.xlu0 0
        %3107 = vperm.xlu0 %3106, %v3104
        %v3108 = vpop.permute.xlu0 %3107
        %3109 = vset.pattern.permute.xlu0 0
        %3110 = vperm.xlu0 %3109, %v3105
        %v3111 = vpop.permute.xlu0 %3110
        %vm3112 = vcmp.eq.s32.totalorder %v3108, 1
        %vm3113 = vcmp.eq.s32.totalorder %v3111, 1
        %v3114 = vsel %vm3112, %v3102, %v2750
        %v3115 = vsel %vm3113, %v3103, %v2751
        %v3116 = vsel %vm3112, %v3098, %v2752
        %v3117 = vsel %vm3113, %v3099, %v2753
        %s3118 = scalar_lea.vmem %s260, 32 [#allocation9]
        %v3119 = vld [vmem:[%s3118] sm:$0xff]
        %v3120 = vld [vmem:[%s3118 + $0x8] sm:$0xff]
        %v3121 = vld [vmem:[%s3118 + $0x10] sm:$0xff]
        %v3122 = vld [vmem:[%s3118 + $0x18] sm:$0xff]
        %v3123 = vunpack.c.l.bf16 %v3119
        %v3124 = vunpack.c.h.bf16 %v3119
        %v3125 = vunpack.c.l.bf16 %v3120
        %v3126 = vunpack.c.h.bf16 %v3120
        %v3127 = vunpack.c.l.bf16 %v3121
        %v3128 = vunpack.c.h.bf16 %v3121
        %v3129 = vunpack.c.l.bf16 %v3122
        %v3130 = vunpack.c.h.bf16 %v3122
        %v3131 = vadd.f32 %v3123, %v770
        %v3132 = vadd.f32 %v3124, %v774
        %v3133 = vadd.f32 %v3125, %v778
        %v3134 = vadd.f32 %v3126, %v782
        %v3135 = vadd.f32 %v3127, %v770
        %v3136 = vadd.f32 %v3128, %v774
        %v3137 = vadd.f32 %v3129, %v778
        %v3138 = vadd.f32 %v3130, %v782
        %v3139 = vpack.c.bf16 %v2929, %v2928
        %3140 = vmatprep.subr.bf16.mxu0 %v921
        %3141 = vmatpush1.bf16.msra.mxu0 %v920
        %3142 = vmatprep.subr.bf16.mxu0 %v917
        %3143 = vmatpush1.bf16.msra.mxu0 %v916
        %3144 = vmatprep.subr.bf16.mxu0 %v913
        %3145 = vmatpush1.bf16.msra.mxu0 %v912
        %3146 = vmatprep.subr.bf16.mxu0 %v909
        %3147 = vmatpush1.bf16.msra.mxu0 %v908
        %3148 = vmatprep.subr.bf16.mxu0 %v905
        %3149 = vmatpush1.bf16.msra.mxu0 %v904
        %3150 = vmatprep.subr.bf16.mxu0 %v901
        %3151 = vmatpush1.bf16.msra.mxu0 %v900
        %3152 = vmatprep.subr.bf16.mxu0 %v897
        %3153 = vmatpush1.bf16.msra.mxu0 %v896
        %3154 = vmatprep.subr.bf16.mxu0 %v893
        %3155 = vmatpush1.bf16.msra.mxu0 %v892
        %3156 = vmatprep.subr.bf16.mxu0 0
        %3157 = vmatpush2.bf16.msra.mxu0 0
        %3158 = vmatprep.subr.bf16.mxu0 0
        %3159 = vmatpush2.bf16.msra.mxu0 0
        %3160 = vmatprep.subr.bf16.mxu0 0
        %3161 = vmatpush2.bf16.msra.mxu0 0
        %3162 = vmatprep.subr.bf16.mxu0 0
        %3163 = vmatpush2.bf16.msra.mxu0 0
        %3164 = vmatprep.subr.bf16.mxu0 0
        %3165 = vmatpush2.bf16.msra.mxu0 0
        %3166 = vmatprep.subr.bf16.mxu0 0
        %3167 = vmatpush2.bf16.msra.mxu0 0
        %3168 = vmatprep.subr.bf16.mxu0 0
        %3169 = vmatpush2.bf16.msra.mxu0 0
        %3170 = vmatprep.subr.bf16.mxu0 0
        %3171 = vmatpush2.bf16.msra.mxu0 0
        %3172 = vmatprep.mubr.bf16.mxu0 0
        %3173 = vmatmul.mubr.bf16.gmra.mxu0 %v3139
        %v3174 = vpop.f32.mrf.mxu0
        %v3175 = vadd.f32 0.0, %v3174
        %v3176 = vpop.f32.mrf.mxu0
        %v3177 = vadd.f32 0.0, %v3176
        %v3178 = vpop.f32.mrf.mxu0
        %v3179 = vadd.f32 0.0, %v3178
        %v3180 = vpop.f32.mrf.mxu0
        %v3181 = vadd.f32 0.0, %v3180
        %3182 = vdwg.mxu0
        %3183 = vmatprep.subr.bf16.mxu0 %v923
        %3184 = vmatpush1.bf16.msra.mxu0 %v922
        %3185 = vmatprep.subr.bf16.mxu0 %v919
        %3186 = vmatpush1.bf16.msra.mxu0 %v918
        %3187 = vmatprep.subr.bf16.mxu0 %v915
        %3188 = vmatpush1.bf16.msra.mxu0 %v914
        %3189 = vmatprep.subr.bf16.mxu0 %v911
        %3190 = vmatpush1.bf16.msra.mxu0 %v910
        %3191 = vmatprep.subr.bf16.mxu0 %v907
        %3192 = vmatpush1.bf16.msra.mxu0 %v906
        %3193 = vmatprep.subr.bf16.mxu0 %v903
        %3194 = vmatpush1.bf16.msra.mxu0 %v902
        %3195 = vmatprep.subr.bf16.mxu0 %v899
        %3196 = vmatpush1.bf16.msra.mxu0 %v898
        %3197 = vmatprep.subr.bf16.mxu0 %v895
        %3198 = vmatpush1.bf16.msra.mxu0 %v894
        %3199 = vmatprep.subr.bf16.mxu0 0
        %3200 = vmatpush2.bf16.msra.mxu0 0
        %3201 = vmatprep.subr.bf16.mxu0 0
        %3202 = vmatpush2.bf16.msra.mxu0 0
        %3203 = vmatprep.subr.bf16.mxu0 0
        %3204 = vmatpush2.bf16.msra.mxu0 0
        %3205 = vmatprep.subr.bf16.mxu0 0
        %3206 = vmatpush2.bf16.msra.mxu0 0
        %3207 = vmatprep.subr.bf16.mxu0 0
        %3208 = vmatpush2.bf16.msra.mxu0 0
        %3209 = vmatprep.subr.bf16.mxu0 0
        %3210 = vmatpush2.bf16.msra.mxu0 0
        %3211 = vmatprep.subr.bf16.mxu0 0
        %3212 = vmatpush2.bf16.msra.mxu0 0
        %3213 = vmatprep.subr.bf16.mxu0 0
        %3214 = vmatpush2.bf16.msra.mxu0 0
        %3215 = vmatprep.mubr.bf16.mxu0 0
        %3216 = vmatmul.mubr.bf16.gmra.mxu0 %v3139
        %v3217 = vpop.f32.mrf.mxu0
        %v3218 = vadd.f32 0.0, %v3217
        %v3219 = vpop.f32.mrf.mxu0
        %v3220 = vadd.f32 0.0, %v3219
        %v3221 = vpop.f32.mrf.mxu0
        %v3222 = vadd.f32 0.0, %v3221
        %v3223 = vpop.f32.mrf.mxu0
        %v3224 = vadd.f32 0.0, %v3223
        %3225 = vdwg.mxu0
        %v3226 = vadd.f32 %v3131, %v3175
        %v3227 = vadd.f32 %v3132, %v3177
        %v3228 = vadd.f32 %v3133, %v3218
        %v3229 = vadd.f32 %v3134, %v3220
        %v3230 = vadd.f32 %v3135, %v3179
        %v3231 = vadd.f32 %v3136, %v3181
        %v3232 = vadd.f32 %v3137, %v3222
        %v3233 = vadd.f32 %v3138, %v3224
        %v3234 = vxor.u32 %v3226, 2147483648
        %v3235 = vxor.u32 %v3230, 2147483648
        %v3236 = vmul.f32 %v3234, 1.442695
        %v3237 = vpow.pop %v3236
        %v3238 = vmul.f32 %v3235, 1.442695
        %v3239 = vpow.pop %v3238
        %v3240 = vadd.f32 %v3237, 1.0
        %v3241 = vadd.f32 %v3239, 1.0
        %v3242 = vrcp.pop %v3240
        %v3243 = vmul.f32 1.0, %v3242
        %v3244 = vrcp.pop %v3241
        %v3245 = vmul.f32 1.0, %v3244
        %v3246 = vxor.u32 %v3227, 2147483648
        %v3247 = vxor.u32 %v3231, 2147483648
        %v3248 = vmul.f32 %v3246, 1.442695
        %v3249 = vpow.pop %v3248
        %v3250 = vmul.f32 %v3247, 1.442695
        %v3251 = vpow.pop %v3250
        %v3252 = vadd.f32 %v3249, 1.0
        %v3253 = vadd.f32 %v3251, 1.0
        %v3254 = vrcp.pop %v3252
        %v3255 = vmul.f32 1.0, %v3254
        %v3256 = vrcp.pop %v3253
        %v3257 = vmul.f32 1.0, %v3256
        %v3258 = vtanh.pop %v3228
        %v3259 = vtanh.pop %v3232
        %v3260 = vxor.u32 %v3229, 2147483648
        %v3261 = vxor.u32 %v3233, 2147483648
        %v3262 = vmul.f32 %v3260, 1.442695
        %v3263 = vpow.pop %v3262
        %v3264 = vmul.f32 %v3261, 1.442695
        %v3265 = vpow.pop %v3264
        %v3266 = vadd.f32 %v3263, 1.0
        %v3267 = vadd.f32 %v3265, 1.0
        %v3268 = vrcp.pop %v3266
        %v3269 = vmul.f32 1.0, %v3268
        %v3270 = vrcp.pop %v3267
        %v3271 = vmul.f32 1.0, %v3270
        %v3272 = vmul.f32 %v3255, %v2930
        %v3273 = vmul.f32 %v3257, %v2931
        %v3274 = vmul.f32 %v3243, %v3258
        %v3275 = vmul.f32 %v3245, %v3259
        %v3276 = vadd.f32 %v3272, %v3274
        %v3277 = vadd.f32 %v3273, %v3275
        %v3278 = vtanh.pop %v3276
        %v3279 = vtanh.pop %v3277
        %v3280 = vmul.f32 %v3269, %v3278
        %v3281 = vmul.f32 %v3271, %v3279
        %v3282 = vsel %vm2938, 1, 0
        %v3283 = vsel %vm2939, 1, 0
        %3284 = vset.pattern.permute.xlu0 0
        %3285 = vperm.xlu0 %3284, %v3282
        %v3286 = vpop.permute.xlu0 %3285
        %3287 = vset.pattern.permute.xlu0 0
        %3288 = vperm.xlu0 %3287, %v3283
        %v3289 = vpop.permute.xlu0 %3288
        %vm3290 = vcmp.eq.s32.totalorder %v3286, 1
        %vm3291 = vcmp.eq.s32.totalorder %v3289, 1
        %v3292 = vsel %vm3290, %v3280, %v2928
        %v3293 = vsel %vm3291, %v3281, %v2929
        %v3294 = vsel %vm3290, %v3276, %v2930
        %v3295 = vsel %vm3291, %v3277, %v2931
        %s3296 = sadd.s32 %s385, 7
        %v3297 = vstv %s3296
        %vm3298 = vcmp.lt.s32.totalorder %v3297, %v307
        %vm3299 = vcmp.lt.s32.totalorder %v3297, %v308
        %v3300 = vstv %s387
        %vm3301 = vcmp.lt.s32.totalorder %v3300, %v307
        %vm3302 = vcmp.lt.s32.totalorder %v3300, %v308
        %s3303 = scalar_lea.vmem %s251, 224 [#allocation6]
        %v3304 = vld [vmem:[%s3303] sm:$0xff]
        %v3305 = vld [vmem:[%s3303 + $0x8] sm:$0xff]
        %v3306 = vld [vmem:[%s3303 + $0x10] sm:$0xff]
        %v3307 = vld [vmem:[%s3303 + $0x18] sm:$0xff]
        %v3308 = vunpack.c.l.bf16 %v3304
        %v3309 = vunpack.c.h.bf16 %v3304
        %v3310 = vunpack.c.l.bf16 %v3305
        %v3311 = vunpack.c.h.bf16 %v3305
        %v3312 = vunpack.c.l.bf16 %v3306
        %v3313 = vunpack.c.h.bf16 %v3306
        %v3314 = vunpack.c.l.bf16 %v3307
        %v3315 = vunpack.c.h.bf16 %v3307
        %v3316 = vadd.f32 %v3308, %v411
        %v3317 = vadd.f32 %v3309, %v415
        %v3318 = vadd.f32 %v3310, %v419
        %v3319 = vadd.f32 %v3311, %v423
        %v3320 = vadd.f32 %v3312, %v411
        %v3321 = vadd.f32 %v3313, %v415
        %v3322 = vadd.f32 %v3314, %v419
        %v3323 = vadd.f32 %v3315, %v423
        %v3324 = vpack.c.bf16 %v3115, %v3114
        %3325 = vmatprep.subr.bf16.mxu0 %v562
        %3326 = vmatpush1.bf16.msra.mxu0 %v561
        %3327 = vmatprep.subr.bf16.mxu0 %v558
        %3328 = vmatpush1.bf16.msra.mxu0 %v557
        %3329 = vmatprep.subr.bf16.mxu0 %v554
        %3330 = vmatpush1.bf16.msra.mxu0 %v553
        %3331 = vmatprep.subr.bf16.mxu0 %v550
        %3332 = vmatpush1.bf16.msra.mxu0 %v549
        %3333 = vmatprep.subr.bf16.mxu0 %v546
        %3334 = vmatpush1.bf16.msra.mxu0 %v545
        %3335 = vmatprep.subr.bf16.mxu0 %v542
        %3336 = vmatpush1.bf16.msra.mxu0 %v541
        %3337 = vmatprep.subr.bf16.mxu0 %v538
        %3338 = vmatpush1.bf16.msra.mxu0 %v537
        %3339 = vmatprep.subr.bf16.mxu0 %v534
        %3340 = vmatpush1.bf16.msra.mxu0 %v533
        %3341 = vmatprep.subr.bf16.mxu0 0
        %3342 = vmatpush2.bf16.msra.mxu0 0
        %3343 = vmatprep.subr.bf16.mxu0 0
        %3344 = vmatpush2.bf16.msra.mxu0 0
        %3345 = vmatprep.subr.bf16.mxu0 0
        %3346 = vmatpush2.bf16.msra.mxu0 0
        %3347 = vmatprep.subr.bf16.mxu0 0
        %3348 = vmatpush2.bf16.msra.mxu0 0
        %3349 = vmatprep.subr.bf16.mxu0 0
        %3350 = vmatpush2.bf16.msra.mxu0 0
        %3351 = vmatprep.subr.bf16.mxu0 0
        %3352 = vmatpush2.bf16.msra.mxu0 0
        %3353 = vmatprep.subr.bf16.mxu0 0
        %3354 = vmatpush2.bf16.msra.mxu0 0
        %3355 = vmatprep.subr.bf16.mxu0 0
        %3356 = vmatpush2.bf16.msra.mxu0 0
        %3357 = vmatprep.mubr.bf16.mxu0 0
        %3358 = vmatmul.mubr.bf16.gmra.mxu0 %v3324
        %v3359 = vpop.f32.mrf.mxu0
        %v3360 = vadd.f32 0.0, %v3359
        %v3361 = vpop.f32.mrf.mxu0
        %v3362 = vadd.f32 0.0, %v3361
        %v3363 = vpop.f32.mrf.mxu0
        %v3364 = vadd.f32 0.0, %v3363
        %v3365 = vpop.f32.mrf.mxu0
        %v3366 = vadd.f32 0.0, %v3365
        %3367 = vdwg.mxu0
        %3368 = vmatprep.subr.bf16.mxu0 %v564
        %3369 = vmatpush1.bf16.msra.mxu0 %v563
        %3370 = vmatprep.subr.bf16.mxu0 %v560
        %3371 = vmatpush1.bf16.msra.mxu0 %v559
        %3372 = vmatprep.subr.bf16.mxu0 %v556
        %3373 = vmatpush1.bf16.msra.mxu0 %v555
        %3374 = vmatprep.subr.bf16.mxu0 %v552
        %3375 = vmatpush1.bf16.msra.mxu0 %v551
        %3376 = vmatprep.subr.bf16.mxu0 %v548
        %3377 = vmatpush1.bf16.msra.mxu0 %v547
        %3378 = vmatprep.subr.bf16.mxu0 %v544
        %3379 = vmatpush1.bf16.msra.mxu0 %v543
        %3380 = vmatprep.subr.bf16.mxu0 %v540
        %3381 = vmatpush1.bf16.msra.mxu0 %v539
        %3382 = vmatprep.subr.bf16.mxu0 %v536
        %3383 = vmatpush1.bf16.msra.mxu0 %v535
        %3384 = vmatprep.subr.bf16.mxu0 0
        %3385 = vmatpush2.bf16.msra.mxu0 0
        %3386 = vmatprep.subr.bf16.mxu0 0
        %3387 = vmatpush2.bf16.msra.mxu0 0
        %3388 = vmatprep.subr.bf16.mxu0 0
        %3389 = vmatpush2.bf16.msra.mxu0 0
        %3390 = vmatprep.subr.bf16.mxu0 0
        %3391 = vmatpush2.bf16.msra.mxu0 0
        %3392 = vmatprep.subr.bf16.mxu0 0
        %3393 = vmatpush2.bf16.msra.mxu0 0
        %3394 = vmatprep.subr.bf16.mxu0 0
        %3395 = vmatpush2.bf16.msra.mxu0 0
        %3396 = vmatprep.subr.bf16.mxu0 0
        %3397 = vmatpush2.bf16.msra.mxu0 0
        %3398 = vmatprep.subr.bf16.mxu0 0
        %3399 = vmatpush2.bf16.msra.mxu0 0
        %3400 = vmatprep.mubr.bf16.mxu0 0
        %3401 = vmatmul.mubr.bf16.gmra.mxu0 %v3324
        %v3402 = vpop.f32.mrf.mxu0
        %v3403 = vadd.f32 0.0, %v3402
        %v3404 = vpop.f32.mrf.mxu0
        %v3405 = vadd.f32 0.0, %v3404
        %v3406 = vpop.f32.mrf.mxu0
        %v3407 = vadd.f32 0.0, %v3406
        %v3408 = vpop.f32.mrf.mxu0
        %v3409 = vadd.f32 0.0, %v3408
        %3410 = vdwg.mxu0
        %v3411 = vadd.f32 %v3316, %v3360
        %v3412 = vadd.f32 %v3317, %v3362
        %v3413 = vadd.f32 %v3318, %v3403
        %v3414 = vadd.f32 %v3319, %v3405
        %v3415 = vadd.f32 %v3320, %v3364
        %v3416 = vadd.f32 %v3321, %v3366
        %v3417 = vadd.f32 %v3322, %v3407
        %v3418 = vadd.f32 %v3323, %v3409
        %v3419 = vxor.u32 %v3411, 2147483648
        %v3420 = vxor.u32 %v3415, 2147483648
        %v3421 = vmul.f32 %v3419, 1.442695
        %v3422 = vpow.pop %v3421
        %v3423 = vmul.f32 %v3420, 1.442695
        %v3424 = vpow.pop %v3423
        %v3425 = vadd.f32 %v3422, 1.0
        %v3426 = vadd.f32 %v3424, 1.0
        %v3427 = vrcp.pop %v3425
        %v3428 = vmul.f32 1.0, %v3427
        %v3429 = vrcp.pop %v3426
        %v3430 = vmul.f32 1.0, %v3429
        %v3431 = vxor.u32 %v3412, 2147483648
        %v3432 = vxor.u32 %v3416, 2147483648
        %v3433 = vmul.f32 %v3431, 1.442695
        %v3434 = vpow.pop %v3433
        %v3435 = vmul.f32 %v3432, 1.442695
        %v3436 = vpow.pop %v3435
        %v3437 = vadd.f32 %v3434, 1.0
        %v3438 = vadd.f32 %v3436, 1.0
        %v3439 = vrcp.pop %v3437
        %v3440 = vmul.f32 1.0, %v3439
        %v3441 = vrcp.pop %v3438
        %v3442 = vmul.f32 1.0, %v3441
        %v3443 = vtanh.pop %v3413
        %v3444 = vtanh.pop %v3417
        %v3445 = vxor.u32 %v3414, 2147483648
        %v3446 = vxor.u32 %v3418, 2147483648
        %v3447 = vmul.f32 %v3445, 1.442695
        %v3448 = vpow.pop %v3447
        %v3449 = vmul.f32 %v3446, 1.442695
        %v3450 = vpow.pop %v3449
        %v3451 = vadd.f32 %v3448, 1.0
        %v3452 = vadd.f32 %v3450, 1.0
        %v3453 = vrcp.pop %v3451
        %v3454 = vmul.f32 1.0, %v3453
        %v3455 = vrcp.pop %v3452
        %v3456 = vmul.f32 1.0, %v3455
        %v3457 = vmul.f32 %v3440, %v3116
        %v3458 = vmul.f32 %v3442, %v3117
        %v3459 = vmul.f32 %v3428, %v3443
        %v3460 = vmul.f32 %v3430, %v3444
        %v3461 = vadd.f32 %v3457, %v3459
        %v3462 = vadd.f32 %v3458, %v3460
        %v3463 = vtanh.pop %v3461
        %v3464 = vtanh.pop %v3462
        %v3465 = vmul.f32 %v3454, %v3463
        %v3466 = vmul.f32 %v3456, %v3464
        %v3467 = vsel %vm3298, 1, 0
        %v3468 = vsel %vm3299, 1, 0
        %3469 = vset.pattern.permute.xlu0 0
        %3470 = vperm.xlu0 %3469, %v3467
        %v3471 = vpop.permute.xlu0 %3470
        %3472 = vset.pattern.permute.xlu0 0
        %3473 = vperm.xlu0 %3472, %v3468
        %v3474 = vpop.permute.xlu0 %3473
        %vm3475 = vcmp.eq.s32.totalorder %v3471, 1
        %vm3476 = vcmp.eq.s32.totalorder %v3474, 1
        %v3477 = vsel %vm3475, %v3465, %v3114
        %v3478 = vsel %vm3476, %v3466, %v3115
        %v3479 = vsel %vm3475, %v3461, %v3116
        %v3480 = vsel %vm3476, %v3462, %v3117
        %v3481 = vld [vmem:[%s260] sm:$0xff]
        %v3482 = vld [vmem:[%s260 + $0x8] sm:$0xff]
        %v3483 = vld [vmem:[%s260 + $0x10] sm:$0xff]
        %v3484 = vld [vmem:[%s260 + $0x18] sm:$0xff]
        %v3485 = vunpack.c.l.bf16 %v3481
        %v3486 = vunpack.c.h.bf16 %v3481
        %v3487 = vunpack.c.l.bf16 %v3482
        %v3488 = vunpack.c.h.bf16 %v3482
        %v3489 = vunpack.c.l.bf16 %v3483
        %v3490 = vunpack.c.h.bf16 %v3483
        %v3491 = vunpack.c.l.bf16 %v3484
        %v3492 = vunpack.c.h.bf16 %v3484
        %v3493 = vadd.f32 %v3485, %v770
        %v3494 = vadd.f32 %v3486, %v774
        %v3495 = vadd.f32 %v3487, %v778
        %v3496 = vadd.f32 %v3488, %v782
        %v3497 = vadd.f32 %v3489, %v770
        %v3498 = vadd.f32 %v3490, %v774
        %v3499 = vadd.f32 %v3491, %v778
        %v3500 = vadd.f32 %v3492, %v782
        %v3501 = vpack.c.bf16 %v3293, %v3292
        %3502 = vmatprep.subr.bf16.mxu0 %v921
        %3503 = vmatpush1.bf16.msra.mxu0 %v920
        %3504 = vmatprep.subr.bf16.mxu0 %v917
        %3505 = vmatpush1.bf16.msra.mxu0 %v916
        %3506 = vmatprep.subr.bf16.mxu0 %v913
        %3507 = vmatpush1.bf16.msra.mxu0 %v912
        %3508 = vmatprep.subr.bf16.mxu0 %v909
        %3509 = vmatpush1.bf16.msra.mxu0 %v908
        %3510 = vmatprep.subr.bf16.mxu0 %v905
        %3511 = vmatpush1.bf16.msra.mxu0 %v904
        %3512 = vmatprep.subr.bf16.mxu0 %v901
        %3513 = vmatpush1.bf16.msra.mxu0 %v900
        %3514 = vmatprep.subr.bf16.mxu0 %v897
        %3515 = vmatpush1.bf16.msra.mxu0 %v896
        %3516 = vmatprep.subr.bf16.mxu0 %v893
        %3517 = vmatpush1.bf16.msra.mxu0 %v892
        %3518 = vmatprep.subr.bf16.mxu0 0
        %3519 = vmatpush2.bf16.msra.mxu0 0
        %3520 = vmatprep.subr.bf16.mxu0 0
        %3521 = vmatpush2.bf16.msra.mxu0 0
        %3522 = vmatprep.subr.bf16.mxu0 0
        %3523 = vmatpush2.bf16.msra.mxu0 0
        %3524 = vmatprep.subr.bf16.mxu0 0
        %3525 = vmatpush2.bf16.msra.mxu0 0
        %3526 = vmatprep.subr.bf16.mxu0 0
        %3527 = vmatpush2.bf16.msra.mxu0 0
        %3528 = vmatprep.subr.bf16.mxu0 0
        %3529 = vmatpush2.bf16.msra.mxu0 0
        %3530 = vmatprep.subr.bf16.mxu0 0
        %3531 = vmatpush2.bf16.msra.mxu0 0
        %3532 = vmatprep.subr.bf16.mxu0 0
        %3533 = vmatpush2.bf16.msra.mxu0 0
        %3534 = vmatprep.mubr.bf16.mxu0 0
        %3535 = vmatmul.mubr.bf16.gmra.mxu0 %v3501
        %v3536 = vpop.f32.mrf.mxu0
        %v3537 = vadd.f32 0.0, %v3536
        %v3538 = vpop.f32.mrf.mxu0
        %v3539 = vadd.f32 0.0, %v3538
        %v3540 = vpop.f32.mrf.mxu0
        %v3541 = vadd.f32 0.0, %v3540
        %v3542 = vpop.f32.mrf.mxu0
        %v3543 = vadd.f32 0.0, %v3542
        %3544 = vdwg.mxu0
        %3545 = vmatprep.subr.bf16.mxu0 %v923
        %3546 = vmatpush1.bf16.msra.mxu0 %v922
        %3547 = vmatprep.subr.bf16.mxu0 %v919
        %3548 = vmatpush1.bf16.msra.mxu0 %v918
        %3549 = vmatprep.subr.bf16.mxu0 %v915
        %3550 = vmatpush1.bf16.msra.mxu0 %v914
        %3551 = vmatprep.subr.bf16.mxu0 %v911
        %3552 = vmatpush1.bf16.msra.mxu0 %v910
        %3553 = vmatprep.subr.bf16.mxu0 %v907
        %3554 = vmatpush1.bf16.msra.mxu0 %v906
        %3555 = vmatprep.subr.bf16.mxu0 %v903
        %3556 = vmatpush1.bf16.msra.mxu0 %v902
        %3557 = vmatprep.subr.bf16.mxu0 %v899
        %3558 = vmatpush1.bf16.msra.mxu0 %v898
        %3559 = vmatprep.subr.bf16.mxu0 %v895
        %3560 = vmatpush1.bf16.msra.mxu0 %v894
        %3561 = vmatprep.subr.bf16.mxu0 0
        %3562 = vmatpush2.bf16.msra.mxu0 0
        %3563 = vmatprep.subr.bf16.mxu0 0
        %3564 = vmatpush2.bf16.msra.mxu0 0
        %3565 = vmatprep.subr.bf16.mxu0 0
        %3566 = vmatpush2.bf16.msra.mxu0 0
        %3567 = vmatprep.subr.bf16.mxu0 0
        %3568 = vmatpush2.bf16.msra.mxu0 0
        %3569 = vmatprep.subr.bf16.mxu0 0
        %3570 = vmatpush2.bf16.msra.mxu0 0
        %3571 = vmatprep.subr.bf16.mxu0 0
        %3572 = vmatpush2.bf16.msra.mxu0 0
        %3573 = vmatprep.subr.bf16.mxu0 0
        %3574 = vmatpush2.bf16.msra.mxu0 0
        %3575 = vmatprep.subr.bf16.mxu0 0
        %3576 = vmatpush2.bf16.msra.mxu0 0
        %3577 = vmatprep.mubr.bf16.mxu0 0
        %3578 = vmatmul.mubr.bf16.gmra.mxu0 %v3501
        %v3579 = vpop.f32.mrf.mxu0
        %v3580 = vadd.f32 0.0, %v3579
        %v3581 = vpop.f32.mrf.mxu0
        %v3582 = vadd.f32 0.0, %v3581
        %v3583 = vpop.f32.mrf.mxu0
        %v3584 = vadd.f32 0.0, %v3583
        %v3585 = vpop.f32.mrf.mxu0
        %v3586 = vadd.f32 0.0, %v3585
        %3587 = vdwg.mxu0
        %v3588 = vadd.f32 %v3493, %v3537
        %v3589 = vadd.f32 %v3494, %v3539
        %v3590 = vadd.f32 %v3495, %v3580
        %v3591 = vadd.f32 %v3496, %v3582
        %v3592 = vadd.f32 %v3497, %v3541
        %v3593 = vadd.f32 %v3498, %v3543
        %v3594 = vadd.f32 %v3499, %v3584
        %v3595 = vadd.f32 %v3500, %v3586
        %v3596 = vxor.u32 %v3588, 2147483648
        %v3597 = vxor.u32 %v3592, 2147483648
        %v3598 = vmul.f32 %v3596, 1.442695
        %v3599 = vpow.pop %v3598
        %v3600 = vmul.f32 %v3597, 1.442695
        %v3601 = vpow.pop %v3600
        %v3602 = vadd.f32 %v3599, 1.0
        %v3603 = vadd.f32 %v3601, 1.0
        %v3604 = vrcp.pop %v3602
        %v3605 = vmul.f32 1.0, %v3604
        %v3606 = vrcp.pop %v3603
        %v3607 = vmul.f32 1.0, %v3606
        %v3608 = vxor.u32 %v3589, 2147483648
        %v3609 = vxor.u32 %v3593, 2147483648
        %v3610 = vmul.f32 %v3608, 1.442695
        %v3611 = vpow.pop %v3610
        %v3612 = vmul.f32 %v3609, 1.442695
        %v3613 = vpow.pop %v3612
        %v3614 = vadd.f32 %v3611, 1.0
        %v3615 = vadd.f32 %v3613, 1.0
        %v3616 = vrcp.pop %v3614
        %v3617 = vmul.f32 1.0, %v3616
        %v3618 = vrcp.pop %v3615
        %v3619 = vmul.f32 1.0, %v3618
        %v3620 = vtanh.pop %v3590
        %v3621 = vtanh.pop %v3594
        %v3622 = vxor.u32 %v3591, 2147483648
        %v3623 = vxor.u32 %v3595, 2147483648
        %v3624 = vmul.f32 %v3622, 1.442695
        %v3625 = vpow.pop %v3624
        %v3626 = vmul.f32 %v3623, 1.442695
        %v3627 = vpow.pop %v3626
        %v3628 = vadd.f32 %v3625, 1.0
        %v3629 = vadd.f32 %v3627, 1.0
        %v3630 = vrcp.pop %v3628
        %v3631 = vmul.f32 1.0, %v3630
        %v3632 = vrcp.pop %v3629
        %v3633 = vmul.f32 1.0, %v3632
        %v3634 = vmul.f32 %v3617, %v3294
        %v3635 = vmul.f32 %v3619, %v3295
        %v3636 = vmul.f32 %v3605, %v3620
        %v3637 = vmul.f32 %v3607, %v3621
        %v3638 = vadd.f32 %v3634, %v3636
        %v3639 = vadd.f32 %v3635, %v3637
        %v3640 = vtanh.pop %v3638
        %v3641 = vtanh.pop %v3639
        %v3642 = vmul.f32 %v3631, %v3640
        %v3643 = vmul.f32 %v3633, %v3641
        %v3644 = vsel %vm3301, 1, 0
        %v3645 = vsel %vm3302, 1, 0
        %3646 = vset.pattern.permute.xlu0 0
        %3647 = vperm.xlu0 %3646, %v3644
        %v3648 = vpop.permute.xlu0 %3647
        %3649 = vset.pattern.permute.xlu0 0
        %3650 = vperm.xlu0 %3649, %v3645
        %v3651 = vpop.permute.xlu0 %3650
        %vm3652 = vcmp.eq.s32.totalorder %v3648, 1
        %vm3653 = vcmp.eq.s32.totalorder %v3651, 1
        %v3654 = vsel %vm3652, %v3642, %v3292
        %v3655 = vsel %vm3653, %v3643, %v3293
        %v3656 = vsel %vm3652, %v3638, %v3294
        %v3657 = vsel %vm3653, %v3639, %v3295
        %3658 = vst [vmem:[#allocation2] sm:$0xff] %v3477
        %3659 = vst [vmem:[#allocation2 + $0x8] sm:$0xff] %v3478
        %3660 = vst [vmem:[#allocation3] sm:$0xff] %v3479
        %3661 = vst [vmem:[#allocation3 + $0x8] sm:$0xff] %v3480
        %3662 = vst [vmem:[#allocation4] sm:$0xff] %v3654
        %3663 = vst [vmem:[#allocation4 + $0x8] sm:$0xff] %v3655
        %3664 = vst [vmem:[#allocation5] sm:$0xff] %v3656
        %3665 = vst [vmem:[#allocation5 + $0x8] sm:$0xff] %v3657
        %3666 = vst [vmem:[#allocation12] sm:$0xff] %v3477
        %3667 = vst [vmem:[#allocation12 + $0x10] sm:$0xff] %v3478
        %3668 = vst [vmem:[#allocation12 + $0x8] sm:$0xff] %v3654
        %3669 = vst [vmem:[#allocation12 + $0x18] sm:$0xff] %v3655
        // Predicated region
        $region57: #{tpu_custom_call.1} parent=39 // pred_check
          %p3670 = pneg %p153
        $region58: #{tpu_custom_call.1} parent=39 // pred_check_branch
          %3672 = sbr.rel (%p3670) target = $region60
        $region59: #{tpu_custom_call.1} parent=39 // pred_region
          %s3674 = ssub.s32 512, 512
          %3675 = vsyncadd [#allocation8], %s3674
          %s3676 = sshll.u32 [#allocation12], 4
          %s3677 = int_to_ptr.vmem [resolvable:$true] %s3676
          %3682 = dma.vmem_to_hbm [thread:$0]  %s3677, 512, %s5, [#allocation8], 256, 256, 16
        $region60: #{tpu_custom_call.1} parent=39 // pred_fallthru
          _
        // Predicated region
        $region61: #{tpu_custom_call.1} parent=39 // pred_check
          %p3683 = pneg %p153
        $region62: #{tpu_custom_call.1} parent=39 // pred_check_branch
          %3685 = sbr.rel (%p3683) target = $region64
        $region63: #{tpu_custom_call.1} parent=39 // pred_region
          %3686 = dma.done [#allocation8], 512
        $region64: #{tpu_custom_call.1} parent=39 // pred_fallthru
          _
      $region40: #{tpu_custom_call.1} parent=5 // pred_fallthru
        _
      %p3687 = scmp.le.s32.totalorder 2, %s18
      // Predicated region
      $region65: #{tpu_custom_call.1} parent=5 // pred_check
        %p3688 = pneg %p3687
      $region66: #{tpu_custom_call.1} parent=5 // pred_check_branch
        %3690 = sbr.rel (%p3688) target = $region68
      $region67: #{tpu_custom_call.1} parent=5 // pred_region
        %s3691 = ssub.s32 %s18, 2
      $region68: #{tpu_custom_call.1} parent=5 // pred_fallthru
        _
    $region6: #{tpu_custom_call.1} parent=1 // loop_footer
      %s22 = sadd.s32 1, %s18
    $region7: #{tpu_custom_call.1} parent=1 // loop_footer_branch
      %17 = sbr.rel target = $region3
    $region8: #{tpu_custom_call.1} parent=1 // loop_exit
      _
    %3692 = vsyncpa [#allocation7], 1
    %s3693 = scalar_lea.sflag [#allocation7], 1
    %3694 = vsyncpa %s3693, 1
    %3695 = vsyncpa [#allocation10], 1
    %s3696 = scalar_lea.sflag [#allocation10], 1
    %3697 = vsyncpa %s3696, 1
    %3698 = vsyncpa [#allocation8], 1
    %s3699 = scalar_lea.sflag [#allocation8], 1
    %3700 = vsyncpa %s3699, 1

</llo_original>
